<compile_context>
chip_gen: v7x
topology: tpu7x:2x2x1
jax: 0.10.0
libtpu: 0.0.40
codegen_flags: <defaults>
</compile_context>

<pallas_src>
import functools

import jax
import jax.numpy as jnp
from jax.experimental import pallas as pl
from jax.experimental.pallas import tpu as pltpu


# ----------------------------------------------------------------------------
# Kernel
# ----------------------------------------------------------------------------
def _sigmoid(z):
    return 1.0 / (1.0 + jnp.exp(-z))


def _cdae_kernel(emb_ref, x_ref, w1_ref, w2_ref, b2_ref, w3_ref, b3_ref,
                 out_ref, acc_ref, h2_ref, *, k_steps):
    """Phase-gated fused CDAE forward (see module docstring)."""
    i = pl.program_id(1)

    # ---- phase 1: hidden-layer reduction over item tiles --------------------
    @pl.when(i == 0)
    def _():
        acc_ref[...] = emb_ref[...]                      # emb already folds in b1

    @pl.when(i < k_steps)
    def _():
        # x streamed f32, cast to bf16 on the VPU; bf16 x bf16 -> f32 on the MXU.
        acc_ref[...] += jnp.dot(x_ref[...].astype(jnp.bfloat16), w1_ref[...],
                                preferred_element_type=jnp.float32)

    @pl.when(i == k_steps - 1)
    def _():
        h1 = _sigmoid(acc_ref[...])                      # f32 sigmoid (v5e-safe)
        h2_ref[...] = _sigmoid(
            jnp.dot(h1, w2_ref[...], preferred_element_type=jnp.float32)
            + b2_ref[...])                               # h2 kept f32 in VMEM

    # ---- phase 2: lane-dense output-column tiles -----------------------------
    @pl.when(i >= k_steps)
    def _():
        logits = jnp.dot(h2_ref[...].astype(jnp.bfloat16), w3_ref[...],
                         preferred_element_type=jnp.float32) + b3_ref[...]
        out_ref[...] = _sigmoid(logits).astype(out_ref.dtype)


# ----------------------------------------------------------------------------
# Wrapper
# ----------------------------------------------------------------------------
def _round_up(x, m):
    return ((x + m - 1) // m) * m


def _pick_tile(dim, target, multiple=256):
    """Largest multiple-of-`multiple` divisor of `dim` that is <= target; if none
    exists, return `target` rounded down to `multiple` (caller zero-pads `dim`).
    Never returns more than max(target, round_up(dim)) -> VMEM stays bounded."""
    dim_r = _round_up(dim, multiple)
    if dim_r <= target:
        return dim_r
    t = (target // multiple) * multiple
    while t >= multiple:
        if dim % t == 0:
            return t
        t -= multiple
    return max((target // multiple) * multiple, multiple)


def _num_batch_blocks(batch):
    """2 on chips with two TensorCores (v7x) so the 'parallel' batch axis spans
    both cores; 1 elsewhere (a split there would only re-stream W1)."""
    if batch % 16 != 0:
        return 1
    try:
        kind = jax.devices()[0].device_kind.lower()
    except Exception:
        return 1
    return 2 if "v7" in kind else 1


def cdae_forward(uid, purchase_vec, params, *, tk_max=2048, tn_max=2048):
    """CDAE eval-mode forward.

    uid: int32 [B] or [B, 1]; purchase_vec: float32 [B, nb_item].
    Expects params['w1'] / params['w3'] pre-cast to bf16 (done once at load
    time by init_params); falls back to casting if handed f32.
    """
    emb_table = params["emb"]
    b1, w2, b2, b3 = params["b1"], params["w2"], params["b2"], params["b3"]
    w1, w3 = params["w1"], params["w3"]
    if w1.dtype != jnp.bfloat16:        # fallback only; pre-cast at load time
        w1 = w1.astype(jnp.bfloat16)
    if w3.dtype != jnp.bfloat16:
        w3 = w3.astype(jnp.bfloat16)

    B, nb_item = purchase_vec.shape
    H1 = w1.shape[1]
    H2 = w2.shape[1]

    # Embedding gather + fold b1 (tiny; stays in JAX glue).
    emb = jnp.take(emb_table, uid.reshape(-1), axis=0) + b1          # [B, H1] f32

    # Tiling over nb_item: tk for the x@W1 reduction, tn for output columns.
    tk = _pick_tile(nb_item, tk_max)
    tn = _pick_tile(nb_item, tn_max)
    k_items = _round_up(nb_item, tk)
    n_items = _round_up(nb_item, tn)
    K = k_items // tk
    J = n_items // tn

    x = purchase_vec.astype(jnp.float32)   # stream f32; bf16 cast happens in-kernel
    if k_items != nb_item:                 # zero-pad reduction axis (exact)
        x = jnp.pad(x, ((0, 0), (0, k_items - nb_item)))
        w1 = jnp.pad(w1, ((0, k_items - nb_item), (0, 0)))
    if n_items != nb_item:                 # padded output columns sliced off below
        w3 = jnp.pad(w3, ((0, 0), (0, n_items - nb_item)))
        b3 = jnp.pad(b3, ((0, 0), (0, n_items - nb_item)))

    NB = _num_batch_blocks(B)
    Bb = B // NB

    kernel = functools.partial(_cdae_kernel, k_steps=K)

    out = pl.pallas_call(
        kernel,
        out_shape=jax.ShapeDtypeStruct((B, n_items), jnp.float32),
        grid=(NB, K + J),
        in_specs=[
            pl.BlockSpec((Bb, H1), lambda b, i: (b, 0)),                      # emb+b1
            pl.BlockSpec((Bb, tk), lambda b, i: (b, jnp.minimum(i, K - 1))),  # x tile
            pl.BlockSpec((tk, H1), lambda b, i: (jnp.minimum(i, K - 1), 0)),  # W1 tile
            pl.BlockSpec((H1, H2), lambda b, i: (0, 0)),                      # W2
            pl.BlockSpec((1, H2), lambda b, i: (0, 0)),                       # b2
            pl.BlockSpec((H2, tn), lambda b, i: (0, jnp.maximum(i - K, 0))),  # W3 tile
            pl.BlockSpec((1, tn), lambda b, i: (0, jnp.maximum(i - K, 0))),   # b3 tile
        ],
        out_specs=pl.BlockSpec((Bb, tn), lambda b, i: (b, jnp.maximum(i - K, 0))),
        scratch_shapes=[
            pltpu.VMEM((Bb, H1), jnp.float32),   # f32 accumulator for emb+b1+x@W1
            pltpu.VMEM((Bb, H2), jnp.float32),   # h2 kept on-chip between phases
        ],
        compiler_params=pltpu.CompilerParams(
            dimension_semantics=("parallel", "arbitrary"),
            vmem_limit_bytes=32 * 1024 * 1024),
        cost_estimate=pl.CostEstimate(
            flops=2 * B * (k_items * H1 + H1 * H2 + H2 * n_items),
            transcendentals=B * (H1 + H2 + n_items),
            bytes_accessed=(x.size * 4 + w1.size * 2 + w3.size * 2
                            + emb.size * 4 + w2.size * 4 + b2.size * 4
                            + b3.size * 4 + B * n_items * 4)),
    )(emb, x, w1, w2, b2, w3, b3)

    if n_items != nb_item:
        out = out[:, :nb_item]
    return out


# ----------------------------------------------------------------------------
# Params + demo
# ----------------------------------------------------------------------------
def init_params(key, nb_item, nb_user, nb_hidden1, nb_hidden2):
    """Deterministic synthetic parameters (shapes from CDAE.__init__).
    The big streamed weights W1/W3 are pre-cast to bf16 ONCE here (load time)."""
    ks = jax.random.split(key, 7)
    scale = 0.05
    f32 = jnp.float32
    w1 = jax.random.normal(ks[1], (nb_item, nb_hidden1), f32) * scale
    w3 = jax.random.normal(ks[5], (nb_hidden2, nb_item), f32) * scale
    return {
        # nn.Embedding(nb_user, nb_hidden1)
        "emb": jax.random.normal(ks[0], (nb_user, nb_hidden1), f32) * scale,
        # nn.Linear(nb_item, nb_hidden1) -> stored [in, out], streamed bf16
        "w1": w1.astype(jnp.bfloat16),
        "b1": jax.random.normal(ks[2], (1, nb_hidden1), f32) * scale,
        # nn.Linear(nb_hidden1, nb_hidden2) (tiny -> f32)
        "w2": jax.random.normal(ks[3], (nb_hidden1, nb_hidden2), f32) * scale,
        "b2": jax.random.normal(ks[4], (1, nb_hidden2), f32) * scale,
        # nn.Linear(nb_hidden2, nb_item), streamed bf16
        "w3": w3.astype(jnp.bfloat16),
        "b3": jax.random.normal(ks[6], (1, nb_item), f32) * scale,
    }


if __name__ == "__main__":
    # Small but tile-exercising shapes: K = J = 2 at 2048-wide tiles, 64 rows.
    B, NB_ITEM, NB_USER, H1, H2 = 64, 4096, 32, 128, 64

    key = jax.random.PRNGKey(0)
    k_par, k_uid, k_x = jax.random.split(key, 3)

    params = init_params(k_par, NB_ITEM, NB_USER, H1, H2)
    uid = jax.random.randint(k_uid, (B, 1), 0, NB_USER, dtype=jnp.int32)
    purchase_vec = (jax.random.uniform(k_x, (B, NB_ITEM)) < 0.1).astype(jnp.float32)

    # TODO(synk): nn.Dropout is stochastic in train mode; eval-mode (identity)
    # semantics are what is implemented here.

    fwd = jax.jit(cdae_forward)
    out = jax.block_until_ready(fwd(uid, purchase_vec, params))

    # Precision-matched pure-JAX reference (W1/W3 are served bf16; x and h2 pass
    # through bf16 exactly like the kernel; all math/accumulation in f32).
    f32 = jnp.float32
    w1f = params["w1"].astype(f32)
    w3f = params["w3"].astype(f32)
    xf = purchase_vec.astype(jnp.bfloat16).astype(f32)          # exact for 0/1
    emb = jnp.take(params["emb"], uid.reshape(-1), axis=0) + params["b1"]
    h1 = _sigmoid(emb + xf @ w1f)
    h2 = _sigmoid(h1 @ params["w2"] + params["b2"])
    ref = _sigmoid(h2.astype(jnp.bfloat16).astype(f32) @ w3f + params["b3"])

    assert out.shape == (B, NB_ITEM)
    max_err = float(jnp.max(jnp.abs(out - ref)))
    assert jnp.allclose(out, ref, atol=2e-3, rtol=2e-3), f"max_err={max_err}"

    print("KERNEL_OK")
</pallas_src>

<mosaic_0001>
module attributes {stable_mosaic.version = 11 : i64} {
  func.func @_cdae_kernel(%arg0: i32, %arg1: i32, %arg2: memref<64x128xf32, #tpu.memory_space<vmem>>, %arg3: memref<64x2048xf32, #tpu.memory_space<vmem>>, %arg4: memref<2048x128xbf16, #tpu.memory_space<vmem>>, %arg5: memref<128x64xf32, #tpu.memory_space<vmem>>, %arg6: memref<1x64xf32, #tpu.memory_space<vmem>>, %arg7: memref<64x2048xbf16, #tpu.memory_space<vmem>>, %arg8: memref<1x2048xf32, #tpu.memory_space<vmem>>, %arg9: memref<64x2048xf32, #tpu.memory_space<vmem>>, %arg10: memref<64x128xf32, #tpu.memory_space<vmem>>, %arg11: memref<64x64xf32, #tpu.memory_space<vmem>>) attributes {dimension_semantics = [#tpu.dimension_semantics<parallel>, #tpu.dimension_semantics<arbitrary>], iteration_bounds = array<i64: 1, 4>, scalar_prefetch = 0 : i64, scratch_operands = 2 : i64, tpu.core_type = #tpu.core_type<tc>, window_params = [{transform_indices = @transform_0, window_bounds = array<i64: 64, 128>}, {transform_indices = @transform_1, window_bounds = array<i64: 64, 2048>}, {transform_indices = @transform_2, window_bounds = array<i64: 2048, 128>}, {pipeline_mode = #tpu.pipeline_mode<synchronous>, transform_indices = @transform_3, window_bounds = array<i64: 128, 64>}, {pipeline_mode = #tpu.pipeline_mode<synchronous>, transform_indices = @transform_4, window_bounds = array<i64: 1, 64>}, {transform_indices = @transform_5, window_bounds = array<i64: 64, 2048>}, {transform_indices = @transform_6, window_bounds = array<i64: 1, 2048>}, {transform_indices = @transform_7, window_bounds = array<i64: 64, 2048>}]} {
    %c0_i32 = arith.constant 0 : i32
    %0 = arith.cmpi eq, %arg1, %c0_i32 : i32
    %1 = arith.extui %0 : i1 to i32
    %c0_i32_0 = arith.constant 0 : i32
    %2 = arith.cmpi ne, %1, %c0_i32_0 : i32
    scf.if %2 {
      %c0 = arith.constant 0 : index
      %c0_5 = arith.constant 0 : index
      %12 = vector.load %arg2[%c0, %c0_5] : memref<64x128xf32, #tpu.memory_space<vmem>>, vector<64x128xf32>
      %c0_6 = arith.constant 0 : index
      %c0_7 = arith.constant 0 : index
      %13 = vector.load %arg10[%c0_6, %c0_7] : memref<64x128xf32, #tpu.memory_space<vmem>>, vector<64x128xf32>
      tpu.vector_store %arg10[%c0_6, %c0_7], %12 {strides = array<i32>} : memref<64x128xf32, #tpu.memory_space<vmem>>, vector<64x128xf32>,
    } else {
    }
    %c2_i32 = arith.constant 2 : i32
    %3 = arith.cmpi slt, %arg1, %c2_i32 : i32
    %4 = arith.extui %3 : i1 to i32
    %c0_i32_1 = arith.constant 0 : i32
    %5 = arith.cmpi ne, %4, %c0_i32_1 : i32
    scf.if %5 {
      %c0 = arith.constant 0 : index
      %c0_5 = arith.constant 0 : index
      %12 = vector.load %arg10[%c0, %c0_5] : memref<64x128xf32, #tpu.memory_space<vmem>>, vector<64x128xf32>
      %c0_6 = arith.constant 0 : index
      %c0_7 = arith.constant 0 : index
      %13 = vector.load %arg3[%c0_6, %c0_7] : memref<64x2048xf32, #tpu.memory_space<vmem>>, vector<64x2048xf32>
      %14 = arith.truncf %13 : vector<64x2048xf32> to vector<64x2048xbf16>
      %c0_8 = arith.constant 0 : index
      %c0_9 = arith.constant 0 : index
      %15 = vector.load %arg4[%c0_8, %c0_9] : memref<2048x128xbf16, #tpu.memory_space<vmem>>, vector<2048x128xbf16>
      %cst = arith.constant dense<0.000000e+00> : vector<64x128xf32>
      %16 = tpu.matmul %14, %15, %cst {dimension_numbers = #tpu.dot_dimension_numbers<[1], [0], [0], [1], [0, 0, 1, 1], [], []>} : vector<64x2048xbf16>, vector<2048x128xbf16>, vector<64x128xf32> -> vector<64x128xf32>
      %17 = arith.addf %12, %16 : vector<64x128xf32>
      %c0_10 = arith.constant 0 : index
      %c0_11 = arith.constant 0 : index
      %18 = vector.load %arg10[%c0_10, %c0_11] : memref<64x128xf32, #tpu.memory_space<vmem>>, vector<64x128xf32>
      tpu.vector_store %arg10[%c0_10, %c0_11], %17 {strides = array<i32>} : memref<64x128xf32, #tpu.memory_space<vmem>>, vector<64x128xf32>,
    } else {
    }
    %c1_i32 = arith.constant 1 : i32
    %6 = arith.cmpi eq, %arg1, %c1_i32 : i32
    %7 = arith.extui %6 : i1 to i32
    %c0_i32_2 = arith.constant 0 : i32
    %8 = arith.cmpi ne, %7, %c0_i32_2 : i32
    scf.if %8 {
      %c0 = arith.constant 0 : index
      %c0_5 = arith.constant 0 : index
      %12 = vector.load %arg10[%c0, %c0_5] : memref<64x128xf32, #tpu.memory_space<vmem>>, vector<64x128xf32>
      %cst = arith.constant 0.000000e+00 : f32
      %13 = vector.broadcast %cst : f32 to vector<64x128xf32>
      %14 = arith.subf %13, %12 : vector<64x128xf32>
      %15 = math.exp %14 : vector<64x128xf32>
      %cst_6 = arith.constant 1.000000e+00 : f32
      %16 = vector.broadcast %cst_6 : f32 to vector<64x128xf32>
      %17 = arith.addf %16, %15 : vector<64x128xf32>
      %cst_7 = arith.constant 1.000000e+00 : f32
      %18 = vector.broadcast %cst_7 : f32 to vector<64x128xf32>
      %19 = arith.divf %18, %17 : vector<64x128xf32>
      %c0_8 = arith.constant 0 : index
      %c0_9 = arith.constant 0 : index
      %20 = vector.load %arg5[%c0_8, %c0_9] : memref<128x64xf32, #tpu.memory_space<vmem>>, vector<128x64xf32>
      %cst_10 = arith.constant dense<0.000000e+00> : vector<64x64xf32>
      %21 = tpu.matmul %19, %20, %cst_10 {dimension_numbers = #tpu.dot_dimension_numbers<[1], [0], [0], [1], [0, 0, 1, 1], [], []>} : vector<64x128xf32>, vector<128x64xf32>, vector<64x64xf32> -> vector<64x64xf32>
      %c0_11 = arith.constant 0 : index
      %c0_12 = arith.constant 0 : index
      %22 = vector.load %arg6[%c0_11, %c0_12] : memref<1x64xf32, #tpu.memory_space<vmem>>, vector<1x64xf32>
      %23 = vector.broadcast %22 : vector<1x64xf32> to vector<64x64xf32>
      %24 = arith.addf %21, %23 : vector<64x64xf32>
      %cst_13 = arith.constant 0.000000e+00 : f32
      %25 = vector.broadcast %cst_13 : f32 to vector<64x64xf32>
      %26 = arith.subf %25, %24 : vector<64x64xf32>
      %27 = math.exp %26 : vector<64x64xf32>
      %cst_14 = arith.constant 1.000000e+00 : f32
      %28 = vector.broadcast %cst_14 : f32 to vector<64x64xf32>
      %29 = arith.addf %28, %27 : vector<64x64xf32>
      %cst_15 = arith.constant 1.000000e+00 : f32
      %30 = vector.broadcast %cst_15 : f32 to vector<64x64xf32>
      %31 = arith.divf %30, %29 : vector<64x64xf32>
      %c0_16 = arith.constant 0 : index
      %c0_17 = arith.constant 0 : index
      %32 = vector.load %arg11[%c0_16, %c0_17] : memref<64x64xf32, #tpu.memory_space<vmem>>, vector<64x64xf32>
      tpu.vector_store %arg11[%c0_16, %c0_17], %31 {strides = array<i32>} : memref<64x64xf32, #tpu.memory_space<vmem>>, vector<64x64xf32>,
    } else {
    }
    %c2_i32_3 = arith.constant 2 : i32
    %9 = arith.cmpi sge, %arg1, %c2_i32_3 : i32
    %10 = arith.extui %9 : i1 to i32
    %c0_i32_4 = arith.constant 0 : i32
    %11 = arith.cmpi ne, %10, %c0_i32_4 : i32
    scf.if %11 {
      %c0 = arith.constant 0 : index
      %c0_5 = arith.constant 0 : index
      %12 = vector.load %arg11[%c0, %c0_5] : memref<64x64xf32, #tpu.memory_space<vmem>>, vector<64x64xf32>
      %13 = arith.truncf %12 : vector<64x64xf32> to vector<64x64xbf16>
      %c0_6 = arith.constant 0 : index
      %c0_7 = arith.constant 0 : index
      %14 = vector.load %arg7[%c0_6, %c0_7] : memref<64x2048xbf16, #tpu.memory_space<vmem>>, vector<64x2048xbf16>
      %cst = arith.constant dense<0.000000e+00> : vector<64x2048xf32>
      %15 = tpu.matmul %13, %14, %cst {dimension_numbers = #tpu.dot_dimension_numbers<[1], [0], [0], [1], [0, 0, 1, 1], [], []>} : vector<64x64xbf16>, vector<64x2048xbf16>, vector<64x2048xf32> -> vector<64x2048xf32>
      %c0_8 = arith.constant 0 : index
      %c0_9 = arith.constant 0 : index
      %16 = vector.load %arg8[%c0_8, %c0_9] : memref<1x2048xf32, #tpu.memory_space<vmem>>, vector<1x2048xf32>
      %17 = vector.broadcast %16 : vector<1x2048xf32> to vector<64x2048xf32>
      %18 = arith.addf %15, %17 : vector<64x2048xf32>
      %cst_10 = arith.constant 0.000000e+00 : f32
      %19 = vector.broadcast %cst_10 : f32 to vector<64x2048xf32>
      %20 = arith.subf %19, %18 : vector<64x2048xf32>
      %21 = math.exp %20 : vector<64x2048xf32>
      %cst_11 = arith.constant 1.000000e+00 : f32
      %22 = vector.broadcast %cst_11 : f32 to vector<64x2048xf32>
      %23 = arith.addf %22, %21 : vector<64x2048xf32>
      %cst_12 = arith.constant 1.000000e+00 : f32
      %24 = vector.broadcast %cst_12 : f32 to vector<64x2048xf32>
      %25 = arith.divf %24, %23 : vector<64x2048xf32>
      %c0_13 = arith.constant 0 : index
      %c0_14 = arith.constant 0 : index
      %26 = vector.load %arg9[%c0_13, %c0_14] : memref<64x2048xf32, #tpu.memory_space<vmem>>, vector<64x2048xf32>
      tpu.vector_store %arg9[%c0_13, %c0_14], %25 {strides = array<i32>} : memref<64x2048xf32, #tpu.memory_space<vmem>>, vector<64x2048xf32>,
    } else {
    }
    return
  }
  func.func @transform_0(%arg0: i32, %arg1: i32) -> (i32, i32) {
    %c0_i32 = arith.constant 0 : i32
    %c0_i32_0 = arith.constant 0 : i32
    return %arg0, %c0_i32 : i32, i32
  }
  func.func @transform_1(%arg0: i32, %arg1: i32) -> (i32, i32) {
    %c1_i32 = arith.constant 1 : i32
    %0 = arith.minsi %arg1, %c1_i32 : i32
    %c0_i32 = arith.constant 0 : i32
    return %arg0, %0 : i32, i32
  }
  func.func @transform_2(%arg0: i32, %arg1: i32) -> (i32, i32) {
    %c1_i32 = arith.constant 1 : i32
    %0 = arith.minsi %arg1, %c1_i32 : i32
    %c0_i32 = arith.constant 0 : i32
    %c0_i32_0 = arith.constant 0 : i32
    return %0, %c0_i32 : i32, i32
  }
  func.func @transform_3(%arg0: i32, %arg1: i32) -> (i32, i32) {
    %c0_i32 = arith.constant 0 : i32
    %c0_i32_0 = arith.constant 0 : i32
    %c0_i32_1 = arith.constant 0 : i32
    return %c0_i32, %c0_i32_0 : i32, i32
  }
  func.func @transform_4(%arg0: i32, %arg1: i32) -> (i32, i32) {
    %c0_i32 = arith.constant 0 : i32
    %c0_i32_0 = arith.constant 0 : i32
    %c0_i32_1 = arith.constant 0 : i32
    return %c0_i32, %c0_i32_0 : i32, i32
  }
  func.func @transform_5(%arg0: i32, %arg1: i32) -> (i32, i32) {
    %c2_i32 = arith.constant 2 : i32
    %0 = arith.subi %arg1, %c2_i32 : i32
    %c0_i32 = arith.constant 0 : i32
    %1 = arith.maxsi %0, %c0_i32 : i32
    %c0_i32_0 = arith.constant 0 : i32
    %c0_i32_1 = arith.constant 0 : i32
    return %c0_i32_0, %1 : i32, i32
  }
  func.func @transform_6(%arg0: i32, %arg1: i32) -> (i32, i32) {
    %c2_i32 = arith.constant 2 : i32
    %0 = arith.subi %arg1, %c2_i32 : i32
    %c0_i32 = arith.constant 0 : i32
    %1 = arith.maxsi %0, %c0_i32 : i32
    %c0_i32_0 = arith.constant 0 : i32
    %c0_i32_1 = arith.constant 0 : i32
    return %c0_i32_0, %1 : i32, i32
  }
  func.func @transform_7(%arg0: i32, %arg1: i32) -> (i32, i32) {
    %c2_i32 = arith.constant 2 : i32
    %0 = arith.subi %arg1, %c2_i32 : i32
    %c0_i32 = arith.constant 0 : i32
    %1 = arith.maxsi %0, %c0_i32 : i32
    %c0_i32_0 = arith.constant 0 : i32
    return %arg0, %1 : i32, i32
  }
}

</mosaic_0001>

<llo_original>
// kernel: cdae_forward.1
$region0: #{cdae_forward.1}
  #allocation0 [shape = 'u32[]', space=smem, size = 0x4, offset = 0x4, fixed_abs, tag = 'smem constant byte address 0x4 - core index']
  #allocation1 [shape = 'u32[144,128]{1,0:T(1,128)}', space=vmem, size = 0x12000, scoped, tag = 'internal scratch']
  #allocation2 [shape = 'f32[64,128]{1,0:T(8,128)}', space=vmem, size = 0x8000, scoped, tag = 'scratch operand']
  #allocation3 [shape = 'f32[64,64]{1,0:T(8,128)}', space=vmem, size = 0x8000, scoped, tag = 'scratch operand']
  %s0 = inlined_call_operand.vmem [shape: f32[64,128], index: 0, kind: input, shape index: {}]
  %s1 = inlined_call_operand.hbm [shape: f32[64,4096], index: 1, kind: input, shape index: {}]
  %s2 = inlined_call_operand.hbm [shape: bf16[4096,128], index: 2, kind: input, shape index: {}]
  %s3 = inlined_call_operand.vmem [shape: f32[128,64], index: 3, kind: input, shape index: {}]
  %s4 = inlined_call_operand.vmem [shape: f32[1,64], index: 4, kind: input, shape index: {}]
  %s5 = inlined_call_operand.hbm [shape: bf16[64,4096], index: 5, kind: input, shape index: {}]
  %s6 = inlined_call_operand.vmem [shape: f32[1,4096], index: 6, kind: input, shape index: {}]
  %s7 = inlined_call_operand.hbm [shape: f32[64,4096], index: 7, kind: output, shape index: {}]
  %s8 = sld [smem:[#allocation0]]
  $region89: #{cdae_forward.1} parent=0
    _
  %s10 = ssub.s32 1, %s8
  %s11 = scalar_select 0, %s10, %s8
  $region1: #{cdae_forward.1} parent=0
    #allocation4 [shape = 'u8[1048576]{0}', space=vmem, size = 0x100000, scoped, tag = 'input window, operand 1']
    #allocation5 [shape = 's32[2]{0}', space=sflag, size = 0x8, scoped, tag = 'scoped memory for cdae_forward.1']
    #allocation6 [shape = 's32[2]{0}', space=sflag, size = 0x8, scoped, tag = 'scoped memory for cdae_forward.1']
    #allocation7 [shape = 'u8[1048576]{0}', space=vmem, size = 0x100000, scoped, tag = 'input window, operand 2']
    #allocation8 [shape = 's32[2]{0}', space=sflag, size = 0x8, scoped, tag = 'scoped memory for cdae_forward.1']
    #allocation9 [shape = 'u8[524288]{0}', space=vmem, size = 0x80000, scoped, tag = 'input window, operand 5']
    #allocation10 [shape = 'u8[1048576]{0}', space=vmem, size = 0x100000, scoped, tag = 'output window, operand 0']
    %12 = vsyncpa [#allocation5], 0
    %s13 = scalar_lea.sflag [#allocation5], 1
    %14 = vsyncpa %s13, 0
    %15 = vsyncpa [#allocation8], 0
    %s16 = scalar_lea.sflag [#allocation8], 1
    %17 = vsyncpa %s16, 0
    %18 = vsyncpa [#allocation6], 0
    %s19 = scalar_lea.sflag [#allocation6], 1
    %20 = vsyncpa %s19, 0
    loop: start=0, step=1, limit=6
    $region2: #{cdae_forward.1} parent=1 // loop_pre_header
      _
    $region3: #{cdae_forward.1} parent=1 // loop_header
      %s22 = sphi 0, %s26
      %p23 = scmp.ge.s32.totalorder %s22, 6
      %s29 = sphi 0, %s41
      %s30 = sphi 0, %s37
      %s31 = sphi 0, %s29
      %s32 = sphi 0, %s30
      %s33 = sphi 0, %s31
      %s34 = sphi 0, %s32
      %s44 = sphi 0, %s46
      %s47 = sphi 0, %s44
      %s48 = sphi 0, %s47
      %s64 = sphi 0, %s48
      %s76 = sphi 0, %s78
      %s79 = sphi 0, %s76
      %s80 = sphi 0, %s79
      %s96 = sphi 0, %s80
      %s106 = sphi 0, %s108
      %s109 = sphi 0, %s106
      %s110 = sphi 0, %s109
      %s126 = sphi 0, %s110
      %s130 = sphi 0, %s130
      %s132 = sphi 0, %s130
      %s133 = sphi 0, %s132
      %s147 = sphi 0, %s133
      %s151 = sphi 0, %s151
      %s153 = sphi 0, %s151
      %s154 = sphi 0, %s153
      %s168 = sphi 0, %s154
      %s180 = sphi 0, %s182
      %s183 = sphi 0, %s180
      %s184 = sphi 0, %s183
      %s200 = sphi 0, %s184
      %s212 = sphi 0, %s214
      %s215 = sphi 0, %s212
      %s216 = sphi 0, %s215
      %s232 = sphi 0, %s216
      %s246 = sphi 0, %s248
      %s249 = sphi 0, %s246
      %s250 = sphi 0, %s249
      %s266 = sphi 0, %s250
    $region4: #{cdae_forward.1} parent=1 // loop_header_branch
      %25 = sbr.rel (%p23) target = $region8
    $region5: #{cdae_forward.1} parent=1 // loop_body
      %s27 = ssub.s32 %s22, 1
      %s28 = ssub.s32 %s22, 2
      %s35 = sadd.s32 1, %s30
      %p36 = scmp.ge.s32.totalorder %s35, 4
      %s37 = scalar_select %p36, 0, %s35
      %s38 = sadd.s32 1, %s29
      %s39 = scalar_select %p36, %s38, %s29
      %p40 = scmp.ge.s32.totalorder %s39, 1
      %s41 = scalar_select %p40, 0, %s39
      %s42 = ssub.s32 %s29, %s41
      %p43 = scmp.eq.s32.totalorder %s42, 0
      %s45 = sadd.s32 %s44, 1
      %s46 = scalar_select %p43, %s44, %s45
      %p49 = pneg %p43
      %p50 = scmp.eq.s32.totalorder %s22, 3
      %p51 = por %p49, %p50
      %p52 = scmp.ne.s32.totalorder %s44, %s47
      %p53 = scmp.eq.s32.totalorder %s22, 0
      %p54 = por %p52, %p53
      %p55 = scmp.ne.s32.totalorder %s44, %s47
      %p56 = scmp.eq.s32.totalorder %s27, 3
      %p57 = por %p55, %p56
      %p58 = scmp.ne.s32.totalorder %s47, %s48
      %p59 = scmp.eq.s32.totalorder %s27, 0
      %p60 = por %p58, %p59
      %p61 = scmp.ne.s32.totalorder %s47, %s48
      %p62 = scmp.eq.s32.totalorder %s28, 3
      %p63 = por %p61, %p62
      %p65 = scmp.ne.s32.totalorder %s48, %s64
      %p66 = scmp.eq.s32.totalorder %s28, 0
      %p67 = por %p65, %p66
      %p68 = scmp.lt.s32.totalorder %s30, 1
      %s69 = scalar_select %p68, %s30, 1
      %p70 = scmp.lt.s32.totalorder %s37, 1
      %s71 = scalar_select %p70, %s37, 1
      %s72 = ssub.s32 %s29, %s41
      %s73 = ssub.s32 %s69, %s71
      %s74 = sor.u32 %s72, %s73
      %p75 = scmp.eq.s32.totalorder %s74, 0
      %s77 = sadd.s32 %s76, 1
      %s78 = scalar_select %p75, %s76, %s77
      %p81 = pneg %p75
      %p82 = scmp.eq.s32.totalorder %s22, 3
      %p83 = por %p81, %p82
      %p84 = scmp.ne.s32.totalorder %s76, %s79
      %p85 = scmp.eq.s32.totalorder %s22, 0
      %p86 = por %p84, %p85
      %p87 = scmp.ne.s32.totalorder %s76, %s79
      %p88 = scmp.eq.s32.totalorder %s27, 3
      %p89 = por %p87, %p88
      %p90 = scmp.ne.s32.totalorder %s79, %s80
      %p91 = scmp.eq.s32.totalorder %s27, 0
      %p92 = por %p90, %p91
      %p93 = scmp.ne.s32.totalorder %s79, %s80
      %p94 = scmp.eq.s32.totalorder %s28, 3
      %p95 = por %p93, %p94
      %p97 = scmp.ne.s32.totalorder %s80, %s96
      %p98 = scmp.eq.s32.totalorder %s28, 0
      %p99 = por %p97, %p98
      %p100 = scmp.lt.s32.totalorder %s30, 1
      %s101 = scalar_select %p100, %s30, 1
      %p102 = scmp.lt.s32.totalorder %s37, 1
      %s103 = scalar_select %p102, %s37, 1
      %s104 = ssub.s32 %s101, %s103
      %p105 = scmp.eq.s32.totalorder %s104, 0
      %s107 = sadd.s32 %s106, 1
      %s108 = scalar_select %p105, %s106, %s107
      %p111 = pneg %p105
      %p112 = scmp.eq.s32.totalorder %s22, 3
      %p113 = por %p111, %p112
      %p114 = scmp.ne.s32.totalorder %s106, %s109
      %p115 = scmp.eq.s32.totalorder %s22, 0
      %p116 = por %p114, %p115
      %p117 = scmp.ne.s32.totalorder %s106, %s109
      %p118 = scmp.eq.s32.totalorder %s27, 3
      %p119 = por %p117, %p118
      %p120 = scmp.ne.s32.totalorder %s109, %s110
      %p121 = scmp.eq.s32.totalorder %s27, 0
      %p122 = por %p120, %p121
      %p123 = scmp.ne.s32.totalorder %s109, %s110
      %p124 = scmp.eq.s32.totalorder %s28, 3
      %p125 = por %p123, %p124
      %p127 = scmp.ne.s32.totalorder %s110, %s126
      %p128 = scmp.eq.s32.totalorder %s28, 0
      %p129 = por %p127, %p128
      %s131 = sadd.s32 %s130, 1
      %p134 = scmp.eq.s32.totalorder %s22, 3
      %p135 = scmp.ne.s32.totalorder %s130, %s132
      %p136 = scmp.eq.s32.totalorder %s22, 0
      %p137 = por %p135, %p136
      %p138 = scmp.ne.s32.totalorder %s130, %s132
      %p139 = scmp.eq.s32.totalorder %s27, 3
      %p140 = por %p138, %p139
      %p141 = scmp.ne.s32.totalorder %s132, %s133
      %p142 = scmp.eq.s32.totalorder %s27, 0
      %p143 = por %p141, %p142
      %p144 = scmp.ne.s32.totalorder %s132, %s133
      %p145 = scmp.eq.s32.totalorder %s28, 3
      %p146 = por %p144, %p145
      %p148 = scmp.ne.s32.totalorder %s133, %s147
      %p149 = scmp.eq.s32.totalorder %s28, 0
      %p150 = por %p148, %p149
      %s152 = sadd.s32 %s151, 1
      %p155 = scmp.eq.s32.totalorder %s22, 3
      %p156 = scmp.ne.s32.totalorder %s151, %s153
      %p157 = scmp.eq.s32.totalorder %s22, 0
      %p158 = por %p156, %p157
      %p159 = scmp.ne.s32.totalorder %s151, %s153
      %p160 = scmp.eq.s32.totalorder %s27, 3
      %p161 = por %p159, %p160
      %p162 = scmp.ne.s32.totalorder %s153, %s154
      %p163 = scmp.eq.s32.totalorder %s27, 0
      %p164 = por %p162, %p163
      %p165 = scmp.ne.s32.totalorder %s153, %s154
      %p166 = scmp.eq.s32.totalorder %s28, 3
      %p167 = por %p165, %p166
      %p169 = scmp.ne.s32.totalorder %s154, %s168
      %p170 = scmp.eq.s32.totalorder %s28, 0
      %p171 = por %p169, %p170
      %s172 = ssub.s32 %s30, 2
      %p173 = scmp.gt.s32.totalorder %s172, 0
      %s174 = scalar_select %p173, %s172, 0
      %s175 = ssub.s32 %s37, 2
      %p176 = scmp.gt.s32.totalorder %s175, 0
      %s177 = scalar_select %p176, %s175, 0
      %s178 = ssub.s32 %s174, %s177
      %p179 = scmp.eq.s32.totalorder %s178, 0
      %s181 = sadd.s32 %s180, 1
      %s182 = scalar_select %p179, %s180, %s181
      %p185 = pneg %p179
      %p186 = scmp.eq.s32.totalorder %s22, 3
      %p187 = por %p185, %p186
      %p188 = scmp.ne.s32.totalorder %s180, %s183
      %p189 = scmp.eq.s32.totalorder %s22, 0
      %p190 = por %p188, %p189
      %p191 = scmp.ne.s32.totalorder %s180, %s183
      %p192 = scmp.eq.s32.totalorder %s27, 3
      %p193 = por %p191, %p192
      %p194 = scmp.ne.s32.totalorder %s183, %s184
      %p195 = scmp.eq.s32.totalorder %s27, 0
      %p196 = por %p194, %p195
      %p197 = scmp.ne.s32.totalorder %s183, %s184
      %p198 = scmp.eq.s32.totalorder %s28, 3
      %p199 = por %p197, %p198
      %p201 = scmp.ne.s32.totalorder %s184, %s200
      %p202 = scmp.eq.s32.totalorder %s28, 0
      %p203 = por %p201, %p202
      %s204 = ssub.s32 %s30, 2
      %p205 = scmp.gt.s32.totalorder %s204, 0
      %s206 = scalar_select %p205, %s204, 0
      %s207 = ssub.s32 %s37, 2
      %p208 = scmp.gt.s32.totalorder %s207, 0
      %s209 = scalar_select %p208, %s207, 0
      %s210 = ssub.s32 %s206, %s209
      %p211 = scmp.eq.s32.totalorder %s210, 0
      %s213 = sadd.s32 %s212, 1
      %s214 = scalar_select %p211, %s212, %s213
      %p217 = pneg %p211
      %p218 = scmp.eq.s32.totalorder %s22, 3
      %p219 = por %p217, %p218
      %p220 = scmp.ne.s32.totalorder %s212, %s215
      %p221 = scmp.eq.s32.totalorder %s22, 0
      %p222 = por %p220, %p221
      %p223 = scmp.ne.s32.totalorder %s212, %s215
      %p224 = scmp.eq.s32.totalorder %s27, 3
      %p225 = por %p223, %p224
      %p226 = scmp.ne.s32.totalorder %s215, %s216
      %p227 = scmp.eq.s32.totalorder %s27, 0
      %p228 = por %p226, %p227
      %p229 = scmp.ne.s32.totalorder %s215, %s216
      %p230 = scmp.eq.s32.totalorder %s28, 3
      %p231 = por %p229, %p230
      %p233 = scmp.ne.s32.totalorder %s216, %s232
      %p234 = scmp.eq.s32.totalorder %s28, 0
      %p235 = por %p233, %p234
      %s236 = ssub.s32 %s30, 2
      %p237 = scmp.gt.s32.totalorder %s236, 0
      %s238 = scalar_select %p237, %s236, 0
      %s239 = ssub.s32 %s37, 2
      %p240 = scmp.gt.s32.totalorder %s239, 0
      %s241 = scalar_select %p240, %s239, 0
      %s242 = ssub.s32 %s29, %s41
      %s243 = ssub.s32 %s238, %s241
      %s244 = sor.u32 %s242, %s243
      %p245 = scmp.eq.s32.totalorder %s244, 0
      %s247 = sadd.s32 %s246, 1
      %s248 = scalar_select %p245, %s246, %s247
      %p251 = pneg %p245
      %p252 = scmp.eq.s32.totalorder %s22, 3
      %p253 = por %p251, %p252
      %p254 = scmp.ne.s32.totalorder %s246, %s249
      %p255 = scmp.eq.s32.totalorder %s22, 0
      %p256 = por %p254, %p255
      %p257 = scmp.ne.s32.totalorder %s246, %s249
      %p258 = scmp.eq.s32.totalorder %s27, 3
      %p259 = por %p257, %p258
      %p260 = scmp.ne.s32.totalorder %s249, %s250
      %p261 = scmp.eq.s32.totalorder %s27, 0
      %p262 = por %p260, %p261
      %p263 = scmp.ne.s32.totalorder %s249, %s250
      %p264 = scmp.eq.s32.totalorder %s28, 3
      %p265 = por %p263, %p264
      %p267 = scmp.ne.s32.totalorder %s250, %s266
      %p268 = scmp.eq.s32.totalorder %s28, 0
      %p269 = por %p267, %p268
      %p270 = scmp.le.s32.totalorder 1, %s22
      %p271 = scmp.lt.s32.totalorder %s22, 5
      %p272 = pnand %p270, %p271
      %p273 = pneg %p272
      // Predicated region
      $region9: #{cdae_forward.1} parent=5 // pred_check
        _
      $region10: #{cdae_forward.1} parent=5 // pred_check_branch
        %275 = sbr.rel (%p272) target = $region12
      $region11: #{cdae_forward.1} parent=5 // pred_region
        %s276 = ssub.s32 %s22, 1
        // Predicated region
        $region13: #{cdae_forward.1} parent=11 // pred_check
          %p277 = pneg %p60
        $region14: #{cdae_forward.1} parent=11 // pred_check_branch
          %279 = sbr.rel (%p277) target = $region16
        $region15: #{cdae_forward.1} parent=11 // pred_region
          %s280 = smul.u32 8, %s31
          %p281 = scmp.lt.s32.totalorder %s280, 7
          %s282 = scalar_select %p281, %s280, 7
          %s283 = smul.addr %s282, 8
          %s284 = scalar_lea.vmem %s0, %s283
          %s285 = smul.u32 8, %s31
        $region16: #{cdae_forward.1} parent=11 // pred_fallthru
          _
        // Predicated region
        $region17: #{cdae_forward.1} parent=11 // pred_check
          %p286 = pneg %p143
        $region18: #{cdae_forward.1} parent=11 // pred_check_branch
          %288 = sbr.rel (%p286) target = $region20
        $region19: #{cdae_forward.1} parent=11 // pred_region
          _
        $region20: #{cdae_forward.1} parent=11 // pred_fallthru
          _
        // Predicated region
        $region21: #{cdae_forward.1} parent=11 // pred_check
          %p289 = pneg %p164
        $region22: #{cdae_forward.1} parent=11 // pred_check_branch
          %291 = sbr.rel (%p289) target = $region24
        $region23: #{cdae_forward.1} parent=11 // pred_region
          _
        $region24: #{cdae_forward.1} parent=11 // pred_fallthru
          _
      $region12: #{cdae_forward.1} parent=5 // pred_fallthru
        _
      %p292 = scmp.lt.s32.totalorder %s22, 4
      // Predicated region
      $region25: #{cdae_forward.1} parent=5 // pred_check
        %p293 = pneg %p292
      $region26: #{cdae_forward.1} parent=5 // pred_check_branch
        %295 = sbr.rel (%p293) target = $region28
      $region27: #{cdae_forward.1} parent=5 // pred_region
        // Predicated region
        $region29: #{cdae_forward.1} parent=27 // pred_check
          %p296 = pneg %p86
        $region30: #{cdae_forward.1} parent=27 // pred_check_branch
          %298 = sbr.rel (%p296) target = $region32
        $region31: #{cdae_forward.1} parent=27 // pred_region
          %s299 = sand.u32 %s76, 1
          %s300 = scalar_lea.sflag [#allocation5], %s299
          %s301 = sand.u32 %s76, 1
          %s302 = smul.addr %s301, 1024
          %s303 = scalar_lea.vmem [#allocation4], %s302
          %p304 = scmp.lt.s32.totalorder %s30, 1
          %s305 = scalar_select %p304, %s30, 1
          %s306 = smul.u32 8, %s29
          %s307 = smul.u32 16, %s305
          %s309 = ssub.s32 16384, 16384
          %310 = vsyncadd %s300, %s309
          %s311 = smul.addr %s306, 32
          %s312 = sadd.s32 %s307, %s311
          %s313 = smul.addr %s312, 128
          %s314 = scalar_lea.hbm %s1, %s313
          %s315 = sshll.u32 %s303, 4
          %s316 = int_to_ptr.vmem [resolvable:$true] %s315
          %321 = dma.hbm_to_vmem [thread:$0]  %s314, 16384, %s316, %s300, 4096, 2048, 128
        $region32: #{cdae_forward.1} parent=27 // pred_fallthru
          _
        // Predicated region
        $region33: #{cdae_forward.1} parent=27 // pred_check
          %p322 = pneg %p116
        $region34: #{cdae_forward.1} parent=27 // pred_check_branch
          %324 = sbr.rel (%p322) target = $region36
        $region35: #{cdae_forward.1} parent=27 // pred_region
          %s325 = sand.u32 %s22, 1
          %s326 = scalar_lea.sflag [#allocation8], %s325
          %s327 = sand.u32 %s106, 1
          %s328 = smul.addr %s327, 1024
          %s329 = scalar_lea.vmem [#allocation7], %s328
          %p330 = scmp.lt.s32.totalorder %s30, 1
          %s331 = scalar_select %p330, %s30, 1
          %s332 = smul.u32 256, %s331
          %s334 = ssub.s32 16384, 16384
          %335 = vsyncadd %s326, %s334
          %s336 = smul.addr %s332, 64
          %s337 = scalar_lea.hbm %s2, %s336
          %s338 = sshll.u32 %s329, 4
          %s339 = int_to_ptr.vmem [resolvable:$true] %s338
          %344 = dma.hbm_to_vmem [thread:$0]  %s337, 16384, %s339, %s326, 64, 64, 4
        $region36: #{cdae_forward.1} parent=27 // pred_fallthru
          _
        // Predicated region
        $region37: #{cdae_forward.1} parent=27 // pred_check
          %p345 = pneg %p190
        $region38: #{cdae_forward.1} parent=27 // pred_check_branch
          %347 = sbr.rel (%p345) target = $region40
        $region39: #{cdae_forward.1} parent=27 // pred_region
          %s348 = sand.u32 %s22, 1
          %s349 = scalar_lea.sflag [#allocation8], %s348
          %s350 = sand.u32 %s180, 1
          %s351 = smul.addr %s350, 512
          %s352 = scalar_lea.vmem [#allocation9], %s351
          %s353 = ssub.s32 %s30, 2
          %p354 = scmp.gt.s32.totalorder %s353, 0
          %s355 = scalar_select %p354, %s353, 0
          %s356 = smul.u32 16, %s355
          %s358 = ssub.s32 8192, 8192
          %359 = vsyncadd %s349, %s358
          %s360 = smul.addr %s356, 64
          %s361 = scalar_lea.hbm %s5, %s360
          %s362 = sshll.u32 %s352, 4
          %s363 = int_to_ptr.vmem [resolvable:$true] %s362
          %368 = dma.hbm_to_vmem [thread:$0]  %s361, 8192, %s363, %s349, 2048, 1024, 64
        $region40: #{cdae_forward.1} parent=27 // pred_fallthru
          _
        // Predicated region
        $region41: #{cdae_forward.1} parent=27 // pred_check
          %p369 = pneg %p222
        $region42: #{cdae_forward.1} parent=27 // pred_check_branch
          %371 = sbr.rel (%p369) target = $region44
        $region43: #{cdae_forward.1} parent=27 // pred_region
          %s372 = ssub.s32 %s30, 2
          %p373 = scmp.gt.s32.totalorder %s372, 0
          %s374 = scalar_select %p373, %s372, 0
          %s375 = smul.u32 16, %s374
          %p376 = scmp.lt.s32.totalorder %s375, 31
          %s377 = scalar_select %p376, %s375, 31
          %s378 = scalar_lea.vmem %s6, %s377
          %s379 = ssub.s32 %s30, 2
          %p380 = scmp.gt.s32.totalorder %s379, 0
          %s381 = scalar_select %p380, %s379, 0
          %s382 = smul.u32 16, %s381
        $region44: #{cdae_forward.1} parent=27 // pred_fallthru
          _
      $region28: #{cdae_forward.1} parent=5 // pred_fallthru
        _
      %p383 = scmp.le.s32.totalorder 1, %s22
      %p384 = scmp.lt.s32.totalorder %s22, 5
      %p385 = pnand %p383, %p384
      %p386 = pneg %p385
      // Predicated region
      $region45: #{cdae_forward.1} parent=5 // pred_check
        _
      $region46: #{cdae_forward.1} parent=5 // pred_check_branch
        %388 = sbr.rel (%p385) target = $region48
      $region47: #{cdae_forward.1} parent=5 // pred_region
        %s389 = ssub.s32 %s22, 1
        %s390 = sand.u32 %s79, 1
        %s391 = scalar_lea.sflag [#allocation5], %s390
        %s392 = sand.u32 %s79, 1
        %s393 = smul.addr %s392, 1024
        %s394 = scalar_lea.vmem [#allocation4], %s393
        // Predicated region
        $region49: #{cdae_forward.1} parent=47 // pred_check
          %p395 = pneg %p92
        $region50: #{cdae_forward.1} parent=47 // pred_check_branch
          %397 = sbr.rel (%p395) target = $region52
        $region51: #{cdae_forward.1} parent=47 // pred_region
          %398 = dma.done %s391, 16384
        $region52: #{cdae_forward.1} parent=47 // pred_fallthru
          _
        %s399 = sand.u32 %s27, 1
        %s400 = scalar_lea.sflag [#allocation8], %s399
        %s401 = sand.u32 %s109, 1
        %s402 = smul.addr %s401, 1024
        %s403 = scalar_lea.vmem [#allocation7], %s402
        // Predicated region
        $region53: #{cdae_forward.1} parent=47 // pred_check
          %p404 = pneg %p122
        $region54: #{cdae_forward.1} parent=47 // pred_check_branch
          %406 = sbr.rel (%p404) target = $region56
        $region55: #{cdae_forward.1} parent=47 // pred_region
          %407 = dma.done %s400, 16384
        $region56: #{cdae_forward.1} parent=47 // pred_fallthru
          _
        %s408 = sand.u32 %s27, 1
        %s409 = scalar_lea.sflag [#allocation8], %s408
        %s410 = sand.u32 %s183, 1
        %s411 = smul.addr %s410, 512
        %s412 = scalar_lea.vmem [#allocation9], %s411
        // Predicated region
        $region57: #{cdae_forward.1} parent=47 // pred_check
          %p413 = pneg %p196
        $region58: #{cdae_forward.1} parent=47 // pred_check_branch
          %415 = sbr.rel (%p413) target = $region60
        $region59: #{cdae_forward.1} parent=47 // pred_region
          %416 = dma.done %s409, 8192
        $region60: #{cdae_forward.1} parent=47 // pred_fallthru
          _
        %s417 = smul.u32 8, %s31
        %p418 = scmp.lt.s32.totalorder %s417, 7
        %s419 = scalar_select %p418, %s417, 7
        %s420 = smul.addr %s419, 8
        %s421 = scalar_lea.vmem %s0, %s420
        %p422 = pneg %p60
        %p423 = pneg %p57
        %s424 = sand.u32 %s79, 1
        %s425 = scalar_lea.sflag [#allocation5], %s424
        %s426 = sand.u32 %s79, 1
        %s427 = smul.addr %s426, 1024
        %s428 = scalar_lea.vmem [#allocation4], %s427
        %p429 = pneg %p92
        %p430 = pneg %p89
        %s431 = sand.u32 %s27, 1
        %s432 = scalar_lea.sflag [#allocation8], %s431
        %s433 = sand.u32 %s109, 1
        %s434 = smul.addr %s433, 1024
        %s435 = scalar_lea.vmem [#allocation7], %s434
        %p436 = pneg %p122
        %p437 = pneg %p119
        %p438 = pneg %p143
        %p439 = pneg %p140
        %p440 = pneg %p164
        %p441 = pneg %p161
        %s442 = sand.u32 %s27, 1
        %s443 = scalar_lea.sflag [#allocation8], %s442
        %s444 = sand.u32 %s183, 1
        %s445 = smul.addr %s444, 512
        %s446 = scalar_lea.vmem [#allocation9], %s445
        %p447 = pneg %p196
        %p448 = pneg %p193
        %s449 = ssub.s32 %s32, 2
        %p450 = scmp.gt.s32.totalorder %s449, 0
        %s451 = scalar_select %p450, %s449, 0
        %s452 = smul.u32 16, %s451
        %p453 = scmp.lt.s32.totalorder %s452, 31
        %s454 = scalar_select %p453, %s452, 31
        %s455 = scalar_lea.vmem %s6, %s454
        %p456 = pneg %p228
        %p457 = pneg %p225
        %p458 = pneg %p262
        %p459 = pneg %p259
        %s460 = sand.u32 %s249, 1
        %s461 = scalar_lea.sflag [#allocation6], %s460
        %s462 = sand.u32 %s249, 1
        %s463 = smul.addr %s462, 1024
        %s464 = scalar_lea.vmem [#allocation10], %s463
        %s465 = smul.u32 8, %s31
        %p466 = scmp.lt.s32.totalorder %s465, 7
        %s467 = scalar_select %p466, %s465, 7
        %s468 = smul.addr %s467, 8
        %s469 = scalar_lea.vmem %s0, %s468
        %s470 = smul.u32 8, %s31
        %p471 = scmp.lt.s32.totalorder %s32, 1
        %s472 = scalar_select %p471, %s32, 1
        %s473 = smul.u32 8, %s31
        %s474 = smul.u32 16, %s472
        %p475 = scmp.lt.s32.totalorder %s32, 1
        %s476 = scalar_select %p475, %s32, 1
        %s477 = smul.u32 256, %s476
        %s478 = ssub.s32 %s32, 2
        %p479 = scmp.gt.s32.totalorder %s478, 0
        %s480 = scalar_select %p479, %s478, 0
        %s481 = smul.u32 16, %s480
        %s482 = ssub.s32 %s32, 2
        %p483 = scmp.gt.s32.totalorder %s482, 0
        %s484 = scalar_select %p483, %s482, 0
        %s485 = smul.u32 16, %s484
        %p486 = scmp.lt.s32.totalorder %s485, 31
        %s487 = scalar_select %p486, %s485, 31
        %s488 = scalar_lea.vmem %s6, %s487
        %s489 = ssub.s32 %s32, 2
        %p490 = scmp.gt.s32.totalorder %s489, 0
        %s491 = scalar_select %p490, %s489, 0
        %s492 = smul.u32 16, %s491
        %s493 = ssub.s32 %s32, 2
        %p494 = scmp.gt.s32.totalorder %s493, 0
        %s495 = scalar_select %p494, %s493, 0
        %s496 = smul.u32 8, %s31
        %s497 = smul.u32 16, %s495
        %p499 = scmp.eq.s32.totalorder %s32, 0
        // Predicated region
        $region61: #{cdae_forward.1} parent=47 // pred_check
          %p500 = pneg %p499
        $region62: #{cdae_forward.1} parent=47 // pred_check_branch
          %502 = sbr.rel (%p500) target = $region64
        $region63: #{cdae_forward.1} parent=47 // pred_region
          %v503 = vld [vmem:[%s469] sm:$0xff]
          %v504 = vld [vmem:[%s469 + $0x8] sm:$0xff]
          %v505 = vld [vmem:[%s469 + $0x10] sm:$0xff]
          %v506 = vld [vmem:[%s469 + $0x18] sm:$0xff]
          %v507 = vld [vmem:[%s469 + $0x20] sm:$0xff]
          %v508 = vld [vmem:[%s469 + $0x28] sm:$0xff]
          %v509 = vld [vmem:[%s469 + $0x30] sm:$0xff]
          %v510 = vld [vmem:[%s469 + $0x38] sm:$0xff]
          %511 = vst [vmem:[#allocation2] sm:$0xff] %v503
          %512 = vst [vmem:[#allocation2 + $0x8] sm:$0xff] %v504
          %513 = vst [vmem:[#allocation2 + $0x10] sm:$0xff] %v505
          %514 = vst [vmem:[#allocation2 + $0x18] sm:$0xff] %v506
          %515 = vst [vmem:[#allocation2 + $0x20] sm:$0xff] %v507
          %516 = vst [vmem:[#allocation2 + $0x28] sm:$0xff] %v508
          %517 = vst [vmem:[#allocation2 + $0x30] sm:$0xff] %v509
          %518 = vst [vmem:[#allocation2 + $0x38] sm:$0xff] %v510
        $region64: #{cdae_forward.1} parent=47 // pred_fallthru
          _
        %p519 = scmp.lt.s32.totalorder %s32, 2
        // Predicated region
        $region65: #{cdae_forward.1} parent=47 // pred_check
          %p520 = pneg %p519
        $region66: #{cdae_forward.1} parent=47 // pred_check_branch
          %522 = sbr.rel (%p520) target = $region68
        $region67: #{cdae_forward.1} parent=47 // pred_region
          %v523 = vld [vmem:[#allocation2] sm:$0xff]
          %v524 = vld [vmem:[#allocation2 + $0x8] sm:$0xff]
          %v525 = vld [vmem:[#allocation2 + $0x10] sm:$0xff]
          %v526 = vld [vmem:[#allocation2 + $0x18] sm:$0xff]
          %v527 = vld [vmem:[#allocation2 + $0x20] sm:$0xff]
          %v528 = vld [vmem:[#allocation2 + $0x28] sm:$0xff]
          %v529 = vld [vmem:[#allocation2 + $0x30] sm:$0xff]
          %v530 = vld [vmem:[#allocation2 + $0x38] sm:$0xff]
          %v531 = vld [vmem:[%s394] sm:$0xff]
          %v532 = vld [vmem:[%s394 + $0x8] sm:$0xff]
          %v533 = vld [vmem:[%s394 + $0x10] sm:$0xff]
          %v534 = vld [vmem:[%s394 + $0x18] sm:$0xff]
          %v535 = vld [vmem:[%s394 + $0x20] sm:$0xff]
          %v536 = vld [vmem:[%s394 + $0x28] sm:$0xff]
          %v537 = vld [vmem:[%s394 + $0x30] sm:$0xff]
          %v538 = vld [vmem:[%s394 + $0x38] sm:$0xff]
          %v539 = vld [vmem:[%s394 + $0x40] sm:$0xff]
          %v540 = vld [vmem:[%s394 + $0x48] sm:$0xff]
          %v541 = vld [vmem:[%s394 + $0x50] sm:$0xff]
          %v542 = vld [vmem:[%s394 + $0x58] sm:$0xff]
          %v543 = vld [vmem:[%s394 + $0x60] sm:$0xff]
          %v544 = vld [vmem:[%s394 + $0x68] sm:$0xff]
          %v545 = vld [vmem:[%s394 + $0x70] sm:$0xff]
          %v546 = vld [vmem:[%s394 + $0x78] sm:$0xff]
          %v547 = vld [vmem:[%s394 + $0x80] sm:$0xff]
          %v548 = vld [vmem:[%s394 + $0x88] sm:$0xff]
          %v549 = vld [vmem:[%s394 + $0x90] sm:$0xff]
          %v550 = vld [vmem:[%s394 + $0x98] sm:$0xff]
          %v551 = vld [vmem:[%s394 + $0xa0] sm:$0xff]
          %v552 = vld [vmem:[%s394 + $0xa8] sm:$0xff]
          %v553 = vld [vmem:[%s394 + $0xb0] sm:$0xff]
          %v554 = vld [vmem:[%s394 + $0xb8] sm:$0xff]
          %v555 = vld [vmem:[%s394 + $0xc0] sm:$0xff]
          %v556 = vld [vmem:[%s394 + $0xc8] sm:$0xff]
          %v557 = vld [vmem:[%s394 + $0xd0] sm:$0xff]
          %v558 = vld [vmem:[%s394 + $0xd8] sm:$0xff]
          %v559 = vld [vmem:[%s394 + $0xe0] sm:$0xff]
          %v560 = vld [vmem:[%s394 + $0xe8] sm:$0xff]
          %v561 = vld [vmem:[%s394 + $0xf0] sm:$0xff]
          %v562 = vld [vmem:[%s394 + $0xf8] sm:$0xff]
          %v563 = vld [vmem:[%s394 + $0x100] sm:$0xff]
          %v564 = vld [vmem:[%s394 + $0x108] sm:$0xff]
          %v565 = vld [vmem:[%s394 + $0x110] sm:$0xff]
          %v566 = vld [vmem:[%s394 + $0x118] sm:$0xff]
          %v567 = vld [vmem:[%s394 + $0x120] sm:$0xff]
          %v568 = vld [vmem:[%s394 + $0x128] sm:$0xff]
          %v569 = vld [vmem:[%s394 + $0x130] sm:$0xff]
          %v570 = vld [vmem:[%s394 + $0x138] sm:$0xff]
          %v571 = vld [vmem:[%s394 + $0x140] sm:$0xff]
          %v572 = vld [vmem:[%s394 + $0x148] sm:$0xff]
          %v573 = vld [vmem:[%s394 + $0x150] sm:$0xff]
          %v574 = vld [vmem:[%s394 + $0x158] sm:$0xff]
          %v575 = vld [vmem:[%s394 + $0x160] sm:$0xff]
          %v576 = vld [vmem:[%s394 + $0x168] sm:$0xff]
          %v577 = vld [vmem:[%s394 + $0x170] sm:$0xff]
          %v578 = vld [vmem:[%s394 + $0x178] sm:$0xff]
          %v579 = vld [vmem:[%s394 + $0x180] sm:$0xff]
          %v580 = vld [vmem:[%s394 + $0x188] sm:$0xff]
          %v581 = vld [vmem:[%s394 + $0x190] sm:$0xff]
          %v582 = vld [vmem:[%s394 + $0x198] sm:$0xff]
          %v583 = vld [vmem:[%s394 + $0x1a0] sm:$0xff]
          %v584 = vld [vmem:[%s394 + $0x1a8] sm:$0xff]
          %v585 = vld [vmem:[%s394 + $0x1b0] sm:$0xff]
          %v586 = vld [vmem:[%s394 + $0x1b8] sm:$0xff]
          %v587 = vld [vmem:[%s394 + $0x1c0] sm:$0xff]
          %v588 = vld [vmem:[%s394 + $0x1c8] sm:$0xff]
          %v589 = vld [vmem:[%s394 + $0x1d0] sm:$0xff]
          %v590 = vld [vmem:[%s394 + $0x1d8] sm:$0xff]
          %v591 = vld [vmem:[%s394 + $0x1e0] sm:$0xff]
          %v592 = vld [vmem:[%s394 + $0x1e8] sm:$0xff]
          %v593 = vld [vmem:[%s394 + $0x1f0] sm:$0xff]
          %v594 = vld [vmem:[%s394 + $0x1f8] sm:$0xff]
          %v595 = vld [vmem:[%s394 + $0x200] sm:$0xff]
          %v596 = vld [vmem:[%s394 + $0x208] sm:$0xff]
          %v597 = vld [vmem:[%s394 + $0x210] sm:$0xff]
          %v598 = vld [vmem:[%s394 + $0x218] sm:$0xff]
          %v599 = vld [vmem:[%s394 + $0x220] sm:$0xff]
          %v600 = vld [vmem:[%s394 + $0x228] sm:$0xff]
          %v601 = vld [vmem:[%s394 + $0x230] sm:$0xff]
          %v602 = vld [vmem:[%s394 + $0x238] sm:$0xff]
          %v603 = vld [vmem:[%s394 + $0x240] sm:$0xff]
          %v604 = vld [vmem:[%s394 + $0x248] sm:$0xff]
          %v605 = vld [vmem:[%s394 + $0x250] sm:$0xff]
          %v606 = vld [vmem:[%s394 + $0x258] sm:$0xff]
          %v607 = vld [vmem:[%s394 + $0x260] sm:$0xff]
          %v608 = vld [vmem:[%s394 + $0x268] sm:$0xff]
          %v609 = vld [vmem:[%s394 + $0x270] sm:$0xff]
          %v610 = vld [vmem:[%s394 + $0x278] sm:$0xff]
          %v611 = vld [vmem:[%s394 + $0x280] sm:$0xff]
          %v612 = vld [vmem:[%s394 + $0x288] sm:$0xff]
          %v613 = vld [vmem:[%s394 + $0x290] sm:$0xff]
          %v614 = vld [vmem:[%s394 + $0x298] sm:$0xff]
          %v615 = vld [vmem:[%s394 + $0x2a0] sm:$0xff]
          %v616 = vld [vmem:[%s394 + $0x2a8] sm:$0xff]
          %v617 = vld [vmem:[%s394 + $0x2b0] sm:$0xff]
          %v618 = vld [vmem:[%s394 + $0x2b8] sm:$0xff]
          %v619 = vld [vmem:[%s394 + $0x2c0] sm:$0xff]
          %v620 = vld [vmem:[%s394 + $0x2c8] sm:$0xff]
          %v621 = vld [vmem:[%s394 + $0x2d0] sm:$0xff]
          %v622 = vld [vmem:[%s394 + $0x2d8] sm:$0xff]
          %v623 = vld [vmem:[%s394 + $0x2e0] sm:$0xff]
          %v624 = vld [vmem:[%s394 + $0x2e8] sm:$0xff]
          %v625 = vld [vmem:[%s394 + $0x2f0] sm:$0xff]
          %v626 = vld [vmem:[%s394 + $0x2f8] sm:$0xff]
          %v627 = vld [vmem:[%s394 + $0x300] sm:$0xff]
          %v628 = vld [vmem:[%s394 + $0x308] sm:$0xff]
          %v629 = vld [vmem:[%s394 + $0x310] sm:$0xff]
          %v630 = vld [vmem:[%s394 + $0x318] sm:$0xff]
          %v631 = vld [vmem:[%s394 + $0x320] sm:$0xff]
          %v632 = vld [vmem:[%s394 + $0x328] sm:$0xff]
          %v633 = vld [vmem:[%s394 + $0x330] sm:$0xff]
          %v634 = vld [vmem:[%s394 + $0x338] sm:$0xff]
          %v635 = vld [vmem:[%s394 + $0x340] sm:$0xff]
          %v636 = vld [vmem:[%s394 + $0x348] sm:$0xff]
          %v637 = vld [vmem:[%s394 + $0x350] sm:$0xff]
          %v638 = vld [vmem:[%s394 + $0x358] sm:$0xff]
          %v639 = vld [vmem:[%s394 + $0x360] sm:$0xff]
          %v640 = vld [vmem:[%s394 + $0x368] sm:$0xff]
          %v641 = vld [vmem:[%s394 + $0x370] sm:$0xff]
          %v642 = vld [vmem:[%s394 + $0x378] sm:$0xff]
          %v643 = vld [vmem:[%s394 + $0x380] sm:$0xff]
          %v644 = vld [vmem:[%s394 + $0x388] sm:$0xff]
          %v645 = vld [vmem:[%s394 + $0x390] sm:$0xff]
          %v646 = vld [vmem:[%s394 + $0x398] sm:$0xff]
          %v647 = vld [vmem:[%s394 + $0x3a0] sm:$0xff]
          %v648 = vld [vmem:[%s394 + $0x3a8] sm:$0xff]
          %v649 = vld [vmem:[%s394 + $0x3b0] sm:$0xff]
          %v650 = vld [vmem:[%s394 + $0x3b8] sm:$0xff]
          %v651 = vld [vmem:[%s394 + $0x3c0] sm:$0xff]
          %v652 = vld [vmem:[%s394 + $0x3c8] sm:$0xff]
          %v653 = vld [vmem:[%s394 + $0x3d0] sm:$0xff]
          %v654 = vld [vmem:[%s394 + $0x3d8] sm:$0xff]
          %v655 = vld [vmem:[%s394 + $0x3e0] sm:$0xff]
          %v656 = vld [vmem:[%s394 + $0x3e8] sm:$0xff]
          %v657 = vld [vmem:[%s394 + $0x3f0] sm:$0xff]
          %v658 = vld [vmem:[%s394 + $0x3f8] sm:$0xff]
          %v659 = vpack.c.bf16 %v547, %v531
          %v660 = vpack.c.bf16 %v548, %v532
          %v661 = vpack.c.bf16 %v549, %v533
          %v662 = vpack.c.bf16 %v550, %v534
          %v663 = vpack.c.bf16 %v551, %v535
          %v664 = vpack.c.bf16 %v552, %v536
          %v665 = vpack.c.bf16 %v553, %v537
          %v666 = vpack.c.bf16 %v554, %v538
          %v667 = vpack.c.bf16 %v555, %v539
          %v668 = vpack.c.bf16 %v556, %v540
          %v669 = vpack.c.bf16 %v557, %v541
          %v670 = vpack.c.bf16 %v558, %v542
          %v671 = vpack.c.bf16 %v559, %v543
          %v672 = vpack.c.bf16 %v560, %v544
          %v673 = vpack.c.bf16 %v561, %v545
          %v674 = vpack.c.bf16 %v562, %v546
          %v675 = vpack.c.bf16 %v579, %v563
          %v676 = vpack.c.bf16 %v580, %v564
          %v677 = vpack.c.bf16 %v581, %v565
          %v678 = vpack.c.bf16 %v582, %v566
          %v679 = vpack.c.bf16 %v583, %v567
          %v680 = vpack.c.bf16 %v584, %v568
          %v681 = vpack.c.bf16 %v585, %v569
          %v682 = vpack.c.bf16 %v586, %v570
          %v683 = vpack.c.bf16 %v587, %v571
          %v684 = vpack.c.bf16 %v588, %v572
          %v685 = vpack.c.bf16 %v589, %v573
          %v686 = vpack.c.bf16 %v590, %v574
          %v687 = vpack.c.bf16 %v591, %v575
          %v688 = vpack.c.bf16 %v592, %v576
          %v689 = vpack.c.bf16 %v593, %v577
          %v690 = vpack.c.bf16 %v594, %v578
          %v691 = vpack.c.bf16 %v611, %v595
          %v692 = vpack.c.bf16 %v612, %v596
          %v693 = vpack.c.bf16 %v613, %v597
          %v694 = vpack.c.bf16 %v614, %v598
          %v695 = vpack.c.bf16 %v615, %v599
          %v696 = vpack.c.bf16 %v616, %v600
          %v697 = vpack.c.bf16 %v617, %v601
          %v698 = vpack.c.bf16 %v618, %v602
          %v699 = vpack.c.bf16 %v619, %v603
          %v700 = vpack.c.bf16 %v620, %v604
          %v701 = vpack.c.bf16 %v621, %v605
          %v702 = vpack.c.bf16 %v622, %v606
          %v703 = vpack.c.bf16 %v623, %v607
          %v704 = vpack.c.bf16 %v624, %v608
          %v705 = vpack.c.bf16 %v625, %v609
          %v706 = vpack.c.bf16 %v626, %v610
          %v707 = vpack.c.bf16 %v643, %v627
          %v708 = vpack.c.bf16 %v644, %v628
          %v709 = vpack.c.bf16 %v645, %v629
          %v710 = vpack.c.bf16 %v646, %v630
          %v711 = vpack.c.bf16 %v647, %v631
          %v712 = vpack.c.bf16 %v648, %v632
          %v713 = vpack.c.bf16 %v649, %v633
          %v714 = vpack.c.bf16 %v650, %v634
          %v715 = vpack.c.bf16 %v651, %v635
          %v716 = vpack.c.bf16 %v652, %v636
          %v717 = vpack.c.bf16 %v653, %v637
          %v718 = vpack.c.bf16 %v654, %v638
          %v719 = vpack.c.bf16 %v655, %v639
          %v720 = vpack.c.bf16 %v656, %v640
          %v721 = vpack.c.bf16 %v657, %v641
          %v722 = vpack.c.bf16 %v658, %v642
          %v723 = vld [vmem:[%s403] sm:$0xf]
          %v724 = vld [vmem:[%s403 + $0x4] sm:$0xf]
          %v725 = vld [vmem:[%s403 + $0x8] sm:$0xf]
          %v726 = vld [vmem:[%s403 + $0xc] sm:$0xf]
          %v727 = vld [vmem:[%s403 + $0x10] sm:$0xf]
          %v728 = vld [vmem:[%s403 + $0x14] sm:$0xf]
          %v729 = vld [vmem:[%s403 + $0x18] sm:$0xf]
          %v730 = vld [vmem:[%s403 + $0x1c] sm:$0xf]
          %v731 = vld [vmem:[%s403 + $0x20] sm:$0xf]
          %v732 = vld [vmem:[%s403 + $0x24] sm:$0xf]
          %v733 = vld [vmem:[%s403 + $0x28] sm:$0xf]
          %v734 = vld [vmem:[%s403 + $0x2c] sm:$0xf]
          %v735 = vld [vmem:[%s403 + $0x30] sm:$0xf]
          %v736 = vld [vmem:[%s403 + $0x34] sm:$0xf]
          %v737 = vld [vmem:[%s403 + $0x38] sm:$0xf]
          %v738 = vld [vmem:[%s403 + $0x3c] sm:$0xf]
          %v739 = vld [vmem:[%s403 + $0x40] sm:$0xf]
          %v740 = vld [vmem:[%s403 + $0x44] sm:$0xf]
          %v741 = vld [vmem:[%s403 + $0x48] sm:$0xf]
          %v742 = vld [vmem:[%s403 + $0x4c] sm:$0xf]
          %v743 = vld [vmem:[%s403 + $0x50] sm:$0xf]
          %v744 = vld [vmem:[%s403 + $0x54] sm:$0xf]
          %v745 = vld [vmem:[%s403 + $0x58] sm:$0xf]
          %v746 = vld [vmem:[%s403 + $0x5c] sm:$0xf]
          %v747 = vld [vmem:[%s403 + $0x60] sm:$0xf]
          %v748 = vld [vmem:[%s403 + $0x64] sm:$0xf]
          %v749 = vld [vmem:[%s403 + $0x68] sm:$0xf]
          %v750 = vld [vmem:[%s403 + $0x6c] sm:$0xf]
          %v751 = vld [vmem:[%s403 + $0x70] sm:$0xf]
          %v752 = vld [vmem:[%s403 + $0x74] sm:$0xf]
          %v753 = vld [vmem:[%s403 + $0x78] sm:$0xf]
          %v754 = vld [vmem:[%s403 + $0x7c] sm:$0xf]
          %v755 = vld [vmem:[%s403 + $0x80] sm:$0xf]
          %v756 = vld [vmem:[%s403 + $0x84] sm:$0xf]
          %v757 = vld [vmem:[%s403 + $0x88] sm:$0xf]
          %v758 = vld [vmem:[%s403 + $0x8c] sm:$0xf]
          %v759 = vld [vmem:[%s403 + $0x90] sm:$0xf]
          %v760 = vld [vmem:[%s403 + $0x94] sm:$0xf]
          %v761 = vld [vmem:[%s403 + $0x98] sm:$0xf]
          %v762 = vld [vmem:[%s403 + $0x9c] sm:$0xf]
          %v763 = vld [vmem:[%s403 + $0xa0] sm:$0xf]
          %v764 = vld [vmem:[%s403 + $0xa4] sm:$0xf]
          %v765 = vld [vmem:[%s403 + $0xa8] sm:$0xf]
          %v766 = vld [vmem:[%s403 + $0xac] sm:$0xf]
          %v767 = vld [vmem:[%s403 + $0xb0] sm:$0xf]
          %v768 = vld [vmem:[%s403 + $0xb4] sm:$0xf]
          %v769 = vld [vmem:[%s403 + $0xb8] sm:$0xf]
          %v770 = vld [vmem:[%s403 + $0xbc] sm:$0xf]
          %v771 = vld [vmem:[%s403 + $0xc0] sm:$0xf]
          %v772 = vld [vmem:[%s403 + $0xc4] sm:$0xf]
          %v773 = vld [vmem:[%s403 + $0xc8] sm:$0xf]
          %v774 = vld [vmem:[%s403 + $0xcc] sm:$0xf]
          %v775 = vld [vmem:[%s403 + $0xd0] sm:$0xf]
          %v776 = vld [vmem:[%s403 + $0xd4] sm:$0xf]
          %v777 = vld [vmem:[%s403 + $0xd8] sm:$0xf]
          %v778 = vld [vmem:[%s403 + $0xdc] sm:$0xf]
          %v779 = vld [vmem:[%s403 + $0xe0] sm:$0xf]
          %v780 = vld [vmem:[%s403 + $0xe4] sm:$0xf]
          %v781 = vld [vmem:[%s403 + $0xe8] sm:$0xf]
          %v782 = vld [vmem:[%s403 + $0xec] sm:$0xf]
          %v783 = vld [vmem:[%s403 + $0xf0] sm:$0xf]
          %v784 = vld [vmem:[%s403 + $0xf4] sm:$0xf]
          %v785 = vld [vmem:[%s403 + $0xf8] sm:$0xf]
          %v786 = vld [vmem:[%s403 + $0xfc] sm:$0xf]
          %v787 = vld [vmem:[%s403 + $0x100] sm:$0xf]
          %v788 = vld [vmem:[%s403 + $0x104] sm:$0xf]
          %v789 = vld [vmem:[%s403 + $0x108] sm:$0xf]
          %v790 = vld [vmem:[%s403 + $0x10c] sm:$0xf]
          %v791 = vld [vmem:[%s403 + $0x110] sm:$0xf]
          %v792 = vld [vmem:[%s403 + $0x114] sm:$0xf]
          %v793 = vld [vmem:[%s403 + $0x118] sm:$0xf]
          %v794 = vld [vmem:[%s403 + $0x11c] sm:$0xf]
          %v795 = vld [vmem:[%s403 + $0x120] sm:$0xf]
          %v796 = vld [vmem:[%s403 + $0x124] sm:$0xf]
          %v797 = vld [vmem:[%s403 + $0x128] sm:$0xf]
          %v798 = vld [vmem:[%s403 + $0x12c] sm:$0xf]
          %v799 = vld [vmem:[%s403 + $0x130] sm:$0xf]
          %v800 = vld [vmem:[%s403 + $0x134] sm:$0xf]
          %v801 = vld [vmem:[%s403 + $0x138] sm:$0xf]
          %v802 = vld [vmem:[%s403 + $0x13c] sm:$0xf]
          %v803 = vld [vmem:[%s403 + $0x140] sm:$0xf]
          %v804 = vld [vmem:[%s403 + $0x144] sm:$0xf]
          %v805 = vld [vmem:[%s403 + $0x148] sm:$0xf]
          %v806 = vld [vmem:[%s403 + $0x14c] sm:$0xf]
          %v807 = vld [vmem:[%s403 + $0x150] sm:$0xf]
          %v808 = vld [vmem:[%s403 + $0x154] sm:$0xf]
          %v809 = vld [vmem:[%s403 + $0x158] sm:$0xf]
          %v810 = vld [vmem:[%s403 + $0x15c] sm:$0xf]
          %v811 = vld [vmem:[%s403 + $0x160] sm:$0xf]
          %v812 = vld [vmem:[%s403 + $0x164] sm:$0xf]
          %v813 = vld [vmem:[%s403 + $0x168] sm:$0xf]
          %v814 = vld [vmem:[%s403 + $0x16c] sm:$0xf]
          %v815 = vld [vmem:[%s403 + $0x170] sm:$0xf]
          %v816 = vld [vmem:[%s403 + $0x174] sm:$0xf]
          %v817 = vld [vmem:[%s403 + $0x178] sm:$0xf]
          %v818 = vld [vmem:[%s403 + $0x17c] sm:$0xf]
          %v819 = vld [vmem:[%s403 + $0x180] sm:$0xf]
          %v820 = vld [vmem:[%s403 + $0x184] sm:$0xf]
          %v821 = vld [vmem:[%s403 + $0x188] sm:$0xf]
          %v822 = vld [vmem:[%s403 + $0x18c] sm:$0xf]
          %v823 = vld [vmem:[%s403 + $0x190] sm:$0xf]
          %v824 = vld [vmem:[%s403 + $0x194] sm:$0xf]
          %v825 = vld [vmem:[%s403 + $0x198] sm:$0xf]
          %v826 = vld [vmem:[%s403 + $0x19c] sm:$0xf]
          %v827 = vld [vmem:[%s403 + $0x1a0] sm:$0xf]
          %v828 = vld [vmem:[%s403 + $0x1a4] sm:$0xf]
          %v829 = vld [vmem:[%s403 + $0x1a8] sm:$0xf]
          %v830 = vld [vmem:[%s403 + $0x1ac] sm:$0xf]
          %v831 = vld [vmem:[%s403 + $0x1b0] sm:$0xf]
          %v832 = vld [vmem:[%s403 + $0x1b4] sm:$0xf]
          %v833 = vld [vmem:[%s403 + $0x1b8] sm:$0xf]
          %v834 = vld [vmem:[%s403 + $0x1bc] sm:$0xf]
          %v835 = vld [vmem:[%s403 + $0x1c0] sm:$0xf]
          %v836 = vld [vmem:[%s403 + $0x1c4] sm:$0xf]
          %v837 = vld [vmem:[%s403 + $0x1c8] sm:$0xf]
          %v838 = vld [vmem:[%s403 + $0x1cc] sm:$0xf]
          %v839 = vld [vmem:[%s403 + $0x1d0] sm:$0xf]
          %v840 = vld [vmem:[%s403 + $0x1d4] sm:$0xf]
          %v841 = vld [vmem:[%s403 + $0x1d8] sm:$0xf]
          %v842 = vld [vmem:[%s403 + $0x1dc] sm:$0xf]
          %v843 = vld [vmem:[%s403 + $0x1e0] sm:$0xf]
          %v844 = vld [vmem:[%s403 + $0x1e4] sm:$0xf]
          %v845 = vld [vmem:[%s403 + $0x1e8] sm:$0xf]
          %v846 = vld [vmem:[%s403 + $0x1ec] sm:$0xf]
          %v847 = vld [vmem:[%s403 + $0x1f0] sm:$0xf]
          %v848 = vld [vmem:[%s403 + $0x1f4] sm:$0xf]
          %v849 = vld [vmem:[%s403 + $0x1f8] sm:$0xf]
          %v850 = vld [vmem:[%s403 + $0x1fc] sm:$0xf]
          %v851 = vld [vmem:[%s403 + $0x200] sm:$0xf]
          %v852 = vld [vmem:[%s403 + $0x204] sm:$0xf]
          %v853 = vld [vmem:[%s403 + $0x208] sm:$0xf]
          %v854 = vld [vmem:[%s403 + $0x20c] sm:$0xf]
          %v855 = vld [vmem:[%s403 + $0x210] sm:$0xf]
          %v856 = vld [vmem:[%s403 + $0x214] sm:$0xf]
          %v857 = vld [vmem:[%s403 + $0x218] sm:$0xf]
          %v858 = vld [vmem:[%s403 + $0x21c] sm:$0xf]
          %v859 = vld [vmem:[%s403 + $0x220] sm:$0xf]
          %v860 = vld [vmem:[%s403 + $0x224] sm:$0xf]
          %v861 = vld [vmem:[%s403 + $0x228] sm:$0xf]
          %v862 = vld [vmem:[%s403 + $0x22c] sm:$0xf]
          %v863 = vld [vmem:[%s403 + $0x230] sm:$0xf]
          %v864 = vld [vmem:[%s403 + $0x234] sm:$0xf]
          %v865 = vld [vmem:[%s403 + $0x238] sm:$0xf]
          %v866 = vld [vmem:[%s403 + $0x23c] sm:$0xf]
          %v867 = vld [vmem:[%s403 + $0x240] sm:$0xf]
          %v868 = vld [vmem:[%s403 + $0x244] sm:$0xf]
          %v869 = vld [vmem:[%s403 + $0x248] sm:$0xf]
          %v870 = vld [vmem:[%s403 + $0x24c] sm:$0xf]
          %v871 = vld [vmem:[%s403 + $0x250] sm:$0xf]
          %v872 = vld [vmem:[%s403 + $0x254] sm:$0xf]
          %v873 = vld [vmem:[%s403 + $0x258] sm:$0xf]
          %v874 = vld [vmem:[%s403 + $0x25c] sm:$0xf]
          %v875 = vld [vmem:[%s403 + $0x260] sm:$0xf]
          %v876 = vld [vmem:[%s403 + $0x264] sm:$0xf]
          %v877 = vld [vmem:[%s403 + $0x268] sm:$0xf]
          %v878 = vld [vmem:[%s403 + $0x26c] sm:$0xf]
          %v879 = vld [vmem:[%s403 + $0x270] sm:$0xf]
          %v880 = vld [vmem:[%s403 + $0x274] sm:$0xf]
          %v881 = vld [vmem:[%s403 + $0x278] sm:$0xf]
          %v882 = vld [vmem:[%s403 + $0x27c] sm:$0xf]
          %v883 = vld [vmem:[%s403 + $0x280] sm:$0xf]
          %v884 = vld [vmem:[%s403 + $0x284] sm:$0xf]
          %v885 = vld [vmem:[%s403 + $0x288] sm:$0xf]
          %v886 = vld [vmem:[%s403 + $0x28c] sm:$0xf]
          %v887 = vld [vmem:[%s403 + $0x290] sm:$0xf]
          %v888 = vld [vmem:[%s403 + $0x294] sm:$0xf]
          %v889 = vld [vmem:[%s403 + $0x298] sm:$0xf]
          %v890 = vld [vmem:[%s403 + $0x29c] sm:$0xf]
          %v891 = vld [vmem:[%s403 + $0x2a0] sm:$0xf]
          %v892 = vld [vmem:[%s403 + $0x2a4] sm:$0xf]
          %v893 = vld [vmem:[%s403 + $0x2a8] sm:$0xf]
          %v894 = vld [vmem:[%s403 + $0x2ac] sm:$0xf]
          %v895 = vld [vmem:[%s403 + $0x2b0] sm:$0xf]
          %v896 = vld [vmem:[%s403 + $0x2b4] sm:$0xf]
          %v897 = vld [vmem:[%s403 + $0x2b8] sm:$0xf]
          %v898 = vld [vmem:[%s403 + $0x2bc] sm:$0xf]
          %v899 = vld [vmem:[%s403 + $0x2c0] sm:$0xf]
          %v900 = vld [vmem:[%s403 + $0x2c4] sm:$0xf]
          %v901 = vld [vmem:[%s403 + $0x2c8] sm:$0xf]
          %v902 = vld [vmem:[%s403 + $0x2cc] sm:$0xf]
          %v903 = vld [vmem:[%s403 + $0x2d0] sm:$0xf]
          %v904 = vld [vmem:[%s403 + $0x2d4] sm:$0xf]
          %v905 = vld [vmem:[%s403 + $0x2d8] sm:$0xf]
          %v906 = vld [vmem:[%s403 + $0x2dc] sm:$0xf]
          %v907 = vld [vmem:[%s403 + $0x2e0] sm:$0xf]
          %v908 = vld [vmem:[%s403 + $0x2e4] sm:$0xf]
          %v909 = vld [vmem:[%s403 + $0x2e8] sm:$0xf]
          %v910 = vld [vmem:[%s403 + $0x2ec] sm:$0xf]
          %v911 = vld [vmem:[%s403 + $0x2f0] sm:$0xf]
          %v912 = vld [vmem:[%s403 + $0x2f4] sm:$0xf]
          %v913 = vld [vmem:[%s403 + $0x2f8] sm:$0xf]
          %v914 = vld [vmem:[%s403 + $0x2fc] sm:$0xf]
          %v915 = vld [vmem:[%s403 + $0x300] sm:$0xf]
          %v916 = vld [vmem:[%s403 + $0x304] sm:$0xf]
          %v917 = vld [vmem:[%s403 + $0x308] sm:$0xf]
          %v918 = vld [vmem:[%s403 + $0x30c] sm:$0xf]
          %v919 = vld [vmem:[%s403 + $0x310] sm:$0xf]
          %v920 = vld [vmem:[%s403 + $0x314] sm:$0xf]
          %v921 = vld [vmem:[%s403 + $0x318] sm:$0xf]
          %v922 = vld [vmem:[%s403 + $0x31c] sm:$0xf]
          %v923 = vld [vmem:[%s403 + $0x320] sm:$0xf]
          %v924 = vld [vmem:[%s403 + $0x324] sm:$0xf]
          %v925 = vld [vmem:[%s403 + $0x328] sm:$0xf]
          %v926 = vld [vmem:[%s403 + $0x32c] sm:$0xf]
          %v927 = vld [vmem:[%s403 + $0x330] sm:$0xf]
          %v928 = vld [vmem:[%s403 + $0x334] sm:$0xf]
          %v929 = vld [vmem:[%s403 + $0x338] sm:$0xf]
          %v930 = vld [vmem:[%s403 + $0x33c] sm:$0xf]
          %v931 = vld [vmem:[%s403 + $0x340] sm:$0xf]
          %v932 = vld [vmem:[%s403 + $0x344] sm:$0xf]
          %v933 = vld [vmem:[%s403 + $0x348] sm:$0xf]
          %v934 = vld [vmem:[%s403 + $0x34c] sm:$0xf]
          %v935 = vld [vmem:[%s403 + $0x350] sm:$0xf]
          %v936 = vld [vmem:[%s403 + $0x354] sm:$0xf]
          %v937 = vld [vmem:[%s403 + $0x358] sm:$0xf]
          %v938 = vld [vmem:[%s403 + $0x35c] sm:$0xf]
          %v939 = vld [vmem:[%s403 + $0x360] sm:$0xf]
          %v940 = vld [vmem:[%s403 + $0x364] sm:$0xf]
          %v941 = vld [vmem:[%s403 + $0x368] sm:$0xf]
          %v942 = vld [vmem:[%s403 + $0x36c] sm:$0xf]
          %v943 = vld [vmem:[%s403 + $0x370] sm:$0xf]
          %v944 = vld [vmem:[%s403 + $0x374] sm:$0xf]
          %v945 = vld [vmem:[%s403 + $0x378] sm:$0xf]
          %v946 = vld [vmem:[%s403 + $0x37c] sm:$0xf]
          %v947 = vld [vmem:[%s403 + $0x380] sm:$0xf]
          %v948 = vld [vmem:[%s403 + $0x384] sm:$0xf]
          %v949 = vld [vmem:[%s403 + $0x388] sm:$0xf]
          %v950 = vld [vmem:[%s403 + $0x38c] sm:$0xf]
          %v951 = vld [vmem:[%s403 + $0x390] sm:$0xf]
          %v952 = vld [vmem:[%s403 + $0x394] sm:$0xf]
          %v953 = vld [vmem:[%s403 + $0x398] sm:$0xf]
          %v954 = vld [vmem:[%s403 + $0x39c] sm:$0xf]
          %v955 = vld [vmem:[%s403 + $0x3a0] sm:$0xf]
          %v956 = vld [vmem:[%s403 + $0x3a4] sm:$0xf]
          %v957 = vld [vmem:[%s403 + $0x3a8] sm:$0xf]
          %v958 = vld [vmem:[%s403 + $0x3ac] sm:$0xf]
          %v959 = vld [vmem:[%s403 + $0x3b0] sm:$0xf]
          %v960 = vld [vmem:[%s403 + $0x3b4] sm:$0xf]
          %v961 = vld [vmem:[%s403 + $0x3b8] sm:$0xf]
          %v962 = vld [vmem:[%s403 + $0x3bc] sm:$0xf]
          %v963 = vld [vmem:[%s403 + $0x3c0] sm:$0xf]
          %v964 = vld [vmem:[%s403 + $0x3c4] sm:$0xf]
          %v965 = vld [vmem:[%s403 + $0x3c8] sm:$0xf]
          %v966 = vld [vmem:[%s403 + $0x3cc] sm:$0xf]
          %v967 = vld [vmem:[%s403 + $0x3d0] sm:$0xf]
          %v968 = vld [vmem:[%s403 + $0x3d4] sm:$0xf]
          %v969 = vld [vmem:[%s403 + $0x3d8] sm:$0xf]
          %v970 = vld [vmem:[%s403 + $0x3dc] sm:$0xf]
          %v971 = vld [vmem:[%s403 + $0x3e0] sm:$0xf]
          %v972 = vld [vmem:[%s403 + $0x3e4] sm:$0xf]
          %v973 = vld [vmem:[%s403 + $0x3e8] sm:$0xf]
          %v974 = vld [vmem:[%s403 + $0x3ec] sm:$0xf]
          %v975 = vld [vmem:[%s403 + $0x3f0] sm:$0xf]
          %v976 = vld [vmem:[%s403 + $0x3f4] sm:$0xf]
          %v977 = vld [vmem:[%s403 + $0x3f8] sm:$0xf]
          %v978 = vld [vmem:[%s403 + $0x3fc] sm:$0xf]
          %v1235 = vunpack.c.l.b16 %v723
          %v1236 = vunpack.c.l.b16 %v724
          %v1237 = vunpack.c.l.b16 %v725
          %v1238 = vunpack.c.l.b16 %v726
          %v1239 = vunpack.c.l.b16 %v727
          %v1240 = vunpack.c.l.b16 %v728
          %v1241 = vunpack.c.l.b16 %v729
          %v1242 = vunpack.c.l.b16 %v730
          %v1243 = vunpack.c.l.b16 %v731
          %v1244 = vunpack.c.l.b16 %v732
          %v1245 = vunpack.c.l.b16 %v733
          %v1246 = vunpack.c.l.b16 %v734
          %v1247 = vunpack.c.l.b16 %v735
          %v1248 = vunpack.c.l.b16 %v736
          %v1249 = vunpack.c.l.b16 %v737
          %v1250 = vunpack.c.l.b16 %v738
          %v1251 = vunpack.c.l.b16 %v739
          %v1252 = vunpack.c.l.b16 %v740
          %v1253 = vunpack.c.l.b16 %v741
          %v1254 = vunpack.c.l.b16 %v742
          %v1255 = vunpack.c.l.b16 %v743
          %v1256 = vunpack.c.l.b16 %v744
          %v1257 = vunpack.c.l.b16 %v745
          %v1258 = vunpack.c.l.b16 %v746
          %v1259 = vunpack.c.l.b16 %v747
          %v1260 = vunpack.c.l.b16 %v748
          %v1261 = vunpack.c.l.b16 %v749
          %v1262 = vunpack.c.l.b16 %v750
          %v1263 = vunpack.c.l.b16 %v751
          %v1264 = vunpack.c.l.b16 %v752
          %v1265 = vunpack.c.l.b16 %v753
          %v1266 = vunpack.c.l.b16 %v754
          %v1267 = vunpack.c.l.b16 %v755
          %v1268 = vunpack.c.l.b16 %v756
          %v1269 = vunpack.c.l.b16 %v757
          %v1270 = vunpack.c.l.b16 %v758
          %v1271 = vunpack.c.l.b16 %v759
          %v1272 = vunpack.c.l.b16 %v760
          %v1273 = vunpack.c.l.b16 %v761
          %v1274 = vunpack.c.l.b16 %v762
          %v1275 = vunpack.c.l.b16 %v763
          %v1276 = vunpack.c.l.b16 %v764
          %v1277 = vunpack.c.l.b16 %v765
          %v1278 = vunpack.c.l.b16 %v766
          %v1279 = vunpack.c.l.b16 %v767
          %v1280 = vunpack.c.l.b16 %v768
          %v1281 = vunpack.c.l.b16 %v769
          %v1282 = vunpack.c.l.b16 %v770
          %v1283 = vunpack.c.l.b16 %v771
          %v1284 = vunpack.c.l.b16 %v772
          %v1285 = vunpack.c.l.b16 %v773
          %v1286 = vunpack.c.l.b16 %v774
          %v1287 = vunpack.c.l.b16 %v775
          %v1288 = vunpack.c.l.b16 %v776
          %v1289 = vunpack.c.l.b16 %v777
          %v1290 = vunpack.c.l.b16 %v778
          %v1291 = vunpack.c.l.b16 %v779
          %v1292 = vunpack.c.l.b16 %v780
          %v1293 = vunpack.c.l.b16 %v781
          %v1294 = vunpack.c.l.b16 %v782
          %v1295 = vunpack.c.l.b16 %v783
          %v1296 = vunpack.c.l.b16 %v784
          %v1297 = vunpack.c.l.b16 %v785
          %v1298 = vunpack.c.l.b16 %v786
          %v1299 = vunpack.c.l.b16 %v787
          %v1300 = vunpack.c.l.b16 %v788
          %v1301 = vunpack.c.l.b16 %v789
          %v1302 = vunpack.c.l.b16 %v790
          %v1303 = vunpack.c.l.b16 %v791
          %v1304 = vunpack.c.l.b16 %v792
          %v1305 = vunpack.c.l.b16 %v793
          %v1306 = vunpack.c.l.b16 %v794
          %v1307 = vunpack.c.l.b16 %v795
          %v1308 = vunpack.c.l.b16 %v796
          %v1309 = vunpack.c.l.b16 %v797
          %v1310 = vunpack.c.l.b16 %v798
          %v1311 = vunpack.c.l.b16 %v799
          %v1312 = vunpack.c.l.b16 %v800
          %v1313 = vunpack.c.l.b16 %v801
          %v1314 = vunpack.c.l.b16 %v802
          %v1315 = vunpack.c.l.b16 %v803
          %v1316 = vunpack.c.l.b16 %v804
          %v1317 = vunpack.c.l.b16 %v805
          %v1318 = vunpack.c.l.b16 %v806
          %v1319 = vunpack.c.l.b16 %v807
          %v1320 = vunpack.c.l.b16 %v808
          %v1321 = vunpack.c.l.b16 %v809
          %v1322 = vunpack.c.l.b16 %v810
          %v1323 = vunpack.c.l.b16 %v811
          %v1324 = vunpack.c.l.b16 %v812
          %v1325 = vunpack.c.l.b16 %v813
          %v1326 = vunpack.c.l.b16 %v814
          %v1327 = vunpack.c.l.b16 %v815
          %v1328 = vunpack.c.l.b16 %v816
          %v1329 = vunpack.c.l.b16 %v817
          %v1330 = vunpack.c.l.b16 %v818
          %v1331 = vunpack.c.l.b16 %v819
          %v1332 = vunpack.c.l.b16 %v820
          %v1333 = vunpack.c.l.b16 %v821
          %v1334 = vunpack.c.l.b16 %v822
          %v1335 = vunpack.c.l.b16 %v823
          %v1336 = vunpack.c.l.b16 %v824
          %v1337 = vunpack.c.l.b16 %v825
          %v1338 = vunpack.c.l.b16 %v826
          %v1339 = vunpack.c.l.b16 %v827
          %v1340 = vunpack.c.l.b16 %v828
          %v1341 = vunpack.c.l.b16 %v829
          %v1342 = vunpack.c.l.b16 %v830
          %v1343 = vunpack.c.l.b16 %v831
          %v1344 = vunpack.c.l.b16 %v832
          %v1345 = vunpack.c.l.b16 %v833
          %v1346 = vunpack.c.l.b16 %v834
          %v1347 = vunpack.c.l.b16 %v835
          %v1348 = vunpack.c.l.b16 %v836
          %v1349 = vunpack.c.l.b16 %v837
          %v1350 = vunpack.c.l.b16 %v838
          %v1351 = vunpack.c.l.b16 %v839
          %v1352 = vunpack.c.l.b16 %v840
          %v1353 = vunpack.c.l.b16 %v841
          %v1354 = vunpack.c.l.b16 %v842
          %v1355 = vunpack.c.l.b16 %v843
          %v1356 = vunpack.c.l.b16 %v844
          %v1357 = vunpack.c.l.b16 %v845
          %v1358 = vunpack.c.l.b16 %v846
          %v1359 = vunpack.c.l.b16 %v847
          %v1360 = vunpack.c.l.b16 %v848
          %v1361 = vunpack.c.l.b16 %v849
          %v1362 = vunpack.c.l.b16 %v850
          %v1363 = vunpack.c.l.b16 %v851
          %v1364 = vunpack.c.l.b16 %v852
          %v1365 = vunpack.c.l.b16 %v853
          %v1366 = vunpack.c.l.b16 %v854
          %v1367 = vunpack.c.l.b16 %v855
          %v1368 = vunpack.c.l.b16 %v856
          %v1369 = vunpack.c.l.b16 %v857
          %v1370 = vunpack.c.l.b16 %v858
          %v1371 = vunpack.c.l.b16 %v859
          %v1372 = vunpack.c.l.b16 %v860
          %v1373 = vunpack.c.l.b16 %v861
          %v1374 = vunpack.c.l.b16 %v862
          %v1375 = vunpack.c.l.b16 %v863
          %v1376 = vunpack.c.l.b16 %v864
          %v1377 = vunpack.c.l.b16 %v865
          %v1378 = vunpack.c.l.b16 %v866
          %v1379 = vunpack.c.l.b16 %v867
          %v1380 = vunpack.c.l.b16 %v868
          %v1381 = vunpack.c.l.b16 %v869
          %v1382 = vunpack.c.l.b16 %v870
          %v1383 = vunpack.c.l.b16 %v871
          %v1384 = vunpack.c.l.b16 %v872
          %v1385 = vunpack.c.l.b16 %v873
          %v1386 = vunpack.c.l.b16 %v874
          %v1387 = vunpack.c.l.b16 %v875
          %v1388 = vunpack.c.l.b16 %v876
          %v1389 = vunpack.c.l.b16 %v877
          %v1390 = vunpack.c.l.b16 %v878
          %v1391 = vunpack.c.l.b16 %v879
          %v1392 = vunpack.c.l.b16 %v880
          %v1393 = vunpack.c.l.b16 %v881
          %v1394 = vunpack.c.l.b16 %v882
          %v1395 = vunpack.c.l.b16 %v883
          %v1396 = vunpack.c.l.b16 %v884
          %v1397 = vunpack.c.l.b16 %v885
          %v1398 = vunpack.c.l.b16 %v886
          %v1399 = vunpack.c.l.b16 %v887
          %v1400 = vunpack.c.l.b16 %v888
          %v1401 = vunpack.c.l.b16 %v889
          %v1402 = vunpack.c.l.b16 %v890
          %v1403 = vunpack.c.l.b16 %v891
          %v1404 = vunpack.c.l.b16 %v892
          %v1405 = vunpack.c.l.b16 %v893
          %v1406 = vunpack.c.l.b16 %v894
          %v1407 = vunpack.c.l.b16 %v895
          %v1408 = vunpack.c.l.b16 %v896
          %v1409 = vunpack.c.l.b16 %v897
          %v1410 = vunpack.c.l.b16 %v898
          %v1411 = vunpack.c.l.b16 %v899
          %v1412 = vunpack.c.l.b16 %v900
          %v1413 = vunpack.c.l.b16 %v901
          %v1414 = vunpack.c.l.b16 %v902
          %v1415 = vunpack.c.l.b16 %v903
          %v1416 = vunpack.c.l.b16 %v904
          %v1417 = vunpack.c.l.b16 %v905
          %v1418 = vunpack.c.l.b16 %v906
          %v1419 = vunpack.c.l.b16 %v907
          %v1420 = vunpack.c.l.b16 %v908
          %v1421 = vunpack.c.l.b16 %v909
          %v1422 = vunpack.c.l.b16 %v910
          %v1423 = vunpack.c.l.b16 %v911
          %v1424 = vunpack.c.l.b16 %v912
          %v1425 = vunpack.c.l.b16 %v913
          %v1426 = vunpack.c.l.b16 %v914
          %v1427 = vunpack.c.l.b16 %v915
          %v1428 = vunpack.c.l.b16 %v916
          %v1429 = vunpack.c.l.b16 %v917
          %v1430 = vunpack.c.l.b16 %v918
          %v1431 = vunpack.c.l.b16 %v919
          %v1432 = vunpack.c.l.b16 %v920
          %v1433 = vunpack.c.l.b16 %v921
          %v1434 = vunpack.c.l.b16 %v922
          %v1435 = vunpack.c.l.b16 %v923
          %v1436 = vunpack.c.l.b16 %v924
          %v1437 = vunpack.c.l.b16 %v925
          %v1438 = vunpack.c.l.b16 %v926
          %v1439 = vunpack.c.l.b16 %v927
          %v1440 = vunpack.c.l.b16 %v928
          %v1441 = vunpack.c.l.b16 %v929
          %v1442 = vunpack.c.l.b16 %v930
          %v1443 = vunpack.c.l.b16 %v931
          %v1444 = vunpack.c.l.b16 %v932
          %v1445 = vunpack.c.l.b16 %v933
          %v1446 = vunpack.c.l.b16 %v934
          %v1447 = vunpack.c.l.b16 %v935
          %v1448 = vunpack.c.l.b16 %v936
          %v1449 = vunpack.c.l.b16 %v937
          %v1450 = vunpack.c.l.b16 %v938
          %v1451 = vunpack.c.l.b16 %v939
          %v1452 = vunpack.c.l.b16 %v940
          %v1453 = vunpack.c.l.b16 %v941
          %v1454 = vunpack.c.l.b16 %v942
          %v1455 = vunpack.c.l.b16 %v943
          %v1456 = vunpack.c.l.b16 %v944
          %v1457 = vunpack.c.l.b16 %v945
          %v1458 = vunpack.c.l.b16 %v946
          %v1459 = vunpack.c.l.b16 %v947
          %v1460 = vunpack.c.l.b16 %v948
          %v1461 = vunpack.c.l.b16 %v949
          %v1462 = vunpack.c.l.b16 %v950
          %v1463 = vunpack.c.l.b16 %v951
          %v1464 = vunpack.c.l.b16 %v952
          %v1465 = vunpack.c.l.b16 %v953
          %v1466 = vunpack.c.l.b16 %v954
          %v1467 = vunpack.c.l.b16 %v955
          %v1468 = vunpack.c.l.b16 %v956
          %v1469 = vunpack.c.l.b16 %v957
          %v1470 = vunpack.c.l.b16 %v958
          %v1471 = vunpack.c.l.b16 %v959
          %v1472 = vunpack.c.l.b16 %v960
          %v1473 = vunpack.c.l.b16 %v961
          %v1474 = vunpack.c.l.b16 %v962
          %v1475 = vunpack.c.l.b16 %v963
          %v1476 = vunpack.c.l.b16 %v964
          %v1477 = vunpack.c.l.b16 %v965
          %v1478 = vunpack.c.l.b16 %v966
          %v1479 = vunpack.c.l.b16 %v967
          %v1480 = vunpack.c.l.b16 %v968
          %v1481 = vunpack.c.l.b16 %v969
          %v1482 = vunpack.c.l.b16 %v970
          %v1483 = vunpack.c.l.b16 %v971
          %v1484 = vunpack.c.l.b16 %v972
          %v1485 = vunpack.c.l.b16 %v973
          %v1486 = vunpack.c.l.b16 %v974
          %v1487 = vunpack.c.l.b16 %v975
          %v1488 = vunpack.c.l.b16 %v976
          %v1489 = vunpack.c.l.b16 %v977
          %v1490 = vunpack.c.l.b16 %v978
          %v1491 = vpack.c.b16 %v1236, %v1235
          %v1492 = vpack.c.b16 %v1238, %v1237
          %v1493 = vpack.c.b16 %v1240, %v1239
          %v1494 = vpack.c.b16 %v1242, %v1241
          %v1495 = vpack.c.b16 %v1244, %v1243
          %v1496 = vpack.c.b16 %v1246, %v1245
          %v1497 = vpack.c.b16 %v1248, %v1247
          %v1498 = vpack.c.b16 %v1250, %v1249
          %v1499 = vpack.c.b16 %v1252, %v1251
          %v1500 = vpack.c.b16 %v1254, %v1253
          %v1501 = vpack.c.b16 %v1256, %v1255
          %v1502 = vpack.c.b16 %v1258, %v1257
          %v1503 = vpack.c.b16 %v1260, %v1259
          %v1504 = vpack.c.b16 %v1262, %v1261
          %v1505 = vpack.c.b16 %v1264, %v1263
          %v1506 = vpack.c.b16 %v1266, %v1265
          %v1507 = vpack.c.b16 %v1268, %v1267
          %v1508 = vpack.c.b16 %v1270, %v1269
          %v1509 = vpack.c.b16 %v1272, %v1271
          %v1510 = vpack.c.b16 %v1274, %v1273
          %v1511 = vpack.c.b16 %v1276, %v1275
          %v1512 = vpack.c.b16 %v1278, %v1277
          %v1513 = vpack.c.b16 %v1280, %v1279
          %v1514 = vpack.c.b16 %v1282, %v1281
          %v1515 = vpack.c.b16 %v1284, %v1283
          %v1516 = vpack.c.b16 %v1286, %v1285
          %v1517 = vpack.c.b16 %v1288, %v1287
          %v1518 = vpack.c.b16 %v1290, %v1289
          %v1519 = vpack.c.b16 %v1292, %v1291
          %v1520 = vpack.c.b16 %v1294, %v1293
          %v1521 = vpack.c.b16 %v1296, %v1295
          %v1522 = vpack.c.b16 %v1298, %v1297
          %v1523 = vpack.c.b16 %v1300, %v1299
          %v1524 = vpack.c.b16 %v1302, %v1301
          %v1525 = vpack.c.b16 %v1304, %v1303
          %v1526 = vpack.c.b16 %v1306, %v1305
          %v1527 = vpack.c.b16 %v1308, %v1307
          %v1528 = vpack.c.b16 %v1310, %v1309
          %v1529 = vpack.c.b16 %v1312, %v1311
          %v1530 = vpack.c.b16 %v1314, %v1313
          %v1531 = vpack.c.b16 %v1316, %v1315
          %v1532 = vpack.c.b16 %v1318, %v1317
          %v1533 = vpack.c.b16 %v1320, %v1319
          %v1534 = vpack.c.b16 %v1322, %v1321
          %v1535 = vpack.c.b16 %v1324, %v1323
          %v1536 = vpack.c.b16 %v1326, %v1325
          %v1537 = vpack.c.b16 %v1328, %v1327
          %v1538 = vpack.c.b16 %v1330, %v1329
          %v1539 = vpack.c.b16 %v1332, %v1331
          %v1540 = vpack.c.b16 %v1334, %v1333
          %v1541 = vpack.c.b16 %v1336, %v1335
          %v1542 = vpack.c.b16 %v1338, %v1337
          %v1543 = vpack.c.b16 %v1340, %v1339
          %v1544 = vpack.c.b16 %v1342, %v1341
          %v1545 = vpack.c.b16 %v1344, %v1343
          %v1546 = vpack.c.b16 %v1346, %v1345
          %v1547 = vpack.c.b16 %v1348, %v1347
          %v1548 = vpack.c.b16 %v1350, %v1349
          %v1549 = vpack.c.b16 %v1352, %v1351
          %v1550 = vpack.c.b16 %v1354, %v1353
          %v1551 = vpack.c.b16 %v1356, %v1355
          %v1552 = vpack.c.b16 %v1358, %v1357
          %v1553 = vpack.c.b16 %v1360, %v1359
          %v1554 = vpack.c.b16 %v1362, %v1361
          %v1555 = vpack.c.b16 %v1364, %v1363
          %v1556 = vpack.c.b16 %v1366, %v1365
          %v1557 = vpack.c.b16 %v1368, %v1367
          %v1558 = vpack.c.b16 %v1370, %v1369
          %v1559 = vpack.c.b16 %v1372, %v1371
          %v1560 = vpack.c.b16 %v1374, %v1373
          %v1561 = vpack.c.b16 %v1376, %v1375
          %v1562 = vpack.c.b16 %v1378, %v1377
          %v1563 = vpack.c.b16 %v1380, %v1379
          %v1564 = vpack.c.b16 %v1382, %v1381
          %v1565 = vpack.c.b16 %v1384, %v1383
          %v1566 = vpack.c.b16 %v1386, %v1385
          %v1567 = vpack.c.b16 %v1388, %v1387
          %v1568 = vpack.c.b16 %v1390, %v1389
          %v1569 = vpack.c.b16 %v1392, %v1391
          %v1570 = vpack.c.b16 %v1394, %v1393
          %v1571 = vpack.c.b16 %v1396, %v1395
          %v1572 = vpack.c.b16 %v1398, %v1397
          %v1573 = vpack.c.b16 %v1400, %v1399
          %v1574 = vpack.c.b16 %v1402, %v1401
          %v1575 = vpack.c.b16 %v1404, %v1403
          %v1576 = vpack.c.b16 %v1406, %v1405
          %v1577 = vpack.c.b16 %v1408, %v1407
          %v1578 = vpack.c.b16 %v1410, %v1409
          %v1579 = vpack.c.b16 %v1412, %v1411
          %v1580 = vpack.c.b16 %v1414, %v1413
          %v1581 = vpack.c.b16 %v1416, %v1415
          %v1582 = vpack.c.b16 %v1418, %v1417
          %v1583 = vpack.c.b16 %v1420, %v1419
          %v1584 = vpack.c.b16 %v1422, %v1421
          %v1585 = vpack.c.b16 %v1424, %v1423
          %v1586 = vpack.c.b16 %v1426, %v1425
          %v1587 = vpack.c.b16 %v1428, %v1427
          %v1588 = vpack.c.b16 %v1430, %v1429
          %v1589 = vpack.c.b16 %v1432, %v1431
          %v1590 = vpack.c.b16 %v1434, %v1433
          %v1591 = vpack.c.b16 %v1436, %v1435
          %v1592 = vpack.c.b16 %v1438, %v1437
          %v1593 = vpack.c.b16 %v1440, %v1439
          %v1594 = vpack.c.b16 %v1442, %v1441
          %v1595 = vpack.c.b16 %v1444, %v1443
          %v1596 = vpack.c.b16 %v1446, %v1445
          %v1597 = vpack.c.b16 %v1448, %v1447
          %v1598 = vpack.c.b16 %v1450, %v1449
          %v1599 = vpack.c.b16 %v1452, %v1451
          %v1600 = vpack.c.b16 %v1454, %v1453
          %v1601 = vpack.c.b16 %v1456, %v1455
          %v1602 = vpack.c.b16 %v1458, %v1457
          %v1603 = vpack.c.b16 %v1460, %v1459
          %v1604 = vpack.c.b16 %v1462, %v1461
          %v1605 = vpack.c.b16 %v1464, %v1463
          %v1606 = vpack.c.b16 %v1466, %v1465
          %v1607 = vpack.c.b16 %v1468, %v1467
          %v1608 = vpack.c.b16 %v1470, %v1469
          %v1609 = vpack.c.b16 %v1472, %v1471
          %v1610 = vpack.c.b16 %v1474, %v1473
          %v1611 = vpack.c.b16 %v1476, %v1475
          %v1612 = vpack.c.b16 %v1478, %v1477
          %v1613 = vpack.c.b16 %v1480, %v1479
          %v1614 = vpack.c.b16 %v1482, %v1481
          %v1615 = vpack.c.b16 %v1484, %v1483
          %v1616 = vpack.c.b16 %v1486, %v1485
          %v1617 = vpack.c.b16 %v1488, %v1487
          %v1618 = vpack.c.b16 %v1490, %v1489
          %1747 = vmatprep.subr.bf16.mxu0 0
          %1748 = vmatpush1.bf16.msra.mxu0 %v1491
          %1749 = vmatprep.subr.bf16.mxu0 0
          %1750 = vmatpush1.bf16.msra.mxu0 %v1492
          %1751 = vmatprep.subr.bf16.mxu0 0
          %1752 = vmatpush1.bf16.msra.mxu0 %v1493
          %1753 = vmatprep.subr.bf16.mxu0 0
          %1754 = vmatpush1.bf16.msra.mxu0 %v1494
          %1755 = vmatprep.subr.bf16.mxu0 0
          %1756 = vmatpush1.bf16.msra.mxu0 %v1495
          %1757 = vmatprep.subr.bf16.mxu0 0
          %1758 = vmatpush1.bf16.msra.mxu0 %v1496
          %1759 = vmatprep.subr.bf16.mxu0 0
          %1760 = vmatpush1.bf16.msra.mxu0 %v1497
          %1761 = vmatprep.subr.bf16.mxu0 0
          %1762 = vmatpush1.bf16.msra.mxu0 %v1498
          %1763 = vmatprep.subr.bf16.mxu0 0
          %1764 = vmatpush1.bf16.msra.mxu0 %v1499
          %1765 = vmatprep.subr.bf16.mxu0 0
          %1766 = vmatpush1.bf16.msra.mxu0 %v1500
          %1767 = vmatprep.subr.bf16.mxu0 0
          %1768 = vmatpush1.bf16.msra.mxu0 %v1501
          %1769 = vmatprep.subr.bf16.mxu0 0
          %1770 = vmatpush1.bf16.msra.mxu0 %v1502
          %1771 = vmatprep.subr.bf16.mxu0 0
          %1772 = vmatpush1.bf16.msra.mxu0 %v1503
          %1773 = vmatprep.subr.bf16.mxu0 0
          %1774 = vmatpush1.bf16.msra.mxu0 %v1504
          %1775 = vmatprep.subr.bf16.mxu0 0
          %1776 = vmatpush1.bf16.msra.mxu0 %v1505
          %1777 = vmatprep.subr.bf16.mxu0 0
          %1778 = vmatpush1.bf16.msra.mxu0 %v1506
          %1779 = vmatprep.mubr.bf16.mxu0 %v660
          %1780 = vmatmul.mubr.bf16.gmra.mrb[0].mxu0 %v659
          %v1781 = vpop.f32.mrb[0].mxu0
          %v1782 = vadd.f32 0.0, %v1781
          %v1783 = vpop.f32.mrb[0].mxu0
          %v1784 = vpop.f32.mrb[0].mxu0
          %v1785 = vadd.f32 0.0, %v1784
          %v1786 = vpop.f32.mrb[0].mxu0
          %1787 = vmatprep.mubr.bf16.mxu0 %v676
          %1788 = vmatmul.mubr.bf16.gmra.mrb[0].mxu0 %v675
          %v1789 = vpop.f32.mrb[0].mxu0
          %v1790 = vadd.f32 0.0, %v1789
          %v1791 = vpop.f32.mrb[0].mxu0
          %v1792 = vpop.f32.mrb[0].mxu0
          %v1793 = vadd.f32 0.0, %v1792
          %v1794 = vpop.f32.mrb[0].mxu0
          %1795 = vmatprep.mubr.bf16.mxu0 %v692
          %1796 = vmatmul.mubr.bf16.gmra.mrb[0].mxu0 %v691
          %v1797 = vpop.f32.mrb[0].mxu0
          %v1798 = vadd.f32 0.0, %v1797
          %v1799 = vpop.f32.mrb[0].mxu0
          %v1800 = vpop.f32.mrb[0].mxu0
          %v1801 = vadd.f32 0.0, %v1800
          %v1802 = vpop.f32.mrb[0].mxu0
          %1803 = vmatprep.mubr.bf16.mxu0 %v708
          %1804 = vmatmul.mubr.bf16.gmra.mrb[0].mxu0 %v707
          %v1805 = vpop.f32.mrb[0].mxu0
          %v1806 = vadd.f32 0.0, %v1805
          %v1807 = vpop.f32.mrb[0].mxu0
          %v1808 = vpop.f32.mrb[0].mxu0
          %v1809 = vadd.f32 0.0, %v1808
          %v1810 = vpop.f32.mrb[0].mxu0
          %1811 = vdwg.mxu0
          %1812 = vmatprep.subr.bf16.mxu0 0
          %1813 = vmatpush1.bf16.msra.mxu0 %v1507
          %1814 = vmatprep.subr.bf16.mxu0 0
          %1815 = vmatpush1.bf16.msra.mxu0 %v1508
          %1816 = vmatprep.subr.bf16.mxu0 0
          %1817 = vmatpush1.bf16.msra.mxu0 %v1509
          %1818 = vmatprep.subr.bf16.mxu0 0
          %1819 = vmatpush1.bf16.msra.mxu0 %v1510
          %1820 = vmatprep.subr.bf16.mxu0 0
          %1821 = vmatpush1.bf16.msra.mxu0 %v1511
          %1822 = vmatprep.subr.bf16.mxu0 0
          %1823 = vmatpush1.bf16.msra.mxu0 %v1512
          %1824 = vmatprep.subr.bf16.mxu0 0
          %1825 = vmatpush1.bf16.msra.mxu0 %v1513
          %1826 = vmatprep.subr.bf16.mxu0 0
          %1827 = vmatpush1.bf16.msra.mxu0 %v1514
          %1828 = vmatprep.subr.bf16.mxu0 0
          %1829 = vmatpush1.bf16.msra.mxu0 %v1515
          %1830 = vmatprep.subr.bf16.mxu0 0
          %1831 = vmatpush1.bf16.msra.mxu0 %v1516
          %1832 = vmatprep.subr.bf16.mxu0 0
          %1833 = vmatpush1.bf16.msra.mxu0 %v1517
          %1834 = vmatprep.subr.bf16.mxu0 0
          %1835 = vmatpush1.bf16.msra.mxu0 %v1518
          %1836 = vmatprep.subr.bf16.mxu0 0
          %1837 = vmatpush1.bf16.msra.mxu0 %v1519
          %1838 = vmatprep.subr.bf16.mxu0 0
          %1839 = vmatpush1.bf16.msra.mxu0 %v1520
          %1840 = vmatprep.subr.bf16.mxu0 0
          %1841 = vmatpush1.bf16.msra.mxu0 %v1521
          %1842 = vmatprep.subr.bf16.mxu0 0
          %1843 = vmatpush1.bf16.msra.mxu0 %v1522
          %1844 = vmatprep.mubr.bf16.mxu0 %v662
          %1845 = vmatmul.mubr.bf16.gmra.mrb[0].mxu0 %v661
          %v1846 = vpop.f32.mrb[0].mxu0
          %v1847 = vadd.f32 %v1782, %v1846
          %v1848 = vpop.f32.mrb[0].mxu0
          %v1849 = vpop.f32.mrb[0].mxu0
          %v1850 = vadd.f32 %v1785, %v1849
          %v1851 = vpop.f32.mrb[0].mxu0
          %1852 = vmatprep.mubr.bf16.mxu0 %v678
          %1853 = vmatmul.mubr.bf16.gmra.mrb[0].mxu0 %v677
          %v1854 = vpop.f32.mrb[0].mxu0
          %v1855 = vadd.f32 %v1790, %v1854
          %v1856 = vpop.f32.mrb[0].mxu0
          %v1857 = vpop.f32.mrb[0].mxu0
          %v1858 = vadd.f32 %v1793, %v1857
          %v1859 = vpop.f32.mrb[0].mxu0
          %1860 = vmatprep.mubr.bf16.mxu0 %v694
          %1861 = vmatmul.mubr.bf16.gmra.mrb[0].mxu0 %v693
          %v1862 = vpop.f32.mrb[0].mxu0
          %v1863 = vadd.f32 %v1798, %v1862
          %v1864 = vpop.f32.mrb[0].mxu0
          %v1865 = vpop.f32.mrb[0].mxu0
          %v1866 = vadd.f32 %v1801, %v1865
          %v1867 = vpop.f32.mrb[0].mxu0
          %1868 = vmatprep.mubr.bf16.mxu0 %v710
          %1869 = vmatmul.mubr.bf16.gmra.mrb[0].mxu0 %v709
          %v1870 = vpop.f32.mrb[0].mxu0
          %v1871 = vadd.f32 %v1806, %v1870
          %v1872 = vpop.f32.mrb[0].mxu0
          %v1873 = vpop.f32.mrb[0].mxu0
          %v1874 = vadd.f32 %v1809, %v1873
          %v1875 = vpop.f32.mrb[0].mxu0
          %1876 = vdwg.mxu0
          %1877 = vmatprep.subr.bf16.mxu0 0
          %1878 = vmatpush1.bf16.msra.mxu0 %v1523
          %1879 = vmatprep.subr.bf16.mxu0 0
          %1880 = vmatpush1.bf16.msra.mxu0 %v1524
          %1881 = vmatprep.subr.bf16.mxu0 0
          %1882 = vmatpush1.bf16.msra.mxu0 %v1525
          %1883 = vmatprep.subr.bf16.mxu0 0
          %1884 = vmatpush1.bf16.msra.mxu0 %v1526
          %1885 = vmatprep.subr.bf16.mxu0 0
          %1886 = vmatpush1.bf16.msra.mxu0 %v1527
          %1887 = vmatprep.subr.bf16.mxu0 0
          %1888 = vmatpush1.bf16.msra.mxu0 %v1528
          %1889 = vmatprep.subr.bf16.mxu0 0
          %1890 = vmatpush1.bf16.msra.mxu0 %v1529
          %1891 = vmatprep.subr.bf16.mxu0 0
          %1892 = vmatpush1.bf16.msra.mxu0 %v1530
          %1893 = vmatprep.subr.bf16.mxu0 0
          %1894 = vmatpush1.bf16.msra.mxu0 %v1531
          %1895 = vmatprep.subr.bf16.mxu0 0
          %1896 = vmatpush1.bf16.msra.mxu0 %v1532
          %1897 = vmatprep.subr.bf16.mxu0 0
          %1898 = vmatpush1.bf16.msra.mxu0 %v1533
          %1899 = vmatprep.subr.bf16.mxu0 0
          %1900 = vmatpush1.bf16.msra.mxu0 %v1534
          %1901 = vmatprep.subr.bf16.mxu0 0
          %1902 = vmatpush1.bf16.msra.mxu0 %v1535
          %1903 = vmatprep.subr.bf16.mxu0 0
          %1904 = vmatpush1.bf16.msra.mxu0 %v1536
          %1905 = vmatprep.subr.bf16.mxu0 0
          %1906 = vmatpush1.bf16.msra.mxu0 %v1537
          %1907 = vmatprep.subr.bf16.mxu0 0
          %1908 = vmatpush1.bf16.msra.mxu0 %v1538
          %1909 = vmatprep.mubr.bf16.mxu0 %v664
          %1910 = vmatmul.mubr.bf16.gmra.mrb[0].mxu0 %v663
          %v1911 = vpop.f32.mrb[0].mxu0
          %v1912 = vadd.f32 %v1847, %v1911
          %v1913 = vpop.f32.mrb[0].mxu0
          %v1914 = vpop.f32.mrb[0].mxu0
          %v1915 = vadd.f32 %v1850, %v1914
          %v1916 = vpop.f32.mrb[0].mxu0
          %1917 = vmatprep.mubr.bf16.mxu0 %v680
          %1918 = vmatmul.mubr.bf16.gmra.mrb[0].mxu0 %v679
          %v1919 = vpop.f32.mrb[0].mxu0
          %v1920 = vadd.f32 %v1855, %v1919
          %v1921 = vpop.f32.mrb[0].mxu0
          %v1922 = vpop.f32.mrb[0].mxu0
          %v1923 = vadd.f32 %v1858, %v1922
          %v1924 = vpop.f32.mrb[0].mxu0
          %1925 = vmatprep.mubr.bf16.mxu0 %v696
          %1926 = vmatmul.mubr.bf16.gmra.mrb[0].mxu0 %v695
          %v1927 = vpop.f32.mrb[0].mxu0
          %v1928 = vadd.f32 %v1863, %v1927
          %v1929 = vpop.f32.mrb[0].mxu0
          %v1930 = vpop.f32.mrb[0].mxu0
          %v1931 = vadd.f32 %v1866, %v1930
          %v1932 = vpop.f32.mrb[0].mxu0
          %1933 = vmatprep.mubr.bf16.mxu0 %v712
          %1934 = vmatmul.mubr.bf16.gmra.mrb[0].mxu0 %v711
          %v1935 = vpop.f32.mrb[0].mxu0
          %v1936 = vadd.f32 %v1871, %v1935
          %v1937 = vpop.f32.mrb[0].mxu0
          %v1938 = vpop.f32.mrb[0].mxu0
          %v1939 = vadd.f32 %v1874, %v1938
          %v1940 = vpop.f32.mrb[0].mxu0
          %1941 = vdwg.mxu0
          %1942 = vmatprep.subr.bf16.mxu0 0
          %1943 = vmatpush1.bf16.msra.mxu0 %v1539
          %1944 = vmatprep.subr.bf16.mxu0 0
          %1945 = vmatpush1.bf16.msra.mxu0 %v1540
          %1946 = vmatprep.subr.bf16.mxu0 0
          %1947 = vmatpush1.bf16.msra.mxu0 %v1541
          %1948 = vmatprep.subr.bf16.mxu0 0
          %1949 = vmatpush1.bf16.msra.mxu0 %v1542
          %1950 = vmatprep.subr.bf16.mxu0 0
          %1951 = vmatpush1.bf16.msra.mxu0 %v1543
          %1952 = vmatprep.subr.bf16.mxu0 0
          %1953 = vmatpush1.bf16.msra.mxu0 %v1544
          %1954 = vmatprep.subr.bf16.mxu0 0
          %1955 = vmatpush1.bf16.msra.mxu0 %v1545
          %1956 = vmatprep.subr.bf16.mxu0 0
          %1957 = vmatpush1.bf16.msra.mxu0 %v1546
          %1958 = vmatprep.subr.bf16.mxu0 0
          %1959 = vmatpush1.bf16.msra.mxu0 %v1547
          %1960 = vmatprep.subr.bf16.mxu0 0
          %1961 = vmatpush1.bf16.msra.mxu0 %v1548
          %1962 = vmatprep.subr.bf16.mxu0 0
          %1963 = vmatpush1.bf16.msra.mxu0 %v1549
          %1964 = vmatprep.subr.bf16.mxu0 0
          %1965 = vmatpush1.bf16.msra.mxu0 %v1550
          %1966 = vmatprep.subr.bf16.mxu0 0
          %1967 = vmatpush1.bf16.msra.mxu0 %v1551
          %1968 = vmatprep.subr.bf16.mxu0 0
          %1969 = vmatpush1.bf16.msra.mxu0 %v1552
          %1970 = vmatprep.subr.bf16.mxu0 0
          %1971 = vmatpush1.bf16.msra.mxu0 %v1553
          %1972 = vmatprep.subr.bf16.mxu0 0
          %1973 = vmatpush1.bf16.msra.mxu0 %v1554
          %1974 = vmatprep.mubr.bf16.mxu0 %v666
          %1975 = vmatmul.mubr.bf16.gmra.mrb[0].mxu0 %v665
          %v1976 = vpop.f32.mrb[0].mxu0
          %v1977 = vadd.f32 %v1912, %v1976
          %v1978 = vpop.f32.mrb[0].mxu0
          %v1979 = vpop.f32.mrb[0].mxu0
          %v1980 = vadd.f32 %v1915, %v1979
          %v1981 = vpop.f32.mrb[0].mxu0
          %1982 = vmatprep.mubr.bf16.mxu0 %v682
          %1983 = vmatmul.mubr.bf16.gmra.mrb[0].mxu0 %v681
          %v1984 = vpop.f32.mrb[0].mxu0
          %v1985 = vadd.f32 %v1920, %v1984
          %v1986 = vpop.f32.mrb[0].mxu0
          %v1987 = vpop.f32.mrb[0].mxu0
          %v1988 = vadd.f32 %v1923, %v1987
          %v1989 = vpop.f32.mrb[0].mxu0
          %1990 = vmatprep.mubr.bf16.mxu0 %v698
          %1991 = vmatmul.mubr.bf16.gmra.mrb[0].mxu0 %v697
          %v1992 = vpop.f32.mrb[0].mxu0
          %v1993 = vadd.f32 %v1928, %v1992
          %v1994 = vpop.f32.mrb[0].mxu0
          %v1995 = vpop.f32.mrb[0].mxu0
          %v1996 = vadd.f32 %v1931, %v1995
          %v1997 = vpop.f32.mrb[0].mxu0
          %1998 = vmatprep.mubr.bf16.mxu0 %v714
          %1999 = vmatmul.mubr.bf16.gmra.mrb[0].mxu0 %v713
          %v2000 = vpop.f32.mrb[0].mxu0
          %v2001 = vadd.f32 %v1936, %v2000
          %v2002 = vpop.f32.mrb[0].mxu0
          %v2003 = vpop.f32.mrb[0].mxu0
          %v2004 = vadd.f32 %v1939, %v2003
          %v2005 = vpop.f32.mrb[0].mxu0
          %2006 = vdwg.mxu0
          %2007 = vmatprep.subr.bf16.mxu0 0
          %2008 = vmatpush1.bf16.msra.mxu0 %v1555
          %2009 = vmatprep.subr.bf16.mxu0 0
          %2010 = vmatpush1.bf16.msra.mxu0 %v1556
          %2011 = vmatprep.subr.bf16.mxu0 0
          %2012 = vmatpush1.bf16.msra.mxu0 %v1557
          %2013 = vmatprep.subr.bf16.mxu0 0
          %2014 = vmatpush1.bf16.msra.mxu0 %v1558
          %2015 = vmatprep.subr.bf16.mxu0 0
          %2016 = vmatpush1.bf16.msra.mxu0 %v1559
          %2017 = vmatprep.subr.bf16.mxu0 0
          %2018 = vmatpush1.bf16.msra.mxu0 %v1560
          %2019 = vmatprep.subr.bf16.mxu0 0
          %2020 = vmatpush1.bf16.msra.mxu0 %v1561
          %2021 = vmatprep.subr.bf16.mxu0 0
          %2022 = vmatpush1.bf16.msra.mxu0 %v1562
          %2023 = vmatprep.subr.bf16.mxu0 0
          %2024 = vmatpush1.bf16.msra.mxu0 %v1563
          %2025 = vmatprep.subr.bf16.mxu0 0
          %2026 = vmatpush1.bf16.msra.mxu0 %v1564
          %2027 = vmatprep.subr.bf16.mxu0 0
          %2028 = vmatpush1.bf16.msra.mxu0 %v1565
          %2029 = vmatprep.subr.bf16.mxu0 0
          %2030 = vmatpush1.bf16.msra.mxu0 %v1566
          %2031 = vmatprep.subr.bf16.mxu0 0
          %2032 = vmatpush1.bf16.msra.mxu0 %v1567
          %2033 = vmatprep.subr.bf16.mxu0 0
          %2034 = vmatpush1.bf16.msra.mxu0 %v1568
          %2035 = vmatprep.subr.bf16.mxu0 0
          %2036 = vmatpush1.bf16.msra.mxu0 %v1569
          %2037 = vmatprep.subr.bf16.mxu0 0
          %2038 = vmatpush1.bf16.msra.mxu0 %v1570
          %2039 = vmatprep.mubr.bf16.mxu0 %v668
          %2040 = vmatmul.mubr.bf16.gmra.mrb[0].mxu0 %v667
          %v2041 = vpop.f32.mrb[0].mxu0
          %v2042 = vadd.f32 %v1977, %v2041
          %v2043 = vpop.f32.mrb[0].mxu0
          %v2044 = vpop.f32.mrb[0].mxu0
          %v2045 = vadd.f32 %v1980, %v2044
          %v2046 = vpop.f32.mrb[0].mxu0
          %2047 = vmatprep.mubr.bf16.mxu0 %v684
          %2048 = vmatmul.mubr.bf16.gmra.mrb[0].mxu0 %v683
          %v2049 = vpop.f32.mrb[0].mxu0
          %v2050 = vadd.f32 %v1985, %v2049
          %v2051 = vpop.f32.mrb[0].mxu0
          %v2052 = vpop.f32.mrb[0].mxu0
          %v2053 = vadd.f32 %v1988, %v2052
          %v2054 = vpop.f32.mrb[0].mxu0
          %2055 = vmatprep.mubr.bf16.mxu0 %v700
          %2056 = vmatmul.mubr.bf16.gmra.mrb[0].mxu0 %v699
          %v2057 = vpop.f32.mrb[0].mxu0
          %v2058 = vadd.f32 %v1993, %v2057
          %v2059 = vpop.f32.mrb[0].mxu0
          %v2060 = vpop.f32.mrb[0].mxu0
          %v2061 = vadd.f32 %v1996, %v2060
          %v2062 = vpop.f32.mrb[0].mxu0
          %2063 = vmatprep.mubr.bf16.mxu0 %v716
          %2064 = vmatmul.mubr.bf16.gmra.mrb[0].mxu0 %v715
          %v2065 = vpop.f32.mrb[0].mxu0
          %v2066 = vadd.f32 %v2001, %v2065
          %v2067 = vpop.f32.mrb[0].mxu0
          %v2068 = vpop.f32.mrb[0].mxu0
          %v2069 = vadd.f32 %v2004, %v2068
          %v2070 = vpop.f32.mrb[0].mxu0
          %2071 = vdwg.mxu0
          %2072 = vmatprep.subr.bf16.mxu0 0
          %2073 = vmatpush1.bf16.msra.mxu0 %v1571
          %2074 = vmatprep.subr.bf16.mxu0 0
          %2075 = vmatpush1.bf16.msra.mxu0 %v1572
          %2076 = vmatprep.subr.bf16.mxu0 0
          %2077 = vmatpush1.bf16.msra.mxu0 %v1573
          %2078 = vmatprep.subr.bf16.mxu0 0
          %2079 = vmatpush1.bf16.msra.mxu0 %v1574
          %2080 = vmatprep.subr.bf16.mxu0 0
          %2081 = vmatpush1.bf16.msra.mxu0 %v1575
          %2082 = vmatprep.subr.bf16.mxu0 0
          %2083 = vmatpush1.bf16.msra.mxu0 %v1576
          %2084 = vmatprep.subr.bf16.mxu0 0
          %2085 = vmatpush1.bf16.msra.mxu0 %v1577
          %2086 = vmatprep.subr.bf16.mxu0 0
          %2087 = vmatpush1.bf16.msra.mxu0 %v1578
          %2088 = vmatprep.subr.bf16.mxu0 0
          %2089 = vmatpush1.bf16.msra.mxu0 %v1579
          %2090 = vmatprep.subr.bf16.mxu0 0
          %2091 = vmatpush1.bf16.msra.mxu0 %v1580
          %2092 = vmatprep.subr.bf16.mxu0 0
          %2093 = vmatpush1.bf16.msra.mxu0 %v1581
          %2094 = vmatprep.subr.bf16.mxu0 0
          %2095 = vmatpush1.bf16.msra.mxu0 %v1582
          %2096 = vmatprep.subr.bf16.mxu0 0
          %2097 = vmatpush1.bf16.msra.mxu0 %v1583
          %2098 = vmatprep.subr.bf16.mxu0 0
          %2099 = vmatpush1.bf16.msra.mxu0 %v1584
          %2100 = vmatprep.subr.bf16.mxu0 0
          %2101 = vmatpush1.bf16.msra.mxu0 %v1585
          %2102 = vmatprep.subr.bf16.mxu0 0
          %2103 = vmatpush1.bf16.msra.mxu0 %v1586
          %2104 = vmatprep.mubr.bf16.mxu0 %v670
          %2105 = vmatmul.mubr.bf16.gmra.mrb[0].mxu0 %v669
          %v2106 = vpop.f32.mrb[0].mxu0
          %v2107 = vadd.f32 %v2042, %v2106
          %v2108 = vpop.f32.mrb[0].mxu0
          %v2109 = vpop.f32.mrb[0].mxu0
          %v2110 = vadd.f32 %v2045, %v2109
          %v2111 = vpop.f32.mrb[0].mxu0
          %2112 = vmatprep.mubr.bf16.mxu0 %v686
          %2113 = vmatmul.mubr.bf16.gmra.mrb[0].mxu0 %v685
          %v2114 = vpop.f32.mrb[0].mxu0
          %v2115 = vadd.f32 %v2050, %v2114
          %v2116 = vpop.f32.mrb[0].mxu0
          %v2117 = vpop.f32.mrb[0].mxu0
          %v2118 = vadd.f32 %v2053, %v2117
          %v2119 = vpop.f32.mrb[0].mxu0
          %2120 = vmatprep.mubr.bf16.mxu0 %v702
          %2121 = vmatmul.mubr.bf16.gmra.mrb[0].mxu0 %v701
          %v2122 = vpop.f32.mrb[0].mxu0
          %v2123 = vadd.f32 %v2058, %v2122
          %v2124 = vpop.f32.mrb[0].mxu0
          %v2125 = vpop.f32.mrb[0].mxu0
          %v2126 = vadd.f32 %v2061, %v2125
          %v2127 = vpop.f32.mrb[0].mxu0
          %2128 = vmatprep.mubr.bf16.mxu0 %v718
          %2129 = vmatmul.mubr.bf16.gmra.mrb[0].mxu0 %v717
          %v2130 = vpop.f32.mrb[0].mxu0
          %v2131 = vadd.f32 %v2066, %v2130
          %v2132 = vpop.f32.mrb[0].mxu0
          %v2133 = vpop.f32.mrb[0].mxu0
          %v2134 = vadd.f32 %v2069, %v2133
          %v2135 = vpop.f32.mrb[0].mxu0
          %2136 = vdwg.mxu0
          %2137 = vmatprep.subr.bf16.mxu0 0
          %2138 = vmatpush1.bf16.msra.mxu0 %v1587
          %2139 = vmatprep.subr.bf16.mxu0 0
          %2140 = vmatpush1.bf16.msra.mxu0 %v1588
          %2141 = vmatprep.subr.bf16.mxu0 0
          %2142 = vmatpush1.bf16.msra.mxu0 %v1589
          %2143 = vmatprep.subr.bf16.mxu0 0
          %2144 = vmatpush1.bf16.msra.mxu0 %v1590
          %2145 = vmatprep.subr.bf16.mxu0 0
          %2146 = vmatpush1.bf16.msra.mxu0 %v1591
          %2147 = vmatprep.subr.bf16.mxu0 0
          %2148 = vmatpush1.bf16.msra.mxu0 %v1592
          %2149 = vmatprep.subr.bf16.mxu0 0
          %2150 = vmatpush1.bf16.msra.mxu0 %v1593
          %2151 = vmatprep.subr.bf16.mxu0 0
          %2152 = vmatpush1.bf16.msra.mxu0 %v1594
          %2153 = vmatprep.subr.bf16.mxu0 0
          %2154 = vmatpush1.bf16.msra.mxu0 %v1595
          %2155 = vmatprep.subr.bf16.mxu0 0
          %2156 = vmatpush1.bf16.msra.mxu0 %v1596
          %2157 = vmatprep.subr.bf16.mxu0 0
          %2158 = vmatpush1.bf16.msra.mxu0 %v1597
          %2159 = vmatprep.subr.bf16.mxu0 0
          %2160 = vmatpush1.bf16.msra.mxu0 %v1598
          %2161 = vmatprep.subr.bf16.mxu0 0
          %2162 = vmatpush1.bf16.msra.mxu0 %v1599
          %2163 = vmatprep.subr.bf16.mxu0 0
          %2164 = vmatpush1.bf16.msra.mxu0 %v1600
          %2165 = vmatprep.subr.bf16.mxu0 0
          %2166 = vmatpush1.bf16.msra.mxu0 %v1601
          %2167 = vmatprep.subr.bf16.mxu0 0
          %2168 = vmatpush1.bf16.msra.mxu0 %v1602
          %2169 = vmatprep.mubr.bf16.mxu0 %v672
          %2170 = vmatmul.mubr.bf16.gmra.mrb[0].mxu0 %v671
          %v2171 = vpop.f32.mrb[0].mxu0
          %v2172 = vadd.f32 %v2107, %v2171
          %v2173 = vpop.f32.mrb[0].mxu0
          %v2174 = vpop.f32.mrb[0].mxu0
          %v2175 = vadd.f32 %v2110, %v2174
          %v2176 = vpop.f32.mrb[0].mxu0
          %2177 = vmatprep.mubr.bf16.mxu0 %v688
          %2178 = vmatmul.mubr.bf16.gmra.mrb[0].mxu0 %v687
          %v2179 = vpop.f32.mrb[0].mxu0
          %v2180 = vadd.f32 %v2115, %v2179
          %v2181 = vpop.f32.mrb[0].mxu0
          %v2182 = vpop.f32.mrb[0].mxu0
          %v2183 = vadd.f32 %v2118, %v2182
          %v2184 = vpop.f32.mrb[0].mxu0
          %2185 = vmatprep.mubr.bf16.mxu0 %v704
          %2186 = vmatmul.mubr.bf16.gmra.mrb[0].mxu0 %v703
          %v2187 = vpop.f32.mrb[0].mxu0
          %v2188 = vadd.f32 %v2123, %v2187
          %v2189 = vpop.f32.mrb[0].mxu0
          %v2190 = vpop.f32.mrb[0].mxu0
          %v2191 = vadd.f32 %v2126, %v2190
          %v2192 = vpop.f32.mrb[0].mxu0
          %2193 = vmatprep.mubr.bf16.mxu0 %v720
          %2194 = vmatmul.mubr.bf16.gmra.mrb[0].mxu0 %v719
          %v2195 = vpop.f32.mrb[0].mxu0
          %v2196 = vadd.f32 %v2131, %v2195
          %v2197 = vpop.f32.mrb[0].mxu0
          %v2198 = vpop.f32.mrb[0].mxu0
          %v2199 = vadd.f32 %v2134, %v2198
          %v2200 = vpop.f32.mrb[0].mxu0
          %2201 = vdwg.mxu0
          %2202 = vmatprep.subr.bf16.mxu0 0
          %2203 = vmatpush1.bf16.msra.mxu0 %v1603
          %2204 = vmatprep.subr.bf16.mxu0 0
          %2205 = vmatpush1.bf16.msra.mxu0 %v1604
          %2206 = vmatprep.subr.bf16.mxu0 0
          %2207 = vmatpush1.bf16.msra.mxu0 %v1605
          %2208 = vmatprep.subr.bf16.mxu0 0
          %2209 = vmatpush1.bf16.msra.mxu0 %v1606
          %2210 = vmatprep.subr.bf16.mxu0 0
          %2211 = vmatpush1.bf16.msra.mxu0 %v1607
          %2212 = vmatprep.subr.bf16.mxu0 0
          %2213 = vmatpush1.bf16.msra.mxu0 %v1608
          %2214 = vmatprep.subr.bf16.mxu0 0
          %2215 = vmatpush1.bf16.msra.mxu0 %v1609
          %2216 = vmatprep.subr.bf16.mxu0 0
          %2217 = vmatpush1.bf16.msra.mxu0 %v1610
          %2218 = vmatprep.subr.bf16.mxu0 0
          %2219 = vmatpush1.bf16.msra.mxu0 %v1611
          %2220 = vmatprep.subr.bf16.mxu0 0
          %2221 = vmatpush1.bf16.msra.mxu0 %v1612
          %2222 = vmatprep.subr.bf16.mxu0 0
          %2223 = vmatpush1.bf16.msra.mxu0 %v1613
          %2224 = vmatprep.subr.bf16.mxu0 0
          %2225 = vmatpush1.bf16.msra.mxu0 %v1614
          %2226 = vmatprep.subr.bf16.mxu0 0
          %2227 = vmatpush1.bf16.msra.mxu0 %v1615
          %2228 = vmatprep.subr.bf16.mxu0 0
          %2229 = vmatpush1.bf16.msra.mxu0 %v1616
          %2230 = vmatprep.subr.bf16.mxu0 0
          %2231 = vmatpush1.bf16.msra.mxu0 %v1617
          %2232 = vmatprep.subr.bf16.mxu0 0
          %2233 = vmatpush1.bf16.msra.mxu0 %v1618
          %2234 = vmatprep.mubr.bf16.mxu0 %v674
          %2235 = vmatmul.mubr.bf16.gmra.mrb[0].mxu0 %v673
          %v2236 = vpop.f32.mrb[0].mxu0
          %v2237 = vadd.f32 %v2172, %v2236
          %v2238 = vpop.f32.mrb[0].mxu0
          %v2239 = vpop.f32.mrb[0].mxu0
          %v2240 = vadd.f32 %v2175, %v2239
          %v2241 = vpop.f32.mrb[0].mxu0
          %2242 = vmatprep.mubr.bf16.mxu0 %v690
          %2243 = vmatmul.mubr.bf16.gmra.mrb[0].mxu0 %v689
          %v2244 = vpop.f32.mrb[0].mxu0
          %v2245 = vadd.f32 %v2180, %v2244
          %v2246 = vpop.f32.mrb[0].mxu0
          %v2247 = vpop.f32.mrb[0].mxu0
          %v2248 = vadd.f32 %v2183, %v2247
          %v2249 = vpop.f32.mrb[0].mxu0
          %2250 = vmatprep.mubr.bf16.mxu0 %v706
          %2251 = vmatmul.mubr.bf16.gmra.mrb[0].mxu0 %v705
          %v2252 = vpop.f32.mrb[0].mxu0
          %v2253 = vadd.f32 %v2188, %v2252
          %v2254 = vpop.f32.mrb[0].mxu0
          %v2255 = vpop.f32.mrb[0].mxu0
          %v2256 = vadd.f32 %v2191, %v2255
          %v2257 = vpop.f32.mrb[0].mxu0
          %2258 = vmatprep.mubr.bf16.mxu0 %v722
          %2259 = vmatmul.mubr.bf16.gmra.mrb[0].mxu0 %v721
          %v2260 = vpop.f32.mrb[0].mxu0
          %v2261 = vadd.f32 %v2196, %v2260
          %v2262 = vpop.f32.mrb[0].mxu0
          %v2263 = vpop.f32.mrb[0].mxu0
          %v2264 = vadd.f32 %v2199, %v2263
          %v2265 = vpop.f32.mrb[0].mxu0
          %2266 = vdwg.mxu0
          %v2267 = vadd.f32 %v523, %v2237
          %v2268 = vadd.f32 %v524, %v2240
          %v2269 = vadd.f32 %v525, %v2245
          %v2270 = vadd.f32 %v526, %v2248
          %v2271 = vadd.f32 %v527, %v2253
          %v2272 = vadd.f32 %v528, %v2256
          %v2273 = vadd.f32 %v529, %v2261
          %v2274 = vadd.f32 %v530, %v2264
          %2275 = vst [vmem:[#allocation2] sm:$0xff] %v2267
          %2276 = vst [vmem:[#allocation2 + $0x8] sm:$0xff] %v2268
          %2277 = vst [vmem:[#allocation2 + $0x10] sm:$0xff] %v2269
          %2278 = vst [vmem:[#allocation2 + $0x18] sm:$0xff] %v2270
          %2279 = vst [vmem:[#allocation2 + $0x20] sm:$0xff] %v2271
          %2280 = vst [vmem:[#allocation2 + $0x28] sm:$0xff] %v2272
          %2281 = vst [vmem:[#allocation2 + $0x30] sm:$0xff] %v2273
          %2282 = vst [vmem:[#allocation2 + $0x38] sm:$0xff] %v2274
        $region68: #{cdae_forward.1} parent=47 // pred_fallthru
          _
        %p2283 = scmp.eq.s32.totalorder %s32, 1
        // Predicated region
        $region69: #{cdae_forward.1} parent=47 // pred_check
          %p2284 = pneg %p2283
        $region70: #{cdae_forward.1} parent=47 // pred_check_branch
          %2286 = sbr.rel (%p2284) target = $region72
        $region71: #{cdae_forward.1} parent=47 // pred_region
          %v2287 = vld [vmem:[#allocation2] sm:$0xff]
          %v2288 = vld [vmem:[#allocation2 + $0x8] sm:$0xff]
          %v2289 = vld [vmem:[#allocation2 + $0x10] sm:$0xff]
          %v2290 = vld [vmem:[#allocation2 + $0x18] sm:$0xff]
          %v2291 = vld [vmem:[#allocation2 + $0x20] sm:$0xff]
          %v2292 = vld [vmem:[#allocation2 + $0x28] sm:$0xff]
          %v2293 = vld [vmem:[#allocation2 + $0x30] sm:$0xff]
          %v2294 = vld [vmem:[#allocation2 + $0x38] sm:$0xff]
          %v2295 = vsub.f32 0.0, %v2287
          %v2296 = vsub.f32 0.0, %v2288
          %v2297 = vsub.f32 0.0, %v2289
          %v2298 = vsub.f32 0.0, %v2290
          %v2299 = vsub.f32 0.0, %v2291
          %v2300 = vsub.f32 0.0, %v2292
          %v2301 = vsub.f32 0.0, %v2293
          %v2302 = vsub.f32 0.0, %v2294
          %v2303 = vmul.f32 %v2295, 1.442695
          %v2304 = vpow.pop %v2303
          %v2305 = vmul.f32 %v2296, 1.442695
          %v2306 = vpow.pop %v2305
          %v2307 = vmul.f32 %v2297, 1.442695
          %v2308 = vpow.pop %v2307
          %v2309 = vmul.f32 %v2298, 1.442695
          %v2310 = vpow.pop %v2309
          %v2311 = vmul.f32 %v2299, 1.442695
          %v2312 = vpow.pop %v2311
          %v2313 = vmul.f32 %v2300, 1.442695
          %v2314 = vpow.pop %v2313
          %v2315 = vmul.f32 %v2301, 1.442695
          %v2316 = vpow.pop %v2315
          %v2317 = vmul.f32 %v2302, 1.442695
          %v2318 = vpow.pop %v2317
          %v2319 = vadd.f32 %v2304, 1.0
          %v2320 = vadd.f32 %v2306, 1.0
          %v2321 = vadd.f32 %v2308, 1.0
          %v2322 = vadd.f32 %v2310, 1.0
          %v2323 = vadd.f32 %v2312, 1.0
          %v2324 = vadd.f32 %v2314, 1.0
          %v2325 = vadd.f32 %v2316, 1.0
          %v2326 = vadd.f32 %v2318, 1.0
          %v2327 = vrcp.pop %v2319
          %v2328 = vmul.f32 1.0, %v2327
          %v2329 = vrcp.pop %v2320
          %v2330 = vmul.f32 1.0, %v2329
          %v2331 = vrcp.pop %v2321
          %v2332 = vmul.f32 1.0, %v2331
          %v2333 = vrcp.pop %v2322
          %v2334 = vmul.f32 1.0, %v2333
          %v2335 = vrcp.pop %v2323
          %v2336 = vmul.f32 1.0, %v2335
          %v2337 = vrcp.pop %v2324
          %v2338 = vmul.f32 1.0, %v2337
          %v2339 = vrcp.pop %v2325
          %v2340 = vmul.f32 1.0, %v2339
          %v2341 = vrcp.pop %v2326
          %v2342 = vmul.f32 1.0, %v2341
          %v2343 = vld [vmem:[%s3] sm:$0xff]
          %v2344 = vld [vmem:[%s3 + $0x8] sm:$0xff]
          %v2345 = vld [vmem:[%s3 + $0x10] sm:$0xff]
          %v2346 = vld [vmem:[%s3 + $0x18] sm:$0xff]
          %v2347 = vld [vmem:[%s3 + $0x20] sm:$0xff]
          %v2348 = vld [vmem:[%s3 + $0x28] sm:$0xff]
          %v2349 = vld [vmem:[%s3 + $0x30] sm:$0xff]
          %v2350 = vld [vmem:[%s3 + $0x38] sm:$0xff]
          %v2351 = vld [vmem:[%s3 + $0x40] sm:$0xff]
          %v2352 = vld [vmem:[%s3 + $0x48] sm:$0xff]
          %v2353 = vld [vmem:[%s3 + $0x50] sm:$0xff]
          %v2354 = vld [vmem:[%s3 + $0x58] sm:$0xff]
          %v2355 = vld [vmem:[%s3 + $0x60] sm:$0xff]
          %v2356 = vld [vmem:[%s3 + $0x68] sm:$0xff]
          %v2357 = vld [vmem:[%s3 + $0x70] sm:$0xff]
          %v2358 = vld [vmem:[%s3 + $0x78] sm:$0xff]
          %v2359 = vld [vmem:[%s4] sm:$0x1]
          %v2361 = vlaneseq
          %v2362 = vshrl.u32 %v2361, 7
          %v2363 = vsub.s32 0, %v2362
          %v2364 = vrot.slane %v2359, %v2363
          %2366 = vmatprep.subr.mxu0 0.0
          %2367 = vmatpush1.msra.mxu0 %v2343
          %2368 = vmatprep.subr.mxu0 0.0
          %2369 = vmatpush1.msra.mxu0 %v2344
          %2370 = vmatprep.subr.mxu0 0.0
          %2371 = vmatpush1.msra.mxu0 %v2345
          %2372 = vmatprep.subr.mxu0 0.0
          %2373 = vmatpush1.msra.mxu0 %v2346
          %2374 = vmatprep.subr.mxu0 0.0
          %2375 = vmatpush1.msra.mxu0 %v2347
          %2376 = vmatprep.subr.mxu0 0.0
          %2377 = vmatpush1.msra.mxu0 %v2348
          %2378 = vmatprep.subr.mxu0 0.0
          %2379 = vmatpush1.msra.mxu0 %v2349
          %2380 = vmatprep.subr.mxu0 0.0
          %2381 = vmatpush1.msra.mxu0 %v2350
          %2382 = vmatprep.subr.mxu0 0.0
          %2383 = vmatpush1.msra.mxu0 %v2351
          %2384 = vmatprep.subr.mxu0 0.0
          %2385 = vmatpush1.msra.mxu0 %v2352
          %2386 = vmatprep.subr.mxu0 0.0
          %2387 = vmatpush1.msra.mxu0 %v2353
          %2388 = vmatprep.subr.mxu0 0.0
          %2389 = vmatpush1.msra.mxu0 %v2354
          %2390 = vmatprep.subr.mxu0 0.0
          %2391 = vmatpush1.msra.mxu0 %v2355
          %2392 = vmatprep.subr.mxu0 0.0
          %2393 = vmatpush1.msra.mxu0 %v2356
          %2394 = vmatprep.subr.mxu0 0.0
          %2395 = vmatpush1.msra.mxu0 %v2357
          %2396 = vmatprep.subr.mxu0 0.0
          %2397 = vmatpush1.msra.mxu0 %v2358
          %2398 = vmatprep.subr.mxu0 0.0
          %2399 = vmatpush1.msra.mxu0 0.0
          %2400 = vmatprep.subr.mxu0 0.0
          %2401 = vmatpush1.msra.mxu0 0.0
          %2402 = vmatprep.subr.mxu0 0.0
          %2403 = vmatpush1.msra.mxu0 0.0
          %2404 = vmatprep.subr.mxu0 0.0
          %2405 = vmatpush1.msra.mxu0 0.0
          %2406 = vmatprep.subr.mxu0 0.0
          %2407 = vmatpush1.msra.mxu0 0.0
          %2408 = vmatprep.subr.mxu0 0.0
          %2409 = vmatpush1.msra.mxu0 0.0
          %2410 = vmatprep.subr.mxu0 0.0
          %2411 = vmatpush1.msra.mxu0 0.0
          %2412 = vmatprep.subr.mxu0 0.0
          %2413 = vmatpush1.msra.mxu0 0.0
          %2414 = vmatprep.subr.mxu0 0.0
          %2415 = vmatpush1.msra.mxu0 0.0
          %2416 = vmatprep.subr.mxu0 0.0
          %2417 = vmatpush1.msra.mxu0 0.0
          %2418 = vmatprep.subr.mxu0 0.0
          %2419 = vmatpush1.msra.mxu0 0.0
          %2420 = vmatprep.subr.mxu0 0.0
          %2421 = vmatpush1.msra.mxu0 0.0
          %2422 = vmatprep.subr.mxu0 0.0
          %2423 = vmatpush1.msra.mxu0 0.0
          %2424 = vmatprep.subr.mxu0 0.0
          %2425 = vmatpush1.msra.mxu0 0.0
          %2426 = vmatprep.subr.mxu0 0.0
          %2427 = vmatpush1.msra.mxu0 0.0
          %2428 = vmatprep.subr.mxu0 0.0
          %2429 = vmatpush1.msra.mxu0 0.0
          %2430 = vmatprep.mubr.f32.mxu0 0.0
          %2431 = vmatmul.mubr.f32.gmra.mrb[0].mxu0 %v2328
          %v2432 = vpop.f32.mrb[0].mxu0
          %v2433 = vadd.f32 %v2364, %v2432
          %v2434 = vpop.f32.mrb[0].mxu0
          %2435 = vmatprep.mubr.f32.mxu0 0.0
          %2436 = vmatmul.mubr.f32.gmra.mrb[0].mxu0 %v2330
          %v2437 = vpop.f32.mrb[0].mxu0
          %v2438 = vadd.f32 %v2364, %v2437
          %v2439 = vpop.f32.mrb[0].mxu0
          %2440 = vmatprep.mubr.f32.mxu0 0.0
          %2441 = vmatmul.mubr.f32.gmra.mrb[0].mxu0 %v2332
          %v2442 = vpop.f32.mrb[0].mxu0
          %v2443 = vadd.f32 %v2364, %v2442
          %v2444 = vpop.f32.mrb[0].mxu0
          %2445 = vmatprep.mubr.f32.mxu0 0.0
          %2446 = vmatmul.mubr.f32.gmra.mrb[0].mxu0 %v2334
          %v2447 = vpop.f32.mrb[0].mxu0
          %v2448 = vadd.f32 %v2364, %v2447
          %v2449 = vpop.f32.mrb[0].mxu0
          %2450 = vmatprep.mubr.f32.mxu0 0.0
          %2451 = vmatmul.mubr.f32.gmra.mrb[0].mxu0 %v2336
          %v2452 = vpop.f32.mrb[0].mxu0
          %v2453 = vadd.f32 %v2364, %v2452
          %v2454 = vpop.f32.mrb[0].mxu0
          %2455 = vmatprep.mubr.f32.mxu0 0.0
          %2456 = vmatmul.mubr.f32.gmra.mrb[0].mxu0 %v2338
          %v2457 = vpop.f32.mrb[0].mxu0
          %v2458 = vadd.f32 %v2364, %v2457
          %v2459 = vpop.f32.mrb[0].mxu0
          %2460 = vmatprep.mubr.f32.mxu0 0.0
          %2461 = vmatmul.mubr.f32.gmra.mrb[0].mxu0 %v2340
          %v2462 = vpop.f32.mrb[0].mxu0
          %v2463 = vadd.f32 %v2364, %v2462
          %v2464 = vpop.f32.mrb[0].mxu0
          %2465 = vmatprep.mubr.f32.mxu0 0.0
          %2466 = vmatmul.mubr.f32.gmra.mrb[0].mxu0 %v2342
          %v2467 = vpop.f32.mrb[0].mxu0
          %v2468 = vadd.f32 %v2364, %v2467
          %v2469 = vpop.f32.mrb[0].mxu0
          %2470 = vdwg.mxu0
          %v2471 = vsub.f32 0.0, %v2433
          %v2472 = vsub.f32 0.0, %v2438
          %v2473 = vsub.f32 0.0, %v2443
          %v2474 = vsub.f32 0.0, %v2448
          %v2475 = vsub.f32 0.0, %v2453
          %v2476 = vsub.f32 0.0, %v2458
          %v2477 = vsub.f32 0.0, %v2463
          %v2478 = vsub.f32 0.0, %v2468
          %v2479 = vmul.f32 %v2471, 1.442695
          %v2480 = vpow.pop %v2479
          %v2481 = vmul.f32 %v2472, 1.442695
          %v2482 = vpow.pop %v2481
          %v2483 = vmul.f32 %v2473, 1.442695
          %v2484 = vpow.pop %v2483
          %v2485 = vmul.f32 %v2474, 1.442695
          %v2486 = vpow.pop %v2485
          %v2487 = vmul.f32 %v2475, 1.442695
          %v2488 = vpow.pop %v2487
          %v2489 = vmul.f32 %v2476, 1.442695
          %v2490 = vpow.pop %v2489
          %v2491 = vmul.f32 %v2477, 1.442695
          %v2492 = vpow.pop %v2491
          %v2493 = vmul.f32 %v2478, 1.442695
          %v2494 = vpow.pop %v2493
          %v2495 = vadd.f32 %v2480, 1.0
          %v2496 = vadd.f32 %v2482, 1.0
          %v2497 = vadd.f32 %v2484, 1.0
          %v2498 = vadd.f32 %v2486, 1.0
          %v2499 = vadd.f32 %v2488, 1.0
          %v2500 = vadd.f32 %v2490, 1.0
          %v2501 = vadd.f32 %v2492, 1.0
          %v2502 = vadd.f32 %v2494, 1.0
          %v2503 = vrcp.pop %v2495
          %v2504 = vmul.f32 1.0, %v2503
          %v2505 = vrcp.pop %v2496
          %v2506 = vmul.f32 1.0, %v2505
          %v2507 = vrcp.pop %v2497
          %v2508 = vmul.f32 1.0, %v2507
          %v2509 = vrcp.pop %v2498
          %v2510 = vmul.f32 1.0, %v2509
          %v2511 = vrcp.pop %v2499
          %v2512 = vmul.f32 1.0, %v2511
          %v2513 = vrcp.pop %v2500
          %v2514 = vmul.f32 1.0, %v2513
          %v2515 = vrcp.pop %v2501
          %v2516 = vmul.f32 1.0, %v2515
          %v2517 = vrcp.pop %v2502
          %v2518 = vmul.f32 1.0, %v2517
          %vm2519 = vcmask 523264
          %2520 = vst.msk [vmem:[#allocation3] sm:$0xff] %vm2519, %v2504
          %2521 = vst.msk [vmem:[#allocation3 + $0x8] sm:$0xff] %vm2519, %v2506
          %2522 = vst.msk [vmem:[#allocation3 + $0x10] sm:$0xff] %vm2519, %v2508
          %2523 = vst.msk [vmem:[#allocation3 + $0x18] sm:$0xff] %vm2519, %v2510
          %2524 = vst.msk [vmem:[#allocation3 + $0x20] sm:$0xff] %vm2519, %v2512
          %2525 = vst.msk [vmem:[#allocation3 + $0x28] sm:$0xff] %vm2519, %v2514
          %2526 = vst.msk [vmem:[#allocation3 + $0x30] sm:$0xff] %vm2519, %v2516
          %2527 = vst.msk [vmem:[#allocation3 + $0x38] sm:$0xff] %vm2519, %v2518
        $region72: #{cdae_forward.1} parent=47 // pred_fallthru
          _
        %p2528 = scmp.ge.s32.totalorder %s32, 2
        // Predicated region
        $region73: #{cdae_forward.1} parent=47 // pred_check
          %p2529 = pneg %p2528
        $region74: #{cdae_forward.1} parent=47 // pred_check_branch
          %2531 = sbr.rel (%p2529) target = $region76
        $region75: #{cdae_forward.1} parent=47 // pred_region
          %v2532 = vld [vmem:[#allocation3] sm:$0xff]
          %v2533 = vld [vmem:[#allocation3 + $0x8] sm:$0xff]
          %v2534 = vld [vmem:[#allocation3 + $0x10] sm:$0xff]
          %v2535 = vld [vmem:[#allocation3 + $0x18] sm:$0xff]
          %v2536 = vld [vmem:[#allocation3 + $0x20] sm:$0xff]
          %v2537 = vld [vmem:[#allocation3 + $0x28] sm:$0xff]
          %v2538 = vld [vmem:[#allocation3 + $0x30] sm:$0xff]
          %v2539 = vld [vmem:[#allocation3 + $0x38] sm:$0xff]
          %v2540 = vpack.c.bf16 %v2533, %v2532
          %v2541 = vpack.c.bf16 %v2535, %v2534
          %v2542 = vpack.c.bf16 %v2537, %v2536
          %v2543 = vpack.c.bf16 %v2539, %v2538
          %v2544 = vld [vmem:[%s412] sm:$0xff]
          %v2545 = vld [vmem:[%s412 + $0x8] sm:$0xff]
          %v2546 = vld [vmem:[%s412 + $0x10] sm:$0xff]
          %v2547 = vld [vmem:[%s412 + $0x18] sm:$0xff]
          %v2548 = vld [vmem:[%s412 + $0x20] sm:$0xff]
          %v2549 = vld [vmem:[%s412 + $0x28] sm:$0xff]
          %v2550 = vld [vmem:[%s412 + $0x30] sm:$0xff]
          %v2551 = vld [vmem:[%s412 + $0x38] sm:$0xff]
          %v2552 = vld [vmem:[%s412 + $0x40] sm:$0xff]
          %v2553 = vld [vmem:[%s412 + $0x48] sm:$0xff]
          %v2554 = vld [vmem:[%s412 + $0x50] sm:$0xff]
          %v2555 = vld [vmem:[%s412 + $0x58] sm:$0xff]
          %v2556 = vld [vmem:[%s412 + $0x60] sm:$0xff]
          %v2557 = vld [vmem:[%s412 + $0x68] sm:$0xff]
          %v2558 = vld [vmem:[%s412 + $0x70] sm:$0xff]
          %v2559 = vld [vmem:[%s412 + $0x78] sm:$0xff]
          %v2560 = vld [vmem:[%s412 + $0x80] sm:$0xff]
          %v2561 = vld [vmem:[%s412 + $0x88] sm:$0xff]
          %v2562 = vld [vmem:[%s412 + $0x90] sm:$0xff]
          %v2563 = vld [vmem:[%s412 + $0x98] sm:$0xff]
          %v2564 = vld [vmem:[%s412 + $0xa0] sm:$0xff]
          %v2565 = vld [vmem:[%s412 + $0xa8] sm:$0xff]
          %v2566 = vld [vmem:[%s412 + $0xb0] sm:$0xff]
          %v2567 = vld [vmem:[%s412 + $0xb8] sm:$0xff]
          %v2568 = vld [vmem:[%s412 + $0xc0] sm:$0xff]
          %v2569 = vld [vmem:[%s412 + $0xc8] sm:$0xff]
          %v2570 = vld [vmem:[%s412 + $0xd0] sm:$0xff]
          %v2571 = vld [vmem:[%s412 + $0xd8] sm:$0xff]
          %v2572 = vld [vmem:[%s412 + $0xe0] sm:$0xff]
          %v2573 = vld [vmem:[%s412 + $0xe8] sm:$0xff]
          %v2574 = vld [vmem:[%s412 + $0xf0] sm:$0xff]
          %v2575 = vld [vmem:[%s412 + $0xf8] sm:$0xff]
          %v2576 = vld [vmem:[%s412 + $0x100] sm:$0xff]
          %v2577 = vld [vmem:[%s412 + $0x108] sm:$0xff]
          %v2578 = vld [vmem:[%s412 + $0x110] sm:$0xff]
          %v2579 = vld [vmem:[%s412 + $0x118] sm:$0xff]
          %v2580 = vld [vmem:[%s412 + $0x120] sm:$0xff]
          %v2581 = vld [vmem:[%s412 + $0x128] sm:$0xff]
          %v2582 = vld [vmem:[%s412 + $0x130] sm:$0xff]
          %v2583 = vld [vmem:[%s412 + $0x138] sm:$0xff]
          %v2584 = vld [vmem:[%s412 + $0x140] sm:$0xff]
          %v2585 = vld [vmem:[%s412 + $0x148] sm:$0xff]
          %v2586 = vld [vmem:[%s412 + $0x150] sm:$0xff]
          %v2587 = vld [vmem:[%s412 + $0x158] sm:$0xff]
          %v2588 = vld [vmem:[%s412 + $0x160] sm:$0xff]
          %v2589 = vld [vmem:[%s412 + $0x168] sm:$0xff]
          %v2590 = vld [vmem:[%s412 + $0x170] sm:$0xff]
          %v2591 = vld [vmem:[%s412 + $0x178] sm:$0xff]
          %v2592 = vld [vmem:[%s412 + $0x180] sm:$0xff]
          %v2593 = vld [vmem:[%s412 + $0x188] sm:$0xff]
          %v2594 = vld [vmem:[%s412 + $0x190] sm:$0xff]
          %v2595 = vld [vmem:[%s412 + $0x198] sm:$0xff]
          %v2596 = vld [vmem:[%s412 + $0x1a0] sm:$0xff]
          %v2597 = vld [vmem:[%s412 + $0x1a8] sm:$0xff]
          %v2598 = vld [vmem:[%s412 + $0x1b0] sm:$0xff]
          %v2599 = vld [vmem:[%s412 + $0x1b8] sm:$0xff]
          %v2600 = vld [vmem:[%s412 + $0x1c0] sm:$0xff]
          %v2601 = vld [vmem:[%s412 + $0x1c8] sm:$0xff]
          %v2602 = vld [vmem:[%s412 + $0x1d0] sm:$0xff]
          %v2603 = vld [vmem:[%s412 + $0x1d8] sm:$0xff]
          %v2604 = vld [vmem:[%s412 + $0x1e0] sm:$0xff]
          %v2605 = vld [vmem:[%s412 + $0x1e8] sm:$0xff]
          %v2606 = vld [vmem:[%s412 + $0x1f0] sm:$0xff]
          %v2607 = vld [vmem:[%s412 + $0x1f8] sm:$0xff]
          %v2608 = vld [vmem:[%s488] sm:$0xff]
          %v2609 = vld [vmem:[%s488 + $0x8] sm:$0xff]
          %v2612 = vlaneseq
          %v2613 = vshrl.u32 %v2612, 7
          %v2614 = vsub.s32 0, %v2613
          %v2615 = vrot.slane %v2608, %v2614
          %v2616 = vlaneseq
          %v2617 = vshrl.u32 %v2616, 7
          %v2618 = vsub.s32 1, %v2617
          %v2619 = vrot.slane %v2608, %v2618
          %v2620 = vlaneseq
          %v2621 = vshrl.u32 %v2620, 7
          %v2622 = vsub.s32 2, %v2621
          %v2623 = vrot.slane %v2608, %v2622
          %v2624 = vlaneseq
          %v2625 = vshrl.u32 %v2624, 7
          %v2626 = vsub.s32 3, %v2625
          %v2627 = vrot.slane %v2608, %v2626
          %v2628 = vlaneseq
          %v2629 = vshrl.u32 %v2628, 7
          %v2630 = vsub.s32 4, %v2629
          %v2631 = vrot.slane %v2608, %v2630
          %v2632 = vlaneseq
          %v2633 = vshrl.u32 %v2632, 7
          %v2634 = vsub.s32 5, %v2633
          %v2635 = vrot.slane %v2608, %v2634
          %v2636 = vlaneseq
          %v2637 = vshrl.u32 %v2636, 7
          %v2638 = vsub.s32 6, %v2637
          %v2639 = vrot.slane %v2608, %v2638
          %v2640 = vlaneseq
          %v2641 = vshrl.u32 %v2640, 7
          %v2642 = vsub.s32 7, %v2641
          %v2643 = vrot.slane %v2608, %v2642
          %v2644 = vlaneseq
          %v2645 = vshrl.u32 %v2644, 7
          %v2646 = vsub.s32 0, %v2645
          %v2647 = vrot.slane %v2609, %v2646
          %v2648 = vlaneseq
          %v2649 = vshrl.u32 %v2648, 7
          %v2650 = vsub.s32 1, %v2649
          %v2651 = vrot.slane %v2609, %v2650
          %v2652 = vlaneseq
          %v2653 = vshrl.u32 %v2652, 7
          %v2654 = vsub.s32 2, %v2653
          %v2655 = vrot.slane %v2609, %v2654
          %v2656 = vlaneseq
          %v2657 = vshrl.u32 %v2656, 7
          %v2658 = vsub.s32 3, %v2657
          %v2659 = vrot.slane %v2609, %v2658
          %v2660 = vlaneseq
          %v2661 = vshrl.u32 %v2660, 7
          %v2662 = vsub.s32 4, %v2661
          %v2663 = vrot.slane %v2609, %v2662
          %v2664 = vlaneseq
          %v2665 = vshrl.u32 %v2664, 7
          %v2666 = vsub.s32 5, %v2665
          %v2667 = vrot.slane %v2609, %v2666
          %v2668 = vlaneseq
          %v2669 = vshrl.u32 %v2668, 7
          %v2670 = vsub.s32 6, %v2669
          %v2671 = vrot.slane %v2609, %v2670
          %v2672 = vlaneseq
          %v2673 = vshrl.u32 %v2672, 7
          %v2674 = vsub.s32 7, %v2673
          %v2675 = vrot.slane %v2609, %v2674
          %v2756 = vunpack.c.l.b16 %v2544
          %v2757 = vunpack.c.h.b16 %v2544
          %v2758 = vunpack.c.l.b16 %v2545
          %v2759 = vunpack.c.h.b16 %v2545
          %v2760 = vunpack.c.l.b16 %v2546
          %v2761 = vunpack.c.h.b16 %v2546
          %v2762 = vunpack.c.l.b16 %v2547
          %v2763 = vunpack.c.h.b16 %v2547
          %v2764 = vunpack.c.l.b16 %v2548
          %v2765 = vunpack.c.h.b16 %v2548
          %v2766 = vunpack.c.l.b16 %v2549
          %v2767 = vunpack.c.h.b16 %v2549
          %v2768 = vunpack.c.l.b16 %v2550
          %v2769 = vunpack.c.h.b16 %v2550
          %v2770 = vunpack.c.l.b16 %v2551
          %v2771 = vunpack.c.h.b16 %v2551
          %v2772 = vunpack.c.l.b16 %v2552
          %v2773 = vunpack.c.h.b16 %v2552
          %v2774 = vunpack.c.l.b16 %v2553
          %v2775 = vunpack.c.h.b16 %v2553
          %v2776 = vunpack.c.l.b16 %v2554
          %v2777 = vunpack.c.h.b16 %v2554
          %v2778 = vunpack.c.l.b16 %v2555
          %v2779 = vunpack.c.h.b16 %v2555
          %v2780 = vunpack.c.l.b16 %v2556
          %v2781 = vunpack.c.h.b16 %v2556
          %v2782 = vunpack.c.l.b16 %v2557
          %v2783 = vunpack.c.h.b16 %v2557
          %v2784 = vunpack.c.l.b16 %v2558
          %v2785 = vunpack.c.h.b16 %v2558
          %v2786 = vunpack.c.l.b16 %v2559
          %v2787 = vunpack.c.h.b16 %v2559
          %v2788 = vunpack.c.l.b16 %v2560
          %v2789 = vunpack.c.h.b16 %v2560
          %v2790 = vunpack.c.l.b16 %v2561
          %v2791 = vunpack.c.h.b16 %v2561
          %v2792 = vunpack.c.l.b16 %v2562
          %v2793 = vunpack.c.h.b16 %v2562
          %v2794 = vunpack.c.l.b16 %v2563
          %v2795 = vunpack.c.h.b16 %v2563
          %v2796 = vunpack.c.l.b16 %v2564
          %v2797 = vunpack.c.h.b16 %v2564
          %v2798 = vunpack.c.l.b16 %v2565
          %v2799 = vunpack.c.h.b16 %v2565
          %v2800 = vunpack.c.l.b16 %v2566
          %v2801 = vunpack.c.h.b16 %v2566
          %v2802 = vunpack.c.l.b16 %v2567
          %v2803 = vunpack.c.h.b16 %v2567
          %v2804 = vunpack.c.l.b16 %v2568
          %v2805 = vunpack.c.h.b16 %v2568
          %v2806 = vunpack.c.l.b16 %v2569
          %v2807 = vunpack.c.h.b16 %v2569
          %v2808 = vunpack.c.l.b16 %v2570
          %v2809 = vunpack.c.h.b16 %v2570
          %v2810 = vunpack.c.l.b16 %v2571
          %v2811 = vunpack.c.h.b16 %v2571
          %v2812 = vunpack.c.l.b16 %v2572
          %v2813 = vunpack.c.h.b16 %v2572
          %v2814 = vunpack.c.l.b16 %v2573
          %v2815 = vunpack.c.h.b16 %v2573
          %v2816 = vunpack.c.l.b16 %v2574
          %v2817 = vunpack.c.h.b16 %v2574
          %v2818 = vunpack.c.l.b16 %v2575
          %v2819 = vunpack.c.h.b16 %v2575
          %v2820 = vunpack.c.l.b16 %v2576
          %v2821 = vunpack.c.h.b16 %v2576
          %v2822 = vunpack.c.l.b16 %v2577
          %v2823 = vunpack.c.h.b16 %v2577
          %v2824 = vunpack.c.l.b16 %v2578
          %v2825 = vunpack.c.h.b16 %v2578
          %v2826 = vunpack.c.l.b16 %v2579
          %v2827 = vunpack.c.h.b16 %v2579
          %v2828 = vunpack.c.l.b16 %v2580
          %v2829 = vunpack.c.h.b16 %v2580
          %v2830 = vunpack.c.l.b16 %v2581
          %v2831 = vunpack.c.h.b16 %v2581
          %v2832 = vunpack.c.l.b16 %v2582
          %v2833 = vunpack.c.h.b16 %v2582
          %v2834 = vunpack.c.l.b16 %v2583
          %v2835 = vunpack.c.h.b16 %v2583
          %v2836 = vunpack.c.l.b16 %v2584
          %v2837 = vunpack.c.h.b16 %v2584
          %v2838 = vunpack.c.l.b16 %v2585
          %v2839 = vunpack.c.h.b16 %v2585
          %v2840 = vunpack.c.l.b16 %v2586
          %v2841 = vunpack.c.h.b16 %v2586
          %v2842 = vunpack.c.l.b16 %v2587
          %v2843 = vunpack.c.h.b16 %v2587
          %v2844 = vunpack.c.l.b16 %v2588
          %v2845 = vunpack.c.h.b16 %v2588
          %v2846 = vunpack.c.l.b16 %v2589
          %v2847 = vunpack.c.h.b16 %v2589
          %v2848 = vunpack.c.l.b16 %v2590
          %v2849 = vunpack.c.h.b16 %v2590
          %v2850 = vunpack.c.l.b16 %v2591
          %v2851 = vunpack.c.h.b16 %v2591
          %v2852 = vunpack.c.l.b16 %v2592
          %v2853 = vunpack.c.h.b16 %v2592
          %v2854 = vunpack.c.l.b16 %v2593
          %v2855 = vunpack.c.h.b16 %v2593
          %v2856 = vunpack.c.l.b16 %v2594
          %v2857 = vunpack.c.h.b16 %v2594
          %v2858 = vunpack.c.l.b16 %v2595
          %v2859 = vunpack.c.h.b16 %v2595
          %v2860 = vunpack.c.l.b16 %v2596
          %v2861 = vunpack.c.h.b16 %v2596
          %v2862 = vunpack.c.l.b16 %v2597
          %v2863 = vunpack.c.h.b16 %v2597
          %v2864 = vunpack.c.l.b16 %v2598
          %v2865 = vunpack.c.h.b16 %v2598
          %v2866 = vunpack.c.l.b16 %v2599
          %v2867 = vunpack.c.h.b16 %v2599
          %v2868 = vunpack.c.l.b16 %v2600
          %v2869 = vunpack.c.h.b16 %v2600
          %v2870 = vunpack.c.l.b16 %v2601
          %v2871 = vunpack.c.h.b16 %v2601
          %v2872 = vunpack.c.l.b16 %v2602
          %v2873 = vunpack.c.h.b16 %v2602
          %v2874 = vunpack.c.l.b16 %v2603
          %v2875 = vunpack.c.h.b16 %v2603
          %v2876 = vunpack.c.l.b16 %v2604
          %v2877 = vunpack.c.h.b16 %v2604
          %v2878 = vunpack.c.l.b16 %v2605
          %v2879 = vunpack.c.h.b16 %v2605
          %v2880 = vunpack.c.l.b16 %v2606
          %v2881 = vunpack.c.h.b16 %v2606
          %v2882 = vunpack.c.l.b16 %v2607
          %v2883 = vunpack.c.h.b16 %v2607
          %v2884 = vpack.c.b16 %v2772, %v2756
          %v2885 = vpack.c.b16 %v2773, %v2757
          %v2886 = vpack.c.b16 %v2774, %v2758
          %v2887 = vpack.c.b16 %v2775, %v2759
          %v2888 = vpack.c.b16 %v2776, %v2760
          %v2889 = vpack.c.b16 %v2777, %v2761
          %v2890 = vpack.c.b16 %v2778, %v2762
          %v2891 = vpack.c.b16 %v2779, %v2763
          %v2892 = vpack.c.b16 %v2780, %v2764
          %v2893 = vpack.c.b16 %v2781, %v2765
          %v2894 = vpack.c.b16 %v2782, %v2766
          %v2895 = vpack.c.b16 %v2783, %v2767
          %v2896 = vpack.c.b16 %v2784, %v2768
          %v2897 = vpack.c.b16 %v2785, %v2769
          %v2898 = vpack.c.b16 %v2786, %v2770
          %v2899 = vpack.c.b16 %v2787, %v2771
          %v2900 = vpack.c.b16 %v2804, %v2788
          %v2901 = vpack.c.b16 %v2805, %v2789
          %v2902 = vpack.c.b16 %v2806, %v2790
          %v2903 = vpack.c.b16 %v2807, %v2791
          %v2904 = vpack.c.b16 %v2808, %v2792
          %v2905 = vpack.c.b16 %v2809, %v2793
          %v2906 = vpack.c.b16 %v2810, %v2794
          %v2907 = vpack.c.b16 %v2811, %v2795
          %v2908 = vpack.c.b16 %v2812, %v2796
          %v2909 = vpack.c.b16 %v2813, %v2797
          %v2910 = vpack.c.b16 %v2814, %v2798
          %v2911 = vpack.c.b16 %v2815, %v2799
          %v2912 = vpack.c.b16 %v2816, %v2800
          %v2913 = vpack.c.b16 %v2817, %v2801
          %v2914 = vpack.c.b16 %v2818, %v2802
          %v2915 = vpack.c.b16 %v2819, %v2803
          %v2916 = vpack.c.b16 %v2836, %v2820
          %v2917 = vpack.c.b16 %v2837, %v2821
          %v2918 = vpack.c.b16 %v2838, %v2822
          %v2919 = vpack.c.b16 %v2839, %v2823
          %v2920 = vpack.c.b16 %v2840, %v2824
          %v2921 = vpack.c.b16 %v2841, %v2825
          %v2922 = vpack.c.b16 %v2842, %v2826
          %v2923 = vpack.c.b16 %v2843, %v2827
          %v2924 = vpack.c.b16 %v2844, %v2828
          %v2925 = vpack.c.b16 %v2845, %v2829
          %v2926 = vpack.c.b16 %v2846, %v2830
          %v2927 = vpack.c.b16 %v2847, %v2831
          %v2928 = vpack.c.b16 %v2848, %v2832
          %v2929 = vpack.c.b16 %v2849, %v2833
          %v2930 = vpack.c.b16 %v2850, %v2834
          %v2931 = vpack.c.b16 %v2851, %v2835
          %v2932 = vpack.c.b16 %v2868, %v2852
          %v2933 = vpack.c.b16 %v2869, %v2853
          %v2934 = vpack.c.b16 %v2870, %v2854
          %v2935 = vpack.c.b16 %v2871, %v2855
          %v2936 = vpack.c.b16 %v2872, %v2856
          %v2937 = vpack.c.b16 %v2873, %v2857
          %v2938 = vpack.c.b16 %v2874, %v2858
          %v2939 = vpack.c.b16 %v2875, %v2859
          %v2940 = vpack.c.b16 %v2876, %v2860
          %v2941 = vpack.c.b16 %v2877, %v2861
          %v2942 = vpack.c.b16 %v2878, %v2862
          %v2943 = vpack.c.b16 %v2879, %v2863
          %v2944 = vpack.c.b16 %v2880, %v2864
          %v2945 = vpack.c.b16 %v2881, %v2865
          %v2946 = vpack.c.b16 %v2882, %v2866
          %v2947 = vpack.c.b16 %v2883, %v2867
          %vm3012 = vcmask 523264
          %v3014 = vsel %vm3012, %v2540, 0
          %v3017 = vsel %vm3012, %v2541, 0
          %v3020 = vsel %vm3012, %v2542, 0
          %v3023 = vsel %vm3012, %v2543, 0
          %3025 = vmatprep.subr.bf16.mxu0 %v2885
          %3026 = vmatpush1.bf16.msra.mxu0 %v2884
          %3027 = vmatprep.subr.bf16.mxu0 %v2901
          %3028 = vmatpush1.bf16.msra.mxu0 %v2900
          %3029 = vmatprep.subr.bf16.mxu0 %v2917
          %3030 = vmatpush1.bf16.msra.mxu0 %v2916
          %3031 = vmatprep.subr.bf16.mxu0 %v2933
          %3032 = vmatpush1.bf16.msra.mxu0 %v2932
          %3033 = vmatprep.subr.bf16.mxu0 0
          %3034 = vmatpush1.bf16.msra.mxu0 0
          %3035 = vmatprep.subr.bf16.mxu0 0
          %3036 = vmatpush1.bf16.msra.mxu0 0
          %3037 = vmatprep.subr.bf16.mxu0 0
          %3038 = vmatpush1.bf16.msra.mxu0 0
          %3039 = vmatprep.subr.bf16.mxu0 0
          %3040 = vmatpush1.bf16.msra.mxu0 0
          %3041 = vmatprep.subr.bf16.mxu0 0
          %3042 = vmatpush1.bf16.msra.mxu0 0
          %3043 = vmatprep.subr.bf16.mxu0 0
          %3044 = vmatpush1.bf16.msra.mxu0 0
          %3045 = vmatprep.subr.bf16.mxu0 0
          %3046 = vmatpush1.bf16.msra.mxu0 0
          %3047 = vmatprep.subr.bf16.mxu0 0
          %3048 = vmatpush1.bf16.msra.mxu0 0
          %3049 = vmatprep.subr.bf16.mxu0 0
          %3050 = vmatpush1.bf16.msra.mxu0 0
          %3051 = vmatprep.subr.bf16.mxu0 0
          %3052 = vmatpush1.bf16.msra.mxu0 0
          %3053 = vmatprep.subr.bf16.mxu0 0
          %3054 = vmatpush1.bf16.msra.mxu0 0
          %3055 = vmatprep.subr.bf16.mxu0 0
          %3056 = vmatpush1.bf16.msra.mxu0 0
          %3057 = vmatprep.mubr.bf16.mxu0 0
          %3058 = vmatmul.mubr.bf16.gmra.mrb[0].mxu0 %v3014
          %v3059 = vpop.f32.mrb[0].mxu0
          %v3060 = vadd.f32 %v2615, %v3059
          %v3061 = vpop.f32.mrb[0].mxu0
          %v3062 = vadd.f32 %v2619, %v3061
          %v3063 = vpop.f32.mrb[0].mxu0
          %v3064 = vadd.f32 %v2615, %v3063
          %v3065 = vpop.f32.mrb[0].mxu0
          %v3066 = vadd.f32 %v2619, %v3065
          %3067 = vmatprep.mubr.bf16.mxu0 0
          %3068 = vmatmul.mubr.bf16.gmra.mrb[0].mxu0 %v3017
          %v3069 = vpop.f32.mrb[0].mxu0
          %v3070 = vadd.f32 %v2615, %v3069
          %v3071 = vpop.f32.mrb[0].mxu0
          %v3072 = vadd.f32 %v2619, %v3071
          %v3073 = vpop.f32.mrb[0].mxu0
          %v3074 = vadd.f32 %v2615, %v3073
          %v3075 = vpop.f32.mrb[0].mxu0
          %v3076 = vadd.f32 %v2619, %v3075
          %3077 = vmatprep.mubr.bf16.mxu0 0
          %3078 = vmatmul.mubr.bf16.gmra.mrb[0].mxu0 %v3020
          %v3079 = vpop.f32.mrb[0].mxu0
          %v3080 = vadd.f32 %v2615, %v3079
          %v3081 = vpop.f32.mrb[0].mxu0
          %v3082 = vadd.f32 %v2619, %v3081
          %v3083 = vpop.f32.mrb[0].mxu0
          %v3084 = vadd.f32 %v2615, %v3083
          %v3085 = vpop.f32.mrb[0].mxu0
          %v3086 = vadd.f32 %v2619, %v3085
          %3087 = vmatprep.mubr.bf16.mxu0 0
          %3088 = vmatmul.mubr.bf16.gmra.mrb[0].mxu0 %v3023
          %v3089 = vpop.f32.mrb[0].mxu0
          %v3090 = vadd.f32 %v2615, %v3089
          %v3091 = vpop.f32.mrb[0].mxu0
          %v3092 = vadd.f32 %v2619, %v3091
          %v3093 = vpop.f32.mrb[0].mxu0
          %v3094 = vadd.f32 %v2615, %v3093
          %v3095 = vpop.f32.mrb[0].mxu0
          %v3096 = vadd.f32 %v2619, %v3095
          %3097 = vdwg.mxu0
          %3098 = vmatprep.subr.bf16.mxu0 %v2887
          %3099 = vmatpush1.bf16.msra.mxu0 %v2886
          %3100 = vmatprep.subr.bf16.mxu0 %v2903
          %3101 = vmatpush1.bf16.msra.mxu0 %v2902
          %3102 = vmatprep.subr.bf16.mxu0 %v2919
          %3103 = vmatpush1.bf16.msra.mxu0 %v2918
          %3104 = vmatprep.subr.bf16.mxu0 %v2935
          %3105 = vmatpush1.bf16.msra.mxu0 %v2934
          %3106 = vmatprep.subr.bf16.mxu0 0
          %3107 = vmatpush1.bf16.msra.mxu0 0
          %3108 = vmatprep.subr.bf16.mxu0 0
          %3109 = vmatpush1.bf16.msra.mxu0 0
          %3110 = vmatprep.subr.bf16.mxu0 0
          %3111 = vmatpush1.bf16.msra.mxu0 0
          %3112 = vmatprep.subr.bf16.mxu0 0
          %3113 = vmatpush1.bf16.msra.mxu0 0
          %3114 = vmatprep.subr.bf16.mxu0 0
          %3115 = vmatpush1.bf16.msra.mxu0 0
          %3116 = vmatprep.subr.bf16.mxu0 0
          %3117 = vmatpush1.bf16.msra.mxu0 0
          %3118 = vmatprep.subr.bf16.mxu0 0
          %3119 = vmatpush1.bf16.msra.mxu0 0
          %3120 = vmatprep.subr.bf16.mxu0 0
          %3121 = vmatpush1.bf16.msra.mxu0 0
          %3122 = vmatprep.subr.bf16.mxu0 0
          %3123 = vmatpush1.bf16.msra.mxu0 0
          %3124 = vmatprep.subr.bf16.mxu0 0
          %3125 = vmatpush1.bf16.msra.mxu0 0
          %3126 = vmatprep.subr.bf16.mxu0 0
          %3127 = vmatpush1.bf16.msra.mxu0 0
          %3128 = vmatprep.subr.bf16.mxu0 0
          %3129 = vmatpush1.bf16.msra.mxu0 0
          %3130 = vmatprep.mubr.bf16.mxu0 0
          %3131 = vmatmul.mubr.bf16.gmra.mrb[0].mxu0 %v3014
          %v3132 = vpop.f32.mrb[0].mxu0
          %v3133 = vadd.f32 %v2623, %v3132
          %v3134 = vpop.f32.mrb[0].mxu0
          %v3135 = vadd.f32 %v2627, %v3134
          %v3136 = vpop.f32.mrb[0].mxu0
          %v3137 = vadd.f32 %v2623, %v3136
          %v3138 = vpop.f32.mrb[0].mxu0
          %v3139 = vadd.f32 %v2627, %v3138
          %3140 = vmatprep.mubr.bf16.mxu0 0
          %3141 = vmatmul.mubr.bf16.gmra.mrb[0].mxu0 %v3017
          %v3142 = vpop.f32.mrb[0].mxu0
          %v3143 = vadd.f32 %v2623, %v3142
          %v3144 = vpop.f32.mrb[0].mxu0
          %v3145 = vadd.f32 %v2627, %v3144
          %v3146 = vpop.f32.mrb[0].mxu0
          %v3147 = vadd.f32 %v2623, %v3146
          %v3148 = vpop.f32.mrb[0].mxu0
          %v3149 = vadd.f32 %v2627, %v3148
          %3150 = vmatprep.mubr.bf16.mxu0 0
          %3151 = vmatmul.mubr.bf16.gmra.mrb[0].mxu0 %v3020
          %v3152 = vpop.f32.mrb[0].mxu0
          %v3153 = vadd.f32 %v2623, %v3152
          %v3154 = vpop.f32.mrb[0].mxu0
          %v3155 = vadd.f32 %v2627, %v3154
          %v3156 = vpop.f32.mrb[0].mxu0
          %v3157 = vadd.f32 %v2623, %v3156
          %v3158 = vpop.f32.mrb[0].mxu0
          %v3159 = vadd.f32 %v2627, %v3158
          %3160 = vmatprep.mubr.bf16.mxu0 0
          %3161 = vmatmul.mubr.bf16.gmra.mrb[0].mxu0 %v3023
          %v3162 = vpop.f32.mrb[0].mxu0
          %v3163 = vadd.f32 %v2623, %v3162
          %v3164 = vpop.f32.mrb[0].mxu0
          %v3165 = vadd.f32 %v2627, %v3164
          %v3166 = vpop.f32.mrb[0].mxu0
          %v3167 = vadd.f32 %v2623, %v3166
          %v3168 = vpop.f32.mrb[0].mxu0
          %v3169 = vadd.f32 %v2627, %v3168
          %3170 = vdwg.mxu0
          %3171 = vmatprep.subr.bf16.mxu0 %v2889
          %3172 = vmatpush1.bf16.msra.mxu0 %v2888
          %3173 = vmatprep.subr.bf16.mxu0 %v2905
          %3174 = vmatpush1.bf16.msra.mxu0 %v2904
          %3175 = vmatprep.subr.bf16.mxu0 %v2921
          %3176 = vmatpush1.bf16.msra.mxu0 %v2920
          %3177 = vmatprep.subr.bf16.mxu0 %v2937
          %3178 = vmatpush1.bf16.msra.mxu0 %v2936
          %3179 = vmatprep.subr.bf16.mxu0 0
          %3180 = vmatpush1.bf16.msra.mxu0 0
          %3181 = vmatprep.subr.bf16.mxu0 0
          %3182 = vmatpush1.bf16.msra.mxu0 0
          %3183 = vmatprep.subr.bf16.mxu0 0
          %3184 = vmatpush1.bf16.msra.mxu0 0
          %3185 = vmatprep.subr.bf16.mxu0 0
          %3186 = vmatpush1.bf16.msra.mxu0 0
          %3187 = vmatprep.subr.bf16.mxu0 0
          %3188 = vmatpush1.bf16.msra.mxu0 0
          %3189 = vmatprep.subr.bf16.mxu0 0
          %3190 = vmatpush1.bf16.msra.mxu0 0
          %3191 = vmatprep.subr.bf16.mxu0 0
          %3192 = vmatpush1.bf16.msra.mxu0 0
          %3193 = vmatprep.subr.bf16.mxu0 0
          %3194 = vmatpush1.bf16.msra.mxu0 0
          %3195 = vmatprep.subr.bf16.mxu0 0
          %3196 = vmatpush1.bf16.msra.mxu0 0
          %3197 = vmatprep.subr.bf16.mxu0 0
          %3198 = vmatpush1.bf16.msra.mxu0 0
          %3199 = vmatprep.subr.bf16.mxu0 0
          %3200 = vmatpush1.bf16.msra.mxu0 0
          %3201 = vmatprep.subr.bf16.mxu0 0
          %3202 = vmatpush1.bf16.msra.mxu0 0
          %3203 = vmatprep.mubr.bf16.mxu0 0
          %3204 = vmatmul.mubr.bf16.gmra.mrb[0].mxu0 %v3014
          %v3205 = vpop.f32.mrb[0].mxu0
          %v3206 = vadd.f32 %v2631, %v3205
          %v3207 = vpop.f32.mrb[0].mxu0
          %v3208 = vadd.f32 %v2635, %v3207
          %v3209 = vpop.f32.mrb[0].mxu0
          %v3210 = vadd.f32 %v2631, %v3209
          %v3211 = vpop.f32.mrb[0].mxu0
          %v3212 = vadd.f32 %v2635, %v3211
          %3213 = vmatprep.mubr.bf16.mxu0 0
          %3214 = vmatmul.mubr.bf16.gmra.mrb[0].mxu0 %v3017
          %v3215 = vpop.f32.mrb[0].mxu0
          %v3216 = vadd.f32 %v2631, %v3215
          %v3217 = vpop.f32.mrb[0].mxu0
          %v3218 = vadd.f32 %v2635, %v3217
          %v3219 = vpop.f32.mrb[0].mxu0
          %v3220 = vadd.f32 %v2631, %v3219
          %v3221 = vpop.f32.mrb[0].mxu0
          %v3222 = vadd.f32 %v2635, %v3221
          %3223 = vmatprep.mubr.bf16.mxu0 0
          %3224 = vmatmul.mubr.bf16.gmra.mrb[0].mxu0 %v3020
          %v3225 = vpop.f32.mrb[0].mxu0
          %v3226 = vadd.f32 %v2631, %v3225
          %v3227 = vpop.f32.mrb[0].mxu0
          %v3228 = vadd.f32 %v2635, %v3227
          %v3229 = vpop.f32.mrb[0].mxu0
          %v3230 = vadd.f32 %v2631, %v3229
          %v3231 = vpop.f32.mrb[0].mxu0
          %v3232 = vadd.f32 %v2635, %v3231
          %3233 = vmatprep.mubr.bf16.mxu0 0
          %3234 = vmatmul.mubr.bf16.gmra.mrb[0].mxu0 %v3023
          %v3235 = vpop.f32.mrb[0].mxu0
          %v3236 = vadd.f32 %v2631, %v3235
          %v3237 = vpop.f32.mrb[0].mxu0
          %v3238 = vadd.f32 %v2635, %v3237
          %v3239 = vpop.f32.mrb[0].mxu0
          %v3240 = vadd.f32 %v2631, %v3239
          %v3241 = vpop.f32.mrb[0].mxu0
          %v3242 = vadd.f32 %v2635, %v3241
          %3243 = vdwg.mxu0
          %3244 = vmatprep.subr.bf16.mxu0 %v2891
          %3245 = vmatpush1.bf16.msra.mxu0 %v2890
          %3246 = vmatprep.subr.bf16.mxu0 %v2907
          %3247 = vmatpush1.bf16.msra.mxu0 %v2906
          %3248 = vmatprep.subr.bf16.mxu0 %v2923
          %3249 = vmatpush1.bf16.msra.mxu0 %v2922
          %3250 = vmatprep.subr.bf16.mxu0 %v2939
          %3251 = vmatpush1.bf16.msra.mxu0 %v2938
          %3252 = vmatprep.subr.bf16.mxu0 0
          %3253 = vmatpush1.bf16.msra.mxu0 0
          %3254 = vmatprep.subr.bf16.mxu0 0
          %3255 = vmatpush1.bf16.msra.mxu0 0
          %3256 = vmatprep.subr.bf16.mxu0 0
          %3257 = vmatpush1.bf16.msra.mxu0 0
          %3258 = vmatprep.subr.bf16.mxu0 0
          %3259 = vmatpush1.bf16.msra.mxu0 0
          %3260 = vmatprep.subr.bf16.mxu0 0
          %3261 = vmatpush1.bf16.msra.mxu0 0
          %3262 = vmatprep.subr.bf16.mxu0 0
          %3263 = vmatpush1.bf16.msra.mxu0 0
          %3264 = vmatprep.subr.bf16.mxu0 0
          %3265 = vmatpush1.bf16.msra.mxu0 0
          %3266 = vmatprep.subr.bf16.mxu0 0
          %3267 = vmatpush1.bf16.msra.mxu0 0
          %3268 = vmatprep.subr.bf16.mxu0 0
          %3269 = vmatpush1.bf16.msra.mxu0 0
          %3270 = vmatprep.subr.bf16.mxu0 0
          %3271 = vmatpush1.bf16.msra.mxu0 0
          %3272 = vmatprep.subr.bf16.mxu0 0
          %3273 = vmatpush1.bf16.msra.mxu0 0
          %3274 = vmatprep.subr.bf16.mxu0 0
          %3275 = vmatpush1.bf16.msra.mxu0 0
          %3276 = vmatprep.mubr.bf16.mxu0 0
          %3277 = vmatmul.mubr.bf16.gmra.mrb[0].mxu0 %v3014
          %v3278 = vpop.f32.mrb[0].mxu0
          %v3279 = vadd.f32 %v2639, %v3278
          %v3280 = vpop.f32.mrb[0].mxu0
          %v3281 = vadd.f32 %v2643, %v3280
          %v3282 = vpop.f32.mrb[0].mxu0
          %v3283 = vadd.f32 %v2639, %v3282
          %v3284 = vpop.f32.mrb[0].mxu0
          %v3285 = vadd.f32 %v2643, %v3284
          %3286 = vmatprep.mubr.bf16.mxu0 0
          %3287 = vmatmul.mubr.bf16.gmra.mrb[0].mxu0 %v3017
          %v3288 = vpop.f32.mrb[0].mxu0
          %v3289 = vadd.f32 %v2639, %v3288
          %v3290 = vpop.f32.mrb[0].mxu0
          %v3291 = vadd.f32 %v2643, %v3290
          %v3292 = vpop.f32.mrb[0].mxu0
          %v3293 = vadd.f32 %v2639, %v3292
          %v3294 = vpop.f32.mrb[0].mxu0
          %v3295 = vadd.f32 %v2643, %v3294
          %3296 = vmatprep.mubr.bf16.mxu0 0
          %3297 = vmatmul.mubr.bf16.gmra.mrb[0].mxu0 %v3020
          %v3298 = vpop.f32.mrb[0].mxu0
          %v3299 = vadd.f32 %v2639, %v3298
          %v3300 = vpop.f32.mrb[0].mxu0
          %v3301 = vadd.f32 %v2643, %v3300
          %v3302 = vpop.f32.mrb[0].mxu0
          %v3303 = vadd.f32 %v2639, %v3302
          %v3304 = vpop.f32.mrb[0].mxu0
          %v3305 = vadd.f32 %v2643, %v3304
          %3306 = vmatprep.mubr.bf16.mxu0 0
          %3307 = vmatmul.mubr.bf16.gmra.mrb[0].mxu0 %v3023
          %v3308 = vpop.f32.mrb[0].mxu0
          %v3309 = vadd.f32 %v2639, %v3308
          %v3310 = vpop.f32.mrb[0].mxu0
          %v3311 = vadd.f32 %v2643, %v3310
          %v3312 = vpop.f32.mrb[0].mxu0
          %v3313 = vadd.f32 %v2639, %v3312
          %v3314 = vpop.f32.mrb[0].mxu0
          %v3315 = vadd.f32 %v2643, %v3314
          %3316 = vdwg.mxu0
          %3317 = vmatprep.subr.bf16.mxu0 %v2893
          %3318 = vmatpush1.bf16.msra.mxu0 %v2892
          %3319 = vmatprep.subr.bf16.mxu0 %v2909
          %3320 = vmatpush1.bf16.msra.mxu0 %v2908
          %3321 = vmatprep.subr.bf16.mxu0 %v2925
          %3322 = vmatpush1.bf16.msra.mxu0 %v2924
          %3323 = vmatprep.subr.bf16.mxu0 %v2941
          %3324 = vmatpush1.bf16.msra.mxu0 %v2940
          %3325 = vmatprep.subr.bf16.mxu0 0
          %3326 = vmatpush1.bf16.msra.mxu0 0
          %3327 = vmatprep.subr.bf16.mxu0 0
          %3328 = vmatpush1.bf16.msra.mxu0 0
          %3329 = vmatprep.subr.bf16.mxu0 0
          %3330 = vmatpush1.bf16.msra.mxu0 0
          %3331 = vmatprep.subr.bf16.mxu0 0
          %3332 = vmatpush1.bf16.msra.mxu0 0
          %3333 = vmatprep.subr.bf16.mxu0 0
          %3334 = vmatpush1.bf16.msra.mxu0 0
          %3335 = vmatprep.subr.bf16.mxu0 0
          %3336 = vmatpush1.bf16.msra.mxu0 0
          %3337 = vmatprep.subr.bf16.mxu0 0
          %3338 = vmatpush1.bf16.msra.mxu0 0
          %3339 = vmatprep.subr.bf16.mxu0 0
          %3340 = vmatpush1.bf16.msra.mxu0 0
          %3341 = vmatprep.subr.bf16.mxu0 0
          %3342 = vmatpush1.bf16.msra.mxu0 0
          %3343 = vmatprep.subr.bf16.mxu0 0
          %3344 = vmatpush1.bf16.msra.mxu0 0
          %3345 = vmatprep.subr.bf16.mxu0 0
          %3346 = vmatpush1.bf16.msra.mxu0 0
          %3347 = vmatprep.subr.bf16.mxu0 0
          %3348 = vmatpush1.bf16.msra.mxu0 0
          %3349 = vmatprep.mubr.bf16.mxu0 0
          %3350 = vmatmul.mubr.bf16.gmra.mrb[0].mxu0 %v3014
          %v3351 = vpop.f32.mrb[0].mxu0
          %v3352 = vadd.f32 %v2647, %v3351
          %v3353 = vpop.f32.mrb[0].mxu0
          %v3354 = vadd.f32 %v2651, %v3353
          %v3355 = vpop.f32.mrb[0].mxu0
          %v3356 = vadd.f32 %v2647, %v3355
          %v3357 = vpop.f32.mrb[0].mxu0
          %v3358 = vadd.f32 %v2651, %v3357
          %3359 = vmatprep.mubr.bf16.mxu0 0
          %3360 = vmatmul.mubr.bf16.gmra.mrb[0].mxu0 %v3017
          %v3361 = vpop.f32.mrb[0].mxu0
          %v3362 = vadd.f32 %v2647, %v3361
          %v3363 = vpop.f32.mrb[0].mxu0
          %v3364 = vadd.f32 %v2651, %v3363
          %v3365 = vpop.f32.mrb[0].mxu0
          %v3366 = vadd.f32 %v2647, %v3365
          %v3367 = vpop.f32.mrb[0].mxu0
          %v3368 = vadd.f32 %v2651, %v3367
          %3369 = vmatprep.mubr.bf16.mxu0 0
          %3370 = vmatmul.mubr.bf16.gmra.mrb[0].mxu0 %v3020
          %v3371 = vpop.f32.mrb[0].mxu0
          %v3372 = vadd.f32 %v2647, %v3371
          %v3373 = vpop.f32.mrb[0].mxu0
          %v3374 = vadd.f32 %v2651, %v3373
          %v3375 = vpop.f32.mrb[0].mxu0
          %v3376 = vadd.f32 %v2647, %v3375
          %v3377 = vpop.f32.mrb[0].mxu0
          %v3378 = vadd.f32 %v2651, %v3377
          %3379 = vmatprep.mubr.bf16.mxu0 0
          %3380 = vmatmul.mubr.bf16.gmra.mrb[0].mxu0 %v3023
          %v3381 = vpop.f32.mrb[0].mxu0
          %v3382 = vadd.f32 %v2647, %v3381
          %v3383 = vpop.f32.mrb[0].mxu0
          %v3384 = vadd.f32 %v2651, %v3383
          %v3385 = vpop.f32.mrb[0].mxu0
          %v3386 = vadd.f32 %v2647, %v3385
          %v3387 = vpop.f32.mrb[0].mxu0
          %v3388 = vadd.f32 %v2651, %v3387
          %3389 = vdwg.mxu0
          %3390 = vmatprep.subr.bf16.mxu0 %v2895
          %3391 = vmatpush1.bf16.msra.mxu0 %v2894
          %3392 = vmatprep.subr.bf16.mxu0 %v2911
          %3393 = vmatpush1.bf16.msra.mxu0 %v2910
          %3394 = vmatprep.subr.bf16.mxu0 %v2927
          %3395 = vmatpush1.bf16.msra.mxu0 %v2926
          %3396 = vmatprep.subr.bf16.mxu0 %v2943
          %3397 = vmatpush1.bf16.msra.mxu0 %v2942
          %3398 = vmatprep.subr.bf16.mxu0 0
          %3399 = vmatpush1.bf16.msra.mxu0 0
          %3400 = vmatprep.subr.bf16.mxu0 0
          %3401 = vmatpush1.bf16.msra.mxu0 0
          %3402 = vmatprep.subr.bf16.mxu0 0
          %3403 = vmatpush1.bf16.msra.mxu0 0
          %3404 = vmatprep.subr.bf16.mxu0 0
          %3405 = vmatpush1.bf16.msra.mxu0 0
          %3406 = vmatprep.subr.bf16.mxu0 0
          %3407 = vmatpush1.bf16.msra.mxu0 0
          %3408 = vmatprep.subr.bf16.mxu0 0
          %3409 = vmatpush1.bf16.msra.mxu0 0
          %3410 = vmatprep.subr.bf16.mxu0 0
          %3411 = vmatpush1.bf16.msra.mxu0 0
          %3412 = vmatprep.subr.bf16.mxu0 0
          %3413 = vmatpush1.bf16.msra.mxu0 0
          %3414 = vmatprep.subr.bf16.mxu0 0
          %3415 = vmatpush1.bf16.msra.mxu0 0
          %3416 = vmatprep.subr.bf16.mxu0 0
          %3417 = vmatpush1.bf16.msra.mxu0 0
          %3418 = vmatprep.subr.bf16.mxu0 0
          %3419 = vmatpush1.bf16.msra.mxu0 0
          %3420 = vmatprep.subr.bf16.mxu0 0
          %3421 = vmatpush1.bf16.msra.mxu0 0
          %3422 = vmatprep.mubr.bf16.mxu0 0
          %3423 = vmatmul.mubr.bf16.gmra.mrb[0].mxu0 %v3014
          %v3424 = vpop.f32.mrb[0].mxu0
          %v3425 = vadd.f32 %v2655, %v3424
          %v3426 = vpop.f32.mrb[0].mxu0
          %v3427 = vadd.f32 %v2659, %v3426
          %v3428 = vpop.f32.mrb[0].mxu0
          %v3429 = vadd.f32 %v2655, %v3428
          %v3430 = vpop.f32.mrb[0].mxu0
          %v3431 = vadd.f32 %v2659, %v3430
          %3432 = vmatprep.mubr.bf16.mxu0 0
          %3433 = vmatmul.mubr.bf16.gmra.mrb[0].mxu0 %v3017
          %v3434 = vpop.f32.mrb[0].mxu0
          %v3435 = vadd.f32 %v2655, %v3434
          %v3436 = vpop.f32.mrb[0].mxu0
          %v3437 = vadd.f32 %v2659, %v3436
          %v3438 = vpop.f32.mrb[0].mxu0
          %v3439 = vadd.f32 %v2655, %v3438
          %v3440 = vpop.f32.mrb[0].mxu0
          %v3441 = vadd.f32 %v2659, %v3440
          %3442 = vmatprep.mubr.bf16.mxu0 0
          %3443 = vmatmul.mubr.bf16.gmra.mrb[0].mxu0 %v3020
          %v3444 = vpop.f32.mrb[0].mxu0
          %v3445 = vadd.f32 %v2655, %v3444
          %v3446 = vpop.f32.mrb[0].mxu0
          %v3447 = vadd.f32 %v2659, %v3446
          %v3448 = vpop.f32.mrb[0].mxu0
          %v3449 = vadd.f32 %v2655, %v3448
          %v3450 = vpop.f32.mrb[0].mxu0
          %v3451 = vadd.f32 %v2659, %v3450
          %3452 = vmatprep.mubr.bf16.mxu0 0
          %3453 = vmatmul.mubr.bf16.gmra.mrb[0].mxu0 %v3023
          %v3454 = vpop.f32.mrb[0].mxu0
          %v3455 = vadd.f32 %v2655, %v3454
          %v3456 = vpop.f32.mrb[0].mxu0
          %v3457 = vadd.f32 %v2659, %v3456
          %v3458 = vpop.f32.mrb[0].mxu0
          %v3459 = vadd.f32 %v2655, %v3458
          %v3460 = vpop.f32.mrb[0].mxu0
          %v3461 = vadd.f32 %v2659, %v3460
          %3462 = vdwg.mxu0
          %3463 = vmatprep.subr.bf16.mxu0 %v2897
          %3464 = vmatpush1.bf16.msra.mxu0 %v2896
          %3465 = vmatprep.subr.bf16.mxu0 %v2913
          %3466 = vmatpush1.bf16.msra.mxu0 %v2912
          %3467 = vmatprep.subr.bf16.mxu0 %v2929
          %3468 = vmatpush1.bf16.msra.mxu0 %v2928
          %3469 = vmatprep.subr.bf16.mxu0 %v2945
          %3470 = vmatpush1.bf16.msra.mxu0 %v2944
          %3471 = vmatprep.subr.bf16.mxu0 0
          %3472 = vmatpush1.bf16.msra.mxu0 0
          %3473 = vmatprep.subr.bf16.mxu0 0
          %3474 = vmatpush1.bf16.msra.mxu0 0
          %3475 = vmatprep.subr.bf16.mxu0 0
          %3476 = vmatpush1.bf16.msra.mxu0 0
          %3477 = vmatprep.subr.bf16.mxu0 0
          %3478 = vmatpush1.bf16.msra.mxu0 0
          %3479 = vmatprep.subr.bf16.mxu0 0
          %3480 = vmatpush1.bf16.msra.mxu0 0
          %3481 = vmatprep.subr.bf16.mxu0 0
          %3482 = vmatpush1.bf16.msra.mxu0 0
          %3483 = vmatprep.subr.bf16.mxu0 0
          %3484 = vmatpush1.bf16.msra.mxu0 0
          %3485 = vmatprep.subr.bf16.mxu0 0
          %3486 = vmatpush1.bf16.msra.mxu0 0
          %3487 = vmatprep.subr.bf16.mxu0 0
          %3488 = vmatpush1.bf16.msra.mxu0 0
          %3489 = vmatprep.subr.bf16.mxu0 0
          %3490 = vmatpush1.bf16.msra.mxu0 0
          %3491 = vmatprep.subr.bf16.mxu0 0
          %3492 = vmatpush1.bf16.msra.mxu0 0
          %3493 = vmatprep.subr.bf16.mxu0 0
          %3494 = vmatpush1.bf16.msra.mxu0 0
          %3495 = vmatprep.mubr.bf16.mxu0 0
          %3496 = vmatmul.mubr.bf16.gmra.mrb[0].mxu0 %v3014
          %v3497 = vpop.f32.mrb[0].mxu0
          %v3498 = vadd.f32 %v2663, %v3497
          %v3499 = vpop.f32.mrb[0].mxu0
          %v3500 = vadd.f32 %v2667, %v3499
          %v3501 = vpop.f32.mrb[0].mxu0
          %v3502 = vadd.f32 %v2663, %v3501
          %v3503 = vpop.f32.mrb[0].mxu0
          %v3504 = vadd.f32 %v2667, %v3503
          %3505 = vmatprep.mubr.bf16.mxu0 0
          %3506 = vmatmul.mubr.bf16.gmra.mrb[0].mxu0 %v3017
          %v3507 = vpop.f32.mrb[0].mxu0
          %v3508 = vadd.f32 %v2663, %v3507
          %v3509 = vpop.f32.mrb[0].mxu0
          %v3510 = vadd.f32 %v2667, %v3509
          %v3511 = vpop.f32.mrb[0].mxu0
          %v3512 = vadd.f32 %v2663, %v3511
          %v3513 = vpop.f32.mrb[0].mxu0
          %v3514 = vadd.f32 %v2667, %v3513
          %3515 = vmatprep.mubr.bf16.mxu0 0
          %3516 = vmatmul.mubr.bf16.gmra.mrb[0].mxu0 %v3020
          %v3517 = vpop.f32.mrb[0].mxu0
          %v3518 = vadd.f32 %v2663, %v3517
          %v3519 = vpop.f32.mrb[0].mxu0
          %v3520 = vadd.f32 %v2667, %v3519
          %v3521 = vpop.f32.mrb[0].mxu0
          %v3522 = vadd.f32 %v2663, %v3521
          %v3523 = vpop.f32.mrb[0].mxu0
          %v3524 = vadd.f32 %v2667, %v3523
          %3525 = vmatprep.mubr.bf16.mxu0 0
          %3526 = vmatmul.mubr.bf16.gmra.mrb[0].mxu0 %v3023
          %v3527 = vpop.f32.mrb[0].mxu0
          %v3528 = vadd.f32 %v2663, %v3527
          %v3529 = vpop.f32.mrb[0].mxu0
          %v3530 = vadd.f32 %v2667, %v3529
          %v3531 = vpop.f32.mrb[0].mxu0
          %v3532 = vadd.f32 %v2663, %v3531
          %v3533 = vpop.f32.mrb[0].mxu0
          %v3534 = vadd.f32 %v2667, %v3533
          %3535 = vdwg.mxu0
          %3536 = vmatprep.subr.bf16.mxu0 %v2899
          %3537 = vmatpush1.bf16.msra.mxu0 %v2898
          %3538 = vmatprep.subr.bf16.mxu0 %v2915
          %3539 = vmatpush1.bf16.msra.mxu0 %v2914
          %3540 = vmatprep.subr.bf16.mxu0 %v2931
          %3541 = vmatpush1.bf16.msra.mxu0 %v2930
          %3542 = vmatprep.subr.bf16.mxu0 %v2947
          %3543 = vmatpush1.bf16.msra.mxu0 %v2946
          %3544 = vmatprep.subr.bf16.mxu0 0
          %3545 = vmatpush1.bf16.msra.mxu0 0
          %3546 = vmatprep.subr.bf16.mxu0 0
          %3547 = vmatpush1.bf16.msra.mxu0 0
          %3548 = vmatprep.subr.bf16.mxu0 0
          %3549 = vmatpush1.bf16.msra.mxu0 0
          %3550 = vmatprep.subr.bf16.mxu0 0
          %3551 = vmatpush1.bf16.msra.mxu0 0
          %3552 = vmatprep.subr.bf16.mxu0 0
          %3553 = vmatpush1.bf16.msra.mxu0 0
          %3554 = vmatprep.subr.bf16.mxu0 0
          %3555 = vmatpush1.bf16.msra.mxu0 0
          %3556 = vmatprep.subr.bf16.mxu0 0
          %3557 = vmatpush1.bf16.msra.mxu0 0
          %3558 = vmatprep.subr.bf16.mxu0 0
          %3559 = vmatpush1.bf16.msra.mxu0 0
          %3560 = vmatprep.subr.bf16.mxu0 0
          %3561 = vmatpush1.bf16.msra.mxu0 0
          %3562 = vmatprep.subr.bf16.mxu0 0
          %3563 = vmatpush1.bf16.msra.mxu0 0
          %3564 = vmatprep.subr.bf16.mxu0 0
          %3565 = vmatpush1.bf16.msra.mxu0 0
          %3566 = vmatprep.subr.bf16.mxu0 0
          %3567 = vmatpush1.bf16.msra.mxu0 0
          %3568 = vmatprep.mubr.bf16.mxu0 0
          %3569 = vmatmul.mubr.bf16.gmra.mrb[0].mxu0 %v3014
          %v3570 = vpop.f32.mrb[0].mxu0
          %v3571 = vadd.f32 %v2671, %v3570
          %v3572 = vpop.f32.mrb[0].mxu0
          %v3573 = vadd.f32 %v2675, %v3572
          %v3574 = vpop.f32.mrb[0].mxu0
          %v3575 = vadd.f32 %v2671, %v3574
          %v3576 = vpop.f32.mrb[0].mxu0
          %v3577 = vadd.f32 %v2675, %v3576
          %3578 = vmatprep.mubr.bf16.mxu0 0
          %3579 = vmatmul.mubr.bf16.gmra.mrb[0].mxu0 %v3017
          %v3580 = vpop.f32.mrb[0].mxu0
          %v3581 = vadd.f32 %v2671, %v3580
          %v3582 = vpop.f32.mrb[0].mxu0
          %v3583 = vadd.f32 %v2675, %v3582
          %v3584 = vpop.f32.mrb[0].mxu0
          %v3585 = vadd.f32 %v2671, %v3584
          %v3586 = vpop.f32.mrb[0].mxu0
          %v3587 = vadd.f32 %v2675, %v3586
          %3588 = vmatprep.mubr.bf16.mxu0 0
          %3589 = vmatmul.mubr.bf16.gmra.mrb[0].mxu0 %v3020
          %v3590 = vpop.f32.mrb[0].mxu0
          %v3591 = vadd.f32 %v2671, %v3590
          %v3592 = vpop.f32.mrb[0].mxu0
          %v3593 = vadd.f32 %v2675, %v3592
          %v3594 = vpop.f32.mrb[0].mxu0
          %v3595 = vadd.f32 %v2671, %v3594
          %v3596 = vpop.f32.mrb[0].mxu0
          %v3597 = vadd.f32 %v2675, %v3596
          %3598 = vmatprep.mubr.bf16.mxu0 0
          %3599 = vmatmul.mubr.bf16.gmra.mrb[0].mxu0 %v3023
          %v3600 = vpop.f32.mrb[0].mxu0
          %v3601 = vadd.f32 %v2671, %v3600
          %v3602 = vpop.f32.mrb[0].mxu0
          %v3603 = vadd.f32 %v2675, %v3602
          %v3604 = vpop.f32.mrb[0].mxu0
          %v3605 = vadd.f32 %v2671, %v3604
          %v3606 = vpop.f32.mrb[0].mxu0
          %v3607 = vadd.f32 %v2675, %v3606
          %3608 = vdwg.mxu0
          %v3609 = vsub.f32 0.0, %v3060
          %v3610 = vsub.f32 0.0, %v3062
          %v3611 = vsub.f32 0.0, %v3133
          %v3612 = vsub.f32 0.0, %v3135
          %v3613 = vsub.f32 0.0, %v3206
          %v3614 = vsub.f32 0.0, %v3208
          %v3615 = vsub.f32 0.0, %v3279
          %v3616 = vsub.f32 0.0, %v3281
          %v3617 = vsub.f32 0.0, %v3352
          %v3618 = vsub.f32 0.0, %v3354
          %v3619 = vsub.f32 0.0, %v3425
          %v3620 = vsub.f32 0.0, %v3427
          %v3621 = vsub.f32 0.0, %v3498
          %v3622 = vsub.f32 0.0, %v3500
          %v3623 = vsub.f32 0.0, %v3571
          %v3624 = vsub.f32 0.0, %v3573
          %v3625 = vsub.f32 0.0, %v3064
          %v3626 = vsub.f32 0.0, %v3066
          %v3627 = vsub.f32 0.0, %v3137
          %v3628 = vsub.f32 0.0, %v3139
          %v3629 = vsub.f32 0.0, %v3210
          %v3630 = vsub.f32 0.0, %v3212
          %v3631 = vsub.f32 0.0, %v3283
          %v3632 = vsub.f32 0.0, %v3285
          %v3633 = vsub.f32 0.0, %v3356
          %v3634 = vsub.f32 0.0, %v3358
          %v3635 = vsub.f32 0.0, %v3429
          %v3636 = vsub.f32 0.0, %v3431
          %v3637 = vsub.f32 0.0, %v3502
          %v3638 = vsub.f32 0.0, %v3504
          %v3639 = vsub.f32 0.0, %v3575
          %v3640 = vsub.f32 0.0, %v3577
          %v3641 = vsub.f32 0.0, %v3070
          %v3642 = vsub.f32 0.0, %v3072
          %v3643 = vsub.f32 0.0, %v3143
          %v3644 = vsub.f32 0.0, %v3145
          %v3645 = vsub.f32 0.0, %v3216
          %v3646 = vsub.f32 0.0, %v3218
          %v3647 = vsub.f32 0.0, %v3289
          %v3648 = vsub.f32 0.0, %v3291
          %v3649 = vsub.f32 0.0, %v3362
          %v3650 = vsub.f32 0.0, %v3364
          %v3651 = vsub.f32 0.0, %v3435
          %v3652 = vsub.f32 0.0, %v3437
          %v3653 = vsub.f32 0.0, %v3508
          %v3654 = vsub.f32 0.0, %v3510
          %v3655 = vsub.f32 0.0, %v3581
          %v3656 = vsub.f32 0.0, %v3583
          %v3657 = vsub.f32 0.0, %v3074
          %v3658 = vsub.f32 0.0, %v3076
          %v3659 = vsub.f32 0.0, %v3147
          %v3660 = vsub.f32 0.0, %v3149
          %v3661 = vsub.f32 0.0, %v3220
          %v3662 = vsub.f32 0.0, %v3222
          %v3663 = vsub.f32 0.0, %v3293
          %v3664 = vsub.f32 0.0, %v3295
          %v3665 = vsub.f32 0.0, %v3366
          %v3666 = vsub.f32 0.0, %v3368
          %v3667 = vsub.f32 0.0, %v3439
          %v3668 = vsub.f32 0.0, %v3441
          %v3669 = vsub.f32 0.0, %v3512
          %v3670 = vsub.f32 0.0, %v3514
          %v3671 = vsub.f32 0.0, %v3585
          %v3672 = vsub.f32 0.0, %v3587
          %v3673 = vsub.f32 0.0, %v3080
          %v3674 = vsub.f32 0.0, %v3082
          %v3675 = vsub.f32 0.0, %v3153
          %v3676 = vsub.f32 0.0, %v3155
          %v3677 = vsub.f32 0.0, %v3226
          %v3678 = vsub.f32 0.0, %v3228
          %v3679 = vsub.f32 0.0, %v3299
          %v3680 = vsub.f32 0.0, %v3301
          %v3681 = vsub.f32 0.0, %v3372
          %v3682 = vsub.f32 0.0, %v3374
          %v3683 = vsub.f32 0.0, %v3445
          %v3684 = vsub.f32 0.0, %v3447
          %v3685 = vsub.f32 0.0, %v3518
          %v3686 = vsub.f32 0.0, %v3520
          %v3687 = vsub.f32 0.0, %v3591
          %v3688 = vsub.f32 0.0, %v3593
          %v3689 = vsub.f32 0.0, %v3084
          %v3690 = vsub.f32 0.0, %v3086
          %v3691 = vsub.f32 0.0, %v3157
          %v3692 = vsub.f32 0.0, %v3159
          %v3693 = vsub.f32 0.0, %v3230
          %v3694 = vsub.f32 0.0, %v3232
          %v3695 = vsub.f32 0.0, %v3303
          %v3696 = vsub.f32 0.0, %v3305
          %v3697 = vsub.f32 0.0, %v3376
          %v3698 = vsub.f32 0.0, %v3378
          %v3699 = vsub.f32 0.0, %v3449
          %v3700 = vsub.f32 0.0, %v3451
          %v3701 = vsub.f32 0.0, %v3522
          %v3702 = vsub.f32 0.0, %v3524
          %v3703 = vsub.f32 0.0, %v3595
          %v3704 = vsub.f32 0.0, %v3597
          %v3705 = vsub.f32 0.0, %v3090
          %v3706 = vsub.f32 0.0, %v3092
          %v3707 = vsub.f32 0.0, %v3163
          %v3708 = vsub.f32 0.0, %v3165
          %v3709 = vsub.f32 0.0, %v3236
          %v3710 = vsub.f32 0.0, %v3238
          %v3711 = vsub.f32 0.0, %v3309
          %v3712 = vsub.f32 0.0, %v3311
          %v3713 = vsub.f32 0.0, %v3382
          %v3714 = vsub.f32 0.0, %v3384
          %v3715 = vsub.f32 0.0, %v3455
          %v3716 = vsub.f32 0.0, %v3457
          %v3717 = vsub.f32 0.0, %v3528
          %v3718 = vsub.f32 0.0, %v3530
          %v3719 = vsub.f32 0.0, %v3601
          %v3720 = vsub.f32 0.0, %v3603
          %v3721 = vsub.f32 0.0, %v3094
          %v3722 = vsub.f32 0.0, %v3096
          %v3723 = vsub.f32 0.0, %v3167
          %v3724 = vsub.f32 0.0, %v3169
          %v3725 = vsub.f32 0.0, %v3240
          %v3726 = vsub.f32 0.0, %v3242
          %v3727 = vsub.f32 0.0, %v3313
          %v3728 = vsub.f32 0.0, %v3315
          %v3729 = vsub.f32 0.0, %v3386
          %v3730 = vsub.f32 0.0, %v3388
          %v3731 = vsub.f32 0.0, %v3459
          %v3732 = vsub.f32 0.0, %v3461
          %v3733 = vsub.f32 0.0, %v3532
          %v3734 = vsub.f32 0.0, %v3534
          %v3735 = vsub.f32 0.0, %v3605
          %v3736 = vsub.f32 0.0, %v3607
          %v3737 = vmul.f32 %v3609, 1.442695
          %v3738 = vpow.pop %v3737
          %v3739 = vmul.f32 %v3610, 1.442695
          %v3740 = vpow.pop %v3739
          %v3741 = vmul.f32 %v3611, 1.442695
          %v3742 = vpow.pop %v3741
          %v3743 = vmul.f32 %v3612, 1.442695
          %v3744 = vpow.pop %v3743
          %v3745 = vmul.f32 %v3613, 1.442695
          %v3746 = vpow.pop %v3745
          %v3747 = vmul.f32 %v3614, 1.442695
          %v3748 = vpow.pop %v3747
          %v3749 = vmul.f32 %v3615, 1.442695
          %v3750 = vpow.pop %v3749
          %v3751 = vmul.f32 %v3616, 1.442695
          %v3752 = vpow.pop %v3751
          %v3753 = vmul.f32 %v3617, 1.442695
          %v3754 = vpow.pop %v3753
          %v3755 = vmul.f32 %v3618, 1.442695
          %v3756 = vpow.pop %v3755
          %v3757 = vmul.f32 %v3619, 1.442695
          %v3758 = vpow.pop %v3757
          %v3759 = vmul.f32 %v3620, 1.442695
          %v3760 = vpow.pop %v3759
          %v3761 = vmul.f32 %v3621, 1.442695
          %v3762 = vpow.pop %v3761
          %v3763 = vmul.f32 %v3622, 1.442695
          %v3764 = vpow.pop %v3763
          %v3765 = vmul.f32 %v3623, 1.442695
          %v3766 = vpow.pop %v3765
          %v3767 = vmul.f32 %v3624, 1.442695
          %v3768 = vpow.pop %v3767
          %v3769 = vmul.f32 %v3625, 1.442695
          %v3770 = vpow.pop %v3769
          %v3771 = vmul.f32 %v3626, 1.442695
          %v3772 = vpow.pop %v3771
          %v3773 = vmul.f32 %v3627, 1.442695
          %v3774 = vpow.pop %v3773
          %v3775 = vmul.f32 %v3628, 1.442695
          %v3776 = vpow.pop %v3775
          %v3777 = vmul.f32 %v3629, 1.442695
          %v3778 = vpow.pop %v3777
          %v3779 = vmul.f32 %v3630, 1.442695
          %v3780 = vpow.pop %v3779
          %v3781 = vmul.f32 %v3631, 1.442695
          %v3782 = vpow.pop %v3781
          %v3783 = vmul.f32 %v3632, 1.442695
          %v3784 = vpow.pop %v3783
          %v3785 = vmul.f32 %v3633, 1.442695
          %v3786 = vpow.pop %v3785
          %v3787 = vmul.f32 %v3634, 1.442695
          %v3788 = vpow.pop %v3787
          %v3789 = vmul.f32 %v3635, 1.442695
          %v3790 = vpow.pop %v3789
          %v3791 = vmul.f32 %v3636, 1.442695
          %v3792 = vpow.pop %v3791
          %v3793 = vmul.f32 %v3637, 1.442695
          %v3794 = vpow.pop %v3793
          %v3795 = vmul.f32 %v3638, 1.442695
          %v3796 = vpow.pop %v3795
          %v3797 = vmul.f32 %v3639, 1.442695
          %v3798 = vpow.pop %v3797
          %v3799 = vmul.f32 %v3640, 1.442695
          %v3800 = vpow.pop %v3799
          %v3801 = vmul.f32 %v3641, 1.442695
          %v3802 = vpow.pop %v3801
          %v3803 = vmul.f32 %v3642, 1.442695
          %v3804 = vpow.pop %v3803
          %v3805 = vmul.f32 %v3643, 1.442695
          %v3806 = vpow.pop %v3805
          %v3807 = vmul.f32 %v3644, 1.442695
          %v3808 = vpow.pop %v3807
          %v3809 = vmul.f32 %v3645, 1.442695
          %v3810 = vpow.pop %v3809
          %v3811 = vmul.f32 %v3646, 1.442695
          %v3812 = vpow.pop %v3811
          %v3813 = vmul.f32 %v3647, 1.442695
          %v3814 = vpow.pop %v3813
          %v3815 = vmul.f32 %v3648, 1.442695
          %v3816 = vpow.pop %v3815
          %v3817 = vmul.f32 %v3649, 1.442695
          %v3818 = vpow.pop %v3817
          %v3819 = vmul.f32 %v3650, 1.442695
          %v3820 = vpow.pop %v3819
          %v3821 = vmul.f32 %v3651, 1.442695
          %v3822 = vpow.pop %v3821
          %v3823 = vmul.f32 %v3652, 1.442695
          %v3824 = vpow.pop %v3823
          %v3825 = vmul.f32 %v3653, 1.442695
          %v3826 = vpow.pop %v3825
          %v3827 = vmul.f32 %v3654, 1.442695
          %v3828 = vpow.pop %v3827
          %v3829 = vmul.f32 %v3655, 1.442695
          %v3830 = vpow.pop %v3829
          %v3831 = vmul.f32 %v3656, 1.442695
          %v3832 = vpow.pop %v3831
          %v3833 = vmul.f32 %v3657, 1.442695
          %v3834 = vpow.pop %v3833
          %v3835 = vmul.f32 %v3658, 1.442695
          %v3836 = vpow.pop %v3835
          %v3837 = vmul.f32 %v3659, 1.442695
          %v3838 = vpow.pop %v3837
          %v3839 = vmul.f32 %v3660, 1.442695
          %v3840 = vpow.pop %v3839
          %v3841 = vmul.f32 %v3661, 1.442695
          %v3842 = vpow.pop %v3841
          %v3843 = vmul.f32 %v3662, 1.442695
          %v3844 = vpow.pop %v3843
          %v3845 = vmul.f32 %v3663, 1.442695
          %v3846 = vpow.pop %v3845
          %v3847 = vmul.f32 %v3664, 1.442695
          %v3848 = vpow.pop %v3847
          %v3849 = vmul.f32 %v3665, 1.442695
          %v3850 = vpow.pop %v3849
          %v3851 = vmul.f32 %v3666, 1.442695
          %v3852 = vpow.pop %v3851
          %v3853 = vmul.f32 %v3667, 1.442695
          %v3854 = vpow.pop %v3853
          %v3855 = vmul.f32 %v3668, 1.442695
          %v3856 = vpow.pop %v3855
          %v3857 = vmul.f32 %v3669, 1.442695
          %v3858 = vpow.pop %v3857
          %v3859 = vmul.f32 %v3670, 1.442695
          %v3860 = vpow.pop %v3859
          %v3861 = vmul.f32 %v3671, 1.442695
          %v3862 = vpow.pop %v3861
          %v3863 = vmul.f32 %v3672, 1.442695
          %v3864 = vpow.pop %v3863
          %v3865 = vmul.f32 %v3673, 1.442695
          %v3866 = vpow.pop %v3865
          %v3867 = vmul.f32 %v3674, 1.442695
          %v3868 = vpow.pop %v3867
          %v3869 = vmul.f32 %v3675, 1.442695
          %v3870 = vpow.pop %v3869
          %v3871 = vmul.f32 %v3676, 1.442695
          %v3872 = vpow.pop %v3871
          %v3873 = vmul.f32 %v3677, 1.442695
          %v3874 = vpow.pop %v3873
          %v3875 = vmul.f32 %v3678, 1.442695
          %v3876 = vpow.pop %v3875
          %v3877 = vmul.f32 %v3679, 1.442695
          %v3878 = vpow.pop %v3877
          %v3879 = vmul.f32 %v3680, 1.442695
          %v3880 = vpow.pop %v3879
          %v3881 = vmul.f32 %v3681, 1.442695
          %v3882 = vpow.pop %v3881
          %v3883 = vmul.f32 %v3682, 1.442695
          %v3884 = vpow.pop %v3883
          %v3885 = vmul.f32 %v3683, 1.442695
          %v3886 = vpow.pop %v3885
          %v3887 = vmul.f32 %v3684, 1.442695
          %v3888 = vpow.pop %v3887
          %v3889 = vmul.f32 %v3685, 1.442695
          %v3890 = vpow.pop %v3889
          %v3891 = vmul.f32 %v3686, 1.442695
          %v3892 = vpow.pop %v3891
          %v3893 = vmul.f32 %v3687, 1.442695
          %v3894 = vpow.pop %v3893
          %v3895 = vmul.f32 %v3688, 1.442695
          %v3896 = vpow.pop %v3895
          %v3897 = vmul.f32 %v3689, 1.442695
          %v3898 = vpow.pop %v3897
          %v3899 = vmul.f32 %v3690, 1.442695
          %v3900 = vpow.pop %v3899
          %v3901 = vmul.f32 %v3691, 1.442695
          %v3902 = vpow.pop %v3901
          %v3903 = vmul.f32 %v3692, 1.442695
          %v3904 = vpow.pop %v3903
          %v3905 = vmul.f32 %v3693, 1.442695
          %v3906 = vpow.pop %v3905
          %v3907 = vmul.f32 %v3694, 1.442695
          %v3908 = vpow.pop %v3907
          %v3909 = vmul.f32 %v3695, 1.442695
          %v3910 = vpow.pop %v3909
          %v3911 = vmul.f32 %v3696, 1.442695
          %v3912 = vpow.pop %v3911
          %v3913 = vmul.f32 %v3697, 1.442695
          %v3914 = vpow.pop %v3913
          %v3915 = vmul.f32 %v3698, 1.442695
          %v3916 = vpow.pop %v3915
          %v3917 = vmul.f32 %v3699, 1.442695
          %v3918 = vpow.pop %v3917
          %v3919 = vmul.f32 %v3700, 1.442695
          %v3920 = vpow.pop %v3919
          %v3921 = vmul.f32 %v3701, 1.442695
          %v3922 = vpow.pop %v3921
          %v3923 = vmul.f32 %v3702, 1.442695
          %v3924 = vpow.pop %v3923
          %v3925 = vmul.f32 %v3703, 1.442695
          %v3926 = vpow.pop %v3925
          %v3927 = vmul.f32 %v3704, 1.442695
          %v3928 = vpow.pop %v3927
          %v3929 = vmul.f32 %v3705, 1.442695
          %v3930 = vpow.pop %v3929
          %v3931 = vmul.f32 %v3706, 1.442695
          %v3932 = vpow.pop %v3931
          %v3933 = vmul.f32 %v3707, 1.442695
          %v3934 = vpow.pop %v3933
          %v3935 = vmul.f32 %v3708, 1.442695
          %v3936 = vpow.pop %v3935
          %v3937 = vmul.f32 %v3709, 1.442695
          %v3938 = vpow.pop %v3937
          %v3939 = vmul.f32 %v3710, 1.442695
          %v3940 = vpow.pop %v3939
          %v3941 = vmul.f32 %v3711, 1.442695
          %v3942 = vpow.pop %v3941
          %v3943 = vmul.f32 %v3712, 1.442695
          %v3944 = vpow.pop %v3943
          %v3945 = vmul.f32 %v3713, 1.442695
          %v3946 = vpow.pop %v3945
          %v3947 = vmul.f32 %v3714, 1.442695
          %v3948 = vpow.pop %v3947
          %v3949 = vmul.f32 %v3715, 1.442695
          %v3950 = vpow.pop %v3949
          %v3951 = vmul.f32 %v3716, 1.442695
          %v3952 = vpow.pop %v3951
          %v3953 = vmul.f32 %v3717, 1.442695
          %v3954 = vpow.pop %v3953
          %v3955 = vmul.f32 %v3718, 1.442695
          %v3956 = vpow.pop %v3955
          %v3957 = vmul.f32 %v3719, 1.442695
          %v3958 = vpow.pop %v3957
          %v3959 = vmul.f32 %v3720, 1.442695
          %v3960 = vpow.pop %v3959
          %v3961 = vmul.f32 %v3721, 1.442695
          %v3962 = vpow.pop %v3961
          %v3963 = vmul.f32 %v3722, 1.442695
          %v3964 = vpow.pop %v3963
          %v3965 = vmul.f32 %v3723, 1.442695
          %v3966 = vpow.pop %v3965
          %v3967 = vmul.f32 %v3724, 1.442695
          %v3968 = vpow.pop %v3967
          %v3969 = vmul.f32 %v3725, 1.442695
          %v3970 = vpow.pop %v3969
          %v3971 = vmul.f32 %v3726, 1.442695
          %v3972 = vpow.pop %v3971
          %v3973 = vmul.f32 %v3727, 1.442695
          %v3974 = vpow.pop %v3973
          %v3975 = vmul.f32 %v3728, 1.442695
          %v3976 = vpow.pop %v3975
          %v3977 = vmul.f32 %v3729, 1.442695
          %v3978 = vpow.pop %v3977
          %v3979 = vmul.f32 %v3730, 1.442695
          %v3980 = vpow.pop %v3979
          %v3981 = vmul.f32 %v3731, 1.442695
          %v3982 = vpow.pop %v3981
          %v3983 = vmul.f32 %v3732, 1.442695
          %v3984 = vpow.pop %v3983
          %v3985 = vmul.f32 %v3733, 1.442695
          %v3986 = vpow.pop %v3985
          %v3987 = vmul.f32 %v3734, 1.442695
          %v3988 = vpow.pop %v3987
          %v3989 = vmul.f32 %v3735, 1.442695
          %v3990 = vpow.pop %v3989
          %v3991 = vmul.f32 %v3736, 1.442695
          %v3992 = vpow.pop %v3991
          %v3993 = vadd.f32 %v3738, 1.0
          %v3994 = vadd.f32 %v3740, 1.0
          %v3995 = vadd.f32 %v3742, 1.0
          %v3996 = vadd.f32 %v3744, 1.0
          %v3997 = vadd.f32 %v3746, 1.0
          %v3998 = vadd.f32 %v3748, 1.0
          %v3999 = vadd.f32 %v3750, 1.0
          %v4000 = vadd.f32 %v3752, 1.0
          %v4001 = vadd.f32 %v3754, 1.0
          %v4002 = vadd.f32 %v3756, 1.0
          %v4003 = vadd.f32 %v3758, 1.0
          %v4004 = vadd.f32 %v3760, 1.0
          %v4005 = vadd.f32 %v3762, 1.0
          %v4006 = vadd.f32 %v3764, 1.0
          %v4007 = vadd.f32 %v3766, 1.0
          %v4008 = vadd.f32 %v3768, 1.0
          %v4009 = vadd.f32 %v3770, 1.0
          %v4010 = vadd.f32 %v3772, 1.0
          %v4011 = vadd.f32 %v3774, 1.0
          %v4012 = vadd.f32 %v3776, 1.0
          %v4013 = vadd.f32 %v3778, 1.0
          %v4014 = vadd.f32 %v3780, 1.0
          %v4015 = vadd.f32 %v3782, 1.0
          %v4016 = vadd.f32 %v3784, 1.0
          %v4017 = vadd.f32 %v3786, 1.0
          %v4018 = vadd.f32 %v3788, 1.0
          %v4019 = vadd.f32 %v3790, 1.0
          %v4020 = vadd.f32 %v3792, 1.0
          %v4021 = vadd.f32 %v3794, 1.0
          %v4022 = vadd.f32 %v3796, 1.0
          %v4023 = vadd.f32 %v3798, 1.0
          %v4024 = vadd.f32 %v3800, 1.0
          %v4025 = vadd.f32 %v3802, 1.0
          %v4026 = vadd.f32 %v3804, 1.0
          %v4027 = vadd.f32 %v3806, 1.0
          %v4028 = vadd.f32 %v3808, 1.0
          %v4029 = vadd.f32 %v3810, 1.0
          %v4030 = vadd.f32 %v3812, 1.0
          %v4031 = vadd.f32 %v3814, 1.0
          %v4032 = vadd.f32 %v3816, 1.0
          %v4033 = vadd.f32 %v3818, 1.0
          %v4034 = vadd.f32 %v3820, 1.0
          %v4035 = vadd.f32 %v3822, 1.0
          %v4036 = vadd.f32 %v3824, 1.0
          %v4037 = vadd.f32 %v3826, 1.0
          %v4038 = vadd.f32 %v3828, 1.0
          %v4039 = vadd.f32 %v3830, 1.0
          %v4040 = vadd.f32 %v3832, 1.0
          %v4041 = vadd.f32 %v3834, 1.0
          %v4042 = vadd.f32 %v3836, 1.0
          %v4043 = vadd.f32 %v3838, 1.0
          %v4044 = vadd.f32 %v3840, 1.0
          %v4045 = vadd.f32 %v3842, 1.0
          %v4046 = vadd.f32 %v3844, 1.0
          %v4047 = vadd.f32 %v3846, 1.0
          %v4048 = vadd.f32 %v3848, 1.0
          %v4049 = vadd.f32 %v3850, 1.0
          %v4050 = vadd.f32 %v3852, 1.0
          %v4051 = vadd.f32 %v3854, 1.0
          %v4052 = vadd.f32 %v3856, 1.0
          %v4053 = vadd.f32 %v3858, 1.0
          %v4054 = vadd.f32 %v3860, 1.0
          %v4055 = vadd.f32 %v3862, 1.0
          %v4056 = vadd.f32 %v3864, 1.0
          %v4057 = vadd.f32 %v3866, 1.0
          %v4058 = vadd.f32 %v3868, 1.0
          %v4059 = vadd.f32 %v3870, 1.0
          %v4060 = vadd.f32 %v3872, 1.0
          %v4061 = vadd.f32 %v3874, 1.0
          %v4062 = vadd.f32 %v3876, 1.0
          %v4063 = vadd.f32 %v3878, 1.0
          %v4064 = vadd.f32 %v3880, 1.0
          %v4065 = vadd.f32 %v3882, 1.0
          %v4066 = vadd.f32 %v3884, 1.0
          %v4067 = vadd.f32 %v3886, 1.0
          %v4068 = vadd.f32 %v3888, 1.0
          %v4069 = vadd.f32 %v3890, 1.0
          %v4070 = vadd.f32 %v3892, 1.0
          %v4071 = vadd.f32 %v3894, 1.0
          %v4072 = vadd.f32 %v3896, 1.0
          %v4073 = vadd.f32 %v3898, 1.0
          %v4074 = vadd.f32 %v3900, 1.0
          %v4075 = vadd.f32 %v3902, 1.0
          %v4076 = vadd.f32 %v3904, 1.0
          %v4077 = vadd.f32 %v3906, 1.0
          %v4078 = vadd.f32 %v3908, 1.0
          %v4079 = vadd.f32 %v3910, 1.0
          %v4080 = vadd.f32 %v3912, 1.0
          %v4081 = vadd.f32 %v3914, 1.0
          %v4082 = vadd.f32 %v3916, 1.0
          %v4083 = vadd.f32 %v3918, 1.0
          %v4084 = vadd.f32 %v3920, 1.0
          %v4085 = vadd.f32 %v3922, 1.0
          %v4086 = vadd.f32 %v3924, 1.0
          %v4087 = vadd.f32 %v3926, 1.0
          %v4088 = vadd.f32 %v3928, 1.0
          %v4089 = vadd.f32 %v3930, 1.0
          %v4090 = vadd.f32 %v3932, 1.0
          %v4091 = vadd.f32 %v3934, 1.0
          %v4092 = vadd.f32 %v3936, 1.0
          %v4093 = vadd.f32 %v3938, 1.0
          %v4094 = vadd.f32 %v3940, 1.0
          %v4095 = vadd.f32 %v3942, 1.0
          %v4096 = vadd.f32 %v3944, 1.0
          %v4097 = vadd.f32 %v3946, 1.0
          %v4098 = vadd.f32 %v3948, 1.0
          %v4099 = vadd.f32 %v3950, 1.0
          %v4100 = vadd.f32 %v3952, 1.0
          %v4101 = vadd.f32 %v3954, 1.0
          %v4102 = vadd.f32 %v3956, 1.0
          %v4103 = vadd.f32 %v3958, 1.0
          %v4104 = vadd.f32 %v3960, 1.0
          %v4105 = vadd.f32 %v3962, 1.0
          %v4106 = vadd.f32 %v3964, 1.0
          %v4107 = vadd.f32 %v3966, 1.0
          %v4108 = vadd.f32 %v3968, 1.0
          %v4109 = vadd.f32 %v3970, 1.0
          %v4110 = vadd.f32 %v3972, 1.0
          %v4111 = vadd.f32 %v3974, 1.0
          %v4112 = vadd.f32 %v3976, 1.0
          %v4113 = vadd.f32 %v3978, 1.0
          %v4114 = vadd.f32 %v3980, 1.0
          %v4115 = vadd.f32 %v3982, 1.0
          %v4116 = vadd.f32 %v3984, 1.0
          %v4117 = vadd.f32 %v3986, 1.0
          %v4118 = vadd.f32 %v3988, 1.0
          %v4119 = vadd.f32 %v3990, 1.0
          %v4120 = vadd.f32 %v3992, 1.0
          %v4121 = vrcp.pop %v3993
          %v4122 = vmul.f32 1.0, %v4121
          %v4123 = vrcp.pop %v3994
          %v4124 = vmul.f32 1.0, %v4123
          %v4125 = vrcp.pop %v3995
          %v4126 = vmul.f32 1.0, %v4125
          %v4127 = vrcp.pop %v3996
          %v4128 = vmul.f32 1.0, %v4127
          %v4129 = vrcp.pop %v3997
          %v4130 = vmul.f32 1.0, %v4129
          %v4131 = vrcp.pop %v3998
          %v4132 = vmul.f32 1.0, %v4131
          %v4133 = vrcp.pop %v3999
          %v4134 = vmul.f32 1.0, %v4133
          %v4135 = vrcp.pop %v4000
          %v4136 = vmul.f32 1.0, %v4135
          %v4137 = vrcp.pop %v4001
          %v4138 = vmul.f32 1.0, %v4137
          %v4139 = vrcp.pop %v4002
          %v4140 = vmul.f32 1.0, %v4139
          %v4141 = vrcp.pop %v4003
          %v4142 = vmul.f32 1.0, %v4141
          %v4143 = vrcp.pop %v4004
          %v4144 = vmul.f32 1.0, %v4143
          %v4145 = vrcp.pop %v4005
          %v4146 = vmul.f32 1.0, %v4145
          %v4147 = vrcp.pop %v4006
          %v4148 = vmul.f32 1.0, %v4147
          %v4149 = vrcp.pop %v4007
          %v4150 = vmul.f32 1.0, %v4149
          %v4151 = vrcp.pop %v4008
          %v4152 = vmul.f32 1.0, %v4151
          %v4153 = vrcp.pop %v4009
          %v4154 = vmul.f32 1.0, %v4153
          %v4155 = vrcp.pop %v4010
          %v4156 = vmul.f32 1.0, %v4155
          %v4157 = vrcp.pop %v4011
          %v4158 = vmul.f32 1.0, %v4157
          %v4159 = vrcp.pop %v4012
          %v4160 = vmul.f32 1.0, %v4159
          %v4161 = vrcp.pop %v4013
          %v4162 = vmul.f32 1.0, %v4161
          %v4163 = vrcp.pop %v4014
          %v4164 = vmul.f32 1.0, %v4163
          %v4165 = vrcp.pop %v4015
          %v4166 = vmul.f32 1.0, %v4165
          %v4167 = vrcp.pop %v4016
          %v4168 = vmul.f32 1.0, %v4167
          %v4169 = vrcp.pop %v4017
          %v4170 = vmul.f32 1.0, %v4169
          %v4171 = vrcp.pop %v4018
          %v4172 = vmul.f32 1.0, %v4171
          %v4173 = vrcp.pop %v4019
          %v4174 = vmul.f32 1.0, %v4173
          %v4175 = vrcp.pop %v4020
          %v4176 = vmul.f32 1.0, %v4175
          %v4177 = vrcp.pop %v4021
          %v4178 = vmul.f32 1.0, %v4177
          %v4179 = vrcp.pop %v4022
          %v4180 = vmul.f32 1.0, %v4179
          %v4181 = vrcp.pop %v4023
          %v4182 = vmul.f32 1.0, %v4181
          %v4183 = vrcp.pop %v4024
          %v4184 = vmul.f32 1.0, %v4183
          %v4185 = vrcp.pop %v4025
          %v4186 = vmul.f32 1.0, %v4185
          %v4187 = vrcp.pop %v4026
          %v4188 = vmul.f32 1.0, %v4187
          %v4189 = vrcp.pop %v4027
          %v4190 = vmul.f32 1.0, %v4189
          %v4191 = vrcp.pop %v4028
          %v4192 = vmul.f32 1.0, %v4191
          %v4193 = vrcp.pop %v4029
          %v4194 = vmul.f32 1.0, %v4193
          %v4195 = vrcp.pop %v4030
          %v4196 = vmul.f32 1.0, %v4195
          %v4197 = vrcp.pop %v4031
          %v4198 = vmul.f32 1.0, %v4197
          %v4199 = vrcp.pop %v4032
          %v4200 = vmul.f32 1.0, %v4199
          %v4201 = vrcp.pop %v4033
          %v4202 = vmul.f32 1.0, %v4201
          %v4203 = vrcp.pop %v4034
          %v4204 = vmul.f32 1.0, %v4203
          %v4205 = vrcp.pop %v4035
          %v4206 = vmul.f32 1.0, %v4205
          %v4207 = vrcp.pop %v4036
          %v4208 = vmul.f32 1.0, %v4207
          %v4209 = vrcp.pop %v4037
          %v4210 = vmul.f32 1.0, %v4209
          %v4211 = vrcp.pop %v4038
          %v4212 = vmul.f32 1.0, %v4211
          %v4213 = vrcp.pop %v4039
          %v4214 = vmul.f32 1.0, %v4213
          %v4215 = vrcp.pop %v4040
          %v4216 = vmul.f32 1.0, %v4215
          %v4217 = vrcp.pop %v4041
          %v4218 = vmul.f32 1.0, %v4217
          %v4219 = vrcp.pop %v4042
          %v4220 = vmul.f32 1.0, %v4219
          %v4221 = vrcp.pop %v4043
          %v4222 = vmul.f32 1.0, %v4221
          %v4223 = vrcp.pop %v4044
          %v4224 = vmul.f32 1.0, %v4223
          %v4225 = vrcp.pop %v4045
          %v4226 = vmul.f32 1.0, %v4225
          %v4227 = vrcp.pop %v4046
          %v4228 = vmul.f32 1.0, %v4227
          %v4229 = vrcp.pop %v4047
          %v4230 = vmul.f32 1.0, %v4229
          %v4231 = vrcp.pop %v4048
          %v4232 = vmul.f32 1.0, %v4231
          %v4233 = vrcp.pop %v4049
          %v4234 = vmul.f32 1.0, %v4233
          %v4235 = vrcp.pop %v4050
          %v4236 = vmul.f32 1.0, %v4235
          %v4237 = vrcp.pop %v4051
          %v4238 = vmul.f32 1.0, %v4237
          %v4239 = vrcp.pop %v4052
          %v4240 = vmul.f32 1.0, %v4239
          %v4241 = vrcp.pop %v4053
          %v4242 = vmul.f32 1.0, %v4241
          %v4243 = vrcp.pop %v4054
          %v4244 = vmul.f32 1.0, %v4243
          %v4245 = vrcp.pop %v4055
          %v4246 = vmul.f32 1.0, %v4245
          %v4247 = vrcp.pop %v4056
          %v4248 = vmul.f32 1.0, %v4247
          %v4249 = vrcp.pop %v4057
          %v4250 = vmul.f32 1.0, %v4249
          %v4251 = vrcp.pop %v4058
          %v4252 = vmul.f32 1.0, %v4251
          %v4253 = vrcp.pop %v4059
          %v4254 = vmul.f32 1.0, %v4253
          %v4255 = vrcp.pop %v4060
          %v4256 = vmul.f32 1.0, %v4255
          %v4257 = vrcp.pop %v4061
          %v4258 = vmul.f32 1.0, %v4257
          %v4259 = vrcp.pop %v4062
          %v4260 = vmul.f32 1.0, %v4259
          %v4261 = vrcp.pop %v4063
          %v4262 = vmul.f32 1.0, %v4261
          %v4263 = vrcp.pop %v4064
          %v4264 = vmul.f32 1.0, %v4263
          %v4265 = vrcp.pop %v4065
          %v4266 = vmul.f32 1.0, %v4265
          %v4267 = vrcp.pop %v4066
          %v4268 = vmul.f32 1.0, %v4267
          %v4269 = vrcp.pop %v4067
          %v4270 = vmul.f32 1.0, %v4269
          %v4271 = vrcp.pop %v4068
          %v4272 = vmul.f32 1.0, %v4271
          %v4273 = vrcp.pop %v4069
          %v4274 = vmul.f32 1.0, %v4273
          %v4275 = vrcp.pop %v4070
          %v4276 = vmul.f32 1.0, %v4275
          %v4277 = vrcp.pop %v4071
          %v4278 = vmul.f32 1.0, %v4277
          %v4279 = vrcp.pop %v4072
          %v4280 = vmul.f32 1.0, %v4279
          %v4281 = vrcp.pop %v4073
          %v4282 = vmul.f32 1.0, %v4281
          %v4283 = vrcp.pop %v4074
          %v4284 = vmul.f32 1.0, %v4283
          %v4285 = vrcp.pop %v4075
          %v4286 = vmul.f32 1.0, %v4285
          %v4287 = vrcp.pop %v4076
          %v4288 = vmul.f32 1.0, %v4287
          %v4289 = vrcp.pop %v4077
          %v4290 = vmul.f32 1.0, %v4289
          %v4291 = vrcp.pop %v4078
          %v4292 = vmul.f32 1.0, %v4291
          %v4293 = vrcp.pop %v4079
          %v4294 = vmul.f32 1.0, %v4293
          %v4295 = vrcp.pop %v4080
          %v4296 = vmul.f32 1.0, %v4295
          %v4297 = vrcp.pop %v4081
          %v4298 = vmul.f32 1.0, %v4297
          %v4299 = vrcp.pop %v4082
          %v4300 = vmul.f32 1.0, %v4299
          %v4301 = vrcp.pop %v4083
          %v4302 = vmul.f32 1.0, %v4301
          %v4303 = vrcp.pop %v4084
          %v4304 = vmul.f32 1.0, %v4303
          %v4305 = vrcp.pop %v4085
          %v4306 = vmul.f32 1.0, %v4305
          %v4307 = vrcp.pop %v4086
          %v4308 = vmul.f32 1.0, %v4307
          %v4309 = vrcp.pop %v4087
          %v4310 = vmul.f32 1.0, %v4309
          %v4311 = vrcp.pop %v4088
          %v4312 = vmul.f32 1.0, %v4311
          %v4313 = vrcp.pop %v4089
          %v4314 = vmul.f32 1.0, %v4313
          %v4315 = vrcp.pop %v4090
          %v4316 = vmul.f32 1.0, %v4315
          %v4317 = vrcp.pop %v4091
          %v4318 = vmul.f32 1.0, %v4317
          %v4319 = vrcp.pop %v4092
          %v4320 = vmul.f32 1.0, %v4319
          %v4321 = vrcp.pop %v4093
          %v4322 = vmul.f32 1.0, %v4321
          %v4323 = vrcp.pop %v4094
          %v4324 = vmul.f32 1.0, %v4323
          %v4325 = vrcp.pop %v4095
          %v4326 = vmul.f32 1.0, %v4325
          %v4327 = vrcp.pop %v4096
          %v4328 = vmul.f32 1.0, %v4327
          %v4329 = vrcp.pop %v4097
          %v4330 = vmul.f32 1.0, %v4329
          %v4331 = vrcp.pop %v4098
          %v4332 = vmul.f32 1.0, %v4331
          %v4333 = vrcp.pop %v4099
          %v4334 = vmul.f32 1.0, %v4333
          %v4335 = vrcp.pop %v4100
          %v4336 = vmul.f32 1.0, %v4335
          %v4337 = vrcp.pop %v4101
          %v4338 = vmul.f32 1.0, %v4337
          %v4339 = vrcp.pop %v4102
          %v4340 = vmul.f32 1.0, %v4339
          %v4341 = vrcp.pop %v4103
          %v4342 = vmul.f32 1.0, %v4341
          %v4343 = vrcp.pop %v4104
          %v4344 = vmul.f32 1.0, %v4343
          %v4345 = vrcp.pop %v4105
          %v4346 = vmul.f32 1.0, %v4345
          %v4347 = vrcp.pop %v4106
          %v4348 = vmul.f32 1.0, %v4347
          %v4349 = vrcp.pop %v4107
          %v4350 = vmul.f32 1.0, %v4349
          %v4351 = vrcp.pop %v4108
          %v4352 = vmul.f32 1.0, %v4351
          %v4353 = vrcp.pop %v4109
          %v4354 = vmul.f32 1.0, %v4353
          %v4355 = vrcp.pop %v4110
          %v4356 = vmul.f32 1.0, %v4355
          %v4357 = vrcp.pop %v4111
          %v4358 = vmul.f32 1.0, %v4357
          %v4359 = vrcp.pop %v4112
          %v4360 = vmul.f32 1.0, %v4359
          %v4361 = vrcp.pop %v4113
          %v4362 = vmul.f32 1.0, %v4361
          %v4363 = vrcp.pop %v4114
          %v4364 = vmul.f32 1.0, %v4363
          %v4365 = vrcp.pop %v4115
          %v4366 = vmul.f32 1.0, %v4365
          %v4367 = vrcp.pop %v4116
          %v4368 = vmul.f32 1.0, %v4367
          %v4369 = vrcp.pop %v4117
          %v4370 = vmul.f32 1.0, %v4369
          %v4371 = vrcp.pop %v4118
          %v4372 = vmul.f32 1.0, %v4371
          %v4373 = vrcp.pop %v4119
          %v4374 = vmul.f32 1.0, %v4373
          %v4375 = vrcp.pop %v4120
          %v4376 = vmul.f32 1.0, %v4375
          %4377 = vst [vmem:[%s464] sm:$0xff] %v4122
          %4378 = vst [vmem:[%s464 + $0x8] sm:$0xff] %v4124
          %4379 = vst [vmem:[%s464 + $0x10] sm:$0xff] %v4126
          %4380 = vst [vmem:[%s464 + $0x18] sm:$0xff] %v4128
          %4381 = vst [vmem:[%s464 + $0x20] sm:$0xff] %v4130
          %4382 = vst [vmem:[%s464 + $0x28] sm:$0xff] %v4132
          %4383 = vst [vmem:[%s464 + $0x30] sm:$0xff] %v4134
          %4384 = vst [vmem:[%s464 + $0x38] sm:$0xff] %v4136
          %4385 = vst [vmem:[%s464 + $0x40] sm:$0xff] %v4138
          %4386 = vst [vmem:[%s464 + $0x48] sm:$0xff] %v4140
          %4387 = vst [vmem:[%s464 + $0x50] sm:$0xff] %v4142
          %4388 = vst [vmem:[%s464 + $0x58] sm:$0xff] %v4144
          %4389 = vst [vmem:[%s464 + $0x60] sm:$0xff] %v4146
          %4390 = vst [vmem:[%s464 + $0x68] sm:$0xff] %v4148
          %4391 = vst [vmem:[%s464 + $0x70] sm:$0xff] %v4150
          %4392 = vst [vmem:[%s464 + $0x78] sm:$0xff] %v4152
          %4393 = vst [vmem:[%s464 + $0x80] sm:$0xff] %v4154
          %4394 = vst [vmem:[%s464 + $0x88] sm:$0xff] %v4156
          %4395 = vst [vmem:[%s464 + $0x90] sm:$0xff] %v4158
          %4396 = vst [vmem:[%s464 + $0x98] sm:$0xff] %v4160
          %4397 = vst [vmem:[%s464 + $0xa0] sm:$0xff] %v4162
          %4398 = vst [vmem:[%s464 + $0xa8] sm:$0xff] %v4164
          %4399 = vst [vmem:[%s464 + $0xb0] sm:$0xff] %v4166
          %4400 = vst [vmem:[%s464 + $0xb8] sm:$0xff] %v4168
          %4401 = vst [vmem:[%s464 + $0xc0] sm:$0xff] %v4170
          %4402 = vst [vmem:[%s464 + $0xc8] sm:$0xff] %v4172
          %4403 = vst [vmem:[%s464 + $0xd0] sm:$0xff] %v4174
          %4404 = vst [vmem:[%s464 + $0xd8] sm:$0xff] %v4176
          %4405 = vst [vmem:[%s464 + $0xe0] sm:$0xff] %v4178
          %4406 = vst [vmem:[%s464 + $0xe8] sm:$0xff] %v4180
          %4407 = vst [vmem:[%s464 + $0xf0] sm:$0xff] %v4182
          %4408 = vst [vmem:[%s464 + $0xf8] sm:$0xff] %v4184
          %4409 = vst [vmem:[%s464 + $0x100] sm:$0xff] %v4186
          %4410 = vst [vmem:[%s464 + $0x108] sm:$0xff] %v4188
          %4411 = vst [vmem:[%s464 + $0x110] sm:$0xff] %v4190
          %4412 = vst [vmem:[%s464 + $0x118] sm:$0xff] %v4192
          %4413 = vst [vmem:[%s464 + $0x120] sm:$0xff] %v4194
          %4414 = vst [vmem:[%s464 + $0x128] sm:$0xff] %v4196
          %4415 = vst [vmem:[%s464 + $0x130] sm:$0xff] %v4198
          %4416 = vst [vmem:[%s464 + $0x138] sm:$0xff] %v4200
          %4417 = vst [vmem:[%s464 + $0x140] sm:$0xff] %v4202
          %4418 = vst [vmem:[%s464 + $0x148] sm:$0xff] %v4204
          %4419 = vst [vmem:[%s464 + $0x150] sm:$0xff] %v4206
          %4420 = vst [vmem:[%s464 + $0x158] sm:$0xff] %v4208
          %4421 = vst [vmem:[%s464 + $0x160] sm:$0xff] %v4210
          %4422 = vst [vmem:[%s464 + $0x168] sm:$0xff] %v4212
          %4423 = vst [vmem:[%s464 + $0x170] sm:$0xff] %v4214
          %4424 = vst [vmem:[%s464 + $0x178] sm:$0xff] %v4216
          %4425 = vst [vmem:[%s464 + $0x180] sm:$0xff] %v4218
          %4426 = vst [vmem:[%s464 + $0x188] sm:$0xff] %v4220
          %4427 = vst [vmem:[%s464 + $0x190] sm:$0xff] %v4222
          %4428 = vst [vmem:[%s464 + $0x198] sm:$0xff] %v4224
          %4429 = vst [vmem:[%s464 + $0x1a0] sm:$0xff] %v4226
          %4430 = vst [vmem:[%s464 + $0x1a8] sm:$0xff] %v4228
          %4431 = vst [vmem:[%s464 + $0x1b0] sm:$0xff] %v4230
          %4432 = vst [vmem:[%s464 + $0x1b8] sm:$0xff] %v4232
          %4433 = vst [vmem:[%s464 + $0x1c0] sm:$0xff] %v4234
          %4434 = vst [vmem:[%s464 + $0x1c8] sm:$0xff] %v4236
          %4435 = vst [vmem:[%s464 + $0x1d0] sm:$0xff] %v4238
          %4436 = vst [vmem:[%s464 + $0x1d8] sm:$0xff] %v4240
          %4437 = vst [vmem:[%s464 + $0x1e0] sm:$0xff] %v4242
          %4438 = vst [vmem:[%s464 + $0x1e8] sm:$0xff] %v4244
          %4439 = vst [vmem:[%s464 + $0x1f0] sm:$0xff] %v4246
          %4440 = vst [vmem:[%s464 + $0x1f8] sm:$0xff] %v4248
          %4441 = vst [vmem:[%s464 + $0x200] sm:$0xff] %v4250
          %4442 = vst [vmem:[%s464 + $0x208] sm:$0xff] %v4252
          %4443 = vst [vmem:[%s464 + $0x210] sm:$0xff] %v4254
          %4444 = vst [vmem:[%s464 + $0x218] sm:$0xff] %v4256
          %4445 = vst [vmem:[%s464 + $0x220] sm:$0xff] %v4258
          %4446 = vst [vmem:[%s464 + $0x228] sm:$0xff] %v4260
          %4447 = vst [vmem:[%s464 + $0x230] sm:$0xff] %v4262
          %4448 = vst [vmem:[%s464 + $0x238] sm:$0xff] %v4264
          %4449 = vst [vmem:[%s464 + $0x240] sm:$0xff] %v4266
          %4450 = vst [vmem:[%s464 + $0x248] sm:$0xff] %v4268
          %4451 = vst [vmem:[%s464 + $0x250] sm:$0xff] %v4270
          %4452 = vst [vmem:[%s464 + $0x258] sm:$0xff] %v4272
          %4453 = vst [vmem:[%s464 + $0x260] sm:$0xff] %v4274
          %4454 = vst [vmem:[%s464 + $0x268] sm:$0xff] %v4276
          %4455 = vst [vmem:[%s464 + $0x270] sm:$0xff] %v4278
          %4456 = vst [vmem:[%s464 + $0x278] sm:$0xff] %v4280
          %4457 = vst [vmem:[%s464 + $0x280] sm:$0xff] %v4282
          %4458 = vst [vmem:[%s464 + $0x288] sm:$0xff] %v4284
          %4459 = vst [vmem:[%s464 + $0x290] sm:$0xff] %v4286
          %4460 = vst [vmem:[%s464 + $0x298] sm:$0xff] %v4288
          %4461 = vst [vmem:[%s464 + $0x2a0] sm:$0xff] %v4290
          %4462 = vst [vmem:[%s464 + $0x2a8] sm:$0xff] %v4292
          %4463 = vst [vmem:[%s464 + $0x2b0] sm:$0xff] %v4294
          %4464 = vst [vmem:[%s464 + $0x2b8] sm:$0xff] %v4296
          %4465 = vst [vmem:[%s464 + $0x2c0] sm:$0xff] %v4298
          %4466 = vst [vmem:[%s464 + $0x2c8] sm:$0xff] %v4300
          %4467 = vst [vmem:[%s464 + $0x2d0] sm:$0xff] %v4302
          %4468 = vst [vmem:[%s464 + $0x2d8] sm:$0xff] %v4304
          %4469 = vst [vmem:[%s464 + $0x2e0] sm:$0xff] %v4306
          %4470 = vst [vmem:[%s464 + $0x2e8] sm:$0xff] %v4308
          %4471 = vst [vmem:[%s464 + $0x2f0] sm:$0xff] %v4310
          %4472 = vst [vmem:[%s464 + $0x2f8] sm:$0xff] %v4312
          %4473 = vst [vmem:[%s464 + $0x300] sm:$0xff] %v4314
          %4474 = vst [vmem:[%s464 + $0x308] sm:$0xff] %v4316
          %4475 = vst [vmem:[%s464 + $0x310] sm:$0xff] %v4318
          %4476 = vst [vmem:[%s464 + $0x318] sm:$0xff] %v4320
          %4477 = vst [vmem:[%s464 + $0x320] sm:$0xff] %v4322
          %4478 = vst [vmem:[%s464 + $0x328] sm:$0xff] %v4324
          %4479 = vst [vmem:[%s464 + $0x330] sm:$0xff] %v4326
          %4480 = vst [vmem:[%s464 + $0x338] sm:$0xff] %v4328
          %4481 = vst [vmem:[%s464 + $0x340] sm:$0xff] %v4330
          %4482 = vst [vmem:[%s464 + $0x348] sm:$0xff] %v4332
          %4483 = vst [vmem:[%s464 + $0x350] sm:$0xff] %v4334
          %4484 = vst [vmem:[%s464 + $0x358] sm:$0xff] %v4336
          %4485 = vst [vmem:[%s464 + $0x360] sm:$0xff] %v4338
          %4486 = vst [vmem:[%s464 + $0x368] sm:$0xff] %v4340
          %4487 = vst [vmem:[%s464 + $0x370] sm:$0xff] %v4342
          %4488 = vst [vmem:[%s464 + $0x378] sm:$0xff] %v4344
          %4489 = vst [vmem:[%s464 + $0x380] sm:$0xff] %v4346
          %4490 = vst [vmem:[%s464 + $0x388] sm:$0xff] %v4348
          %4491 = vst [vmem:[%s464 + $0x390] sm:$0xff] %v4350
          %4492 = vst [vmem:[%s464 + $0x398] sm:$0xff] %v4352
          %4493 = vst [vmem:[%s464 + $0x3a0] sm:$0xff] %v4354
          %4494 = vst [vmem:[%s464 + $0x3a8] sm:$0xff] %v4356
          %4495 = vst [vmem:[%s464 + $0x3b0] sm:$0xff] %v4358
          %4496 = vst [vmem:[%s464 + $0x3b8] sm:$0xff] %v4360
          %4497 = vst [vmem:[%s464 + $0x3c0] sm:$0xff] %v4362
          %4498 = vst [vmem:[%s464 + $0x3c8] sm:$0xff] %v4364
          %4499 = vst [vmem:[%s464 + $0x3d0] sm:$0xff] %v4366
          %4500 = vst [vmem:[%s464 + $0x3d8] sm:$0xff] %v4368
          %4501 = vst [vmem:[%s464 + $0x3e0] sm:$0xff] %v4370
          %4502 = vst [vmem:[%s464 + $0x3e8] sm:$0xff] %v4372
          %4503 = vst [vmem:[%s464 + $0x3f0] sm:$0xff] %v4374
          %4504 = vst [vmem:[%s464 + $0x3f8] sm:$0xff] %v4376
        $region76: #{cdae_forward.1} parent=47 // pred_fallthru
          _
        %s4505 = sand.u32 %s249, 1
        %s4506 = scalar_lea.sflag [#allocation6], %s4505
        %s4507 = sand.u32 %s249, 1
        %s4508 = smul.addr %s4507, 1024
        %s4509 = scalar_lea.vmem [#allocation10], %s4508
        // Predicated region
        $region77: #{cdae_forward.1} parent=47 // pred_check
          %p4510 = pneg %p259
        $region78: #{cdae_forward.1} parent=47 // pred_check_branch
          %4512 = sbr.rel (%p4510) target = $region80
        $region79: #{cdae_forward.1} parent=47 // pred_region
          %s4513 = ssub.s32 %s32, 2
          %p4514 = scmp.gt.s32.totalorder %s4513, 0
          %s4515 = scalar_select %p4514, %s4513, 0
          %s4516 = smul.u32 8, %s31
          %s4517 = smul.u32 16, %s4515
          %s4519 = ssub.s32 16384, 16384
          %4520 = vsyncadd %s4506, %s4519
          %s4521 = smul.addr %s4516, 32
          %s4522 = sadd.s32 %s4517, %s4521
          %s4523 = smul.addr %s4522, 128
          %s4524 = scalar_lea.hbm %s7, %s4523
          %s4525 = sshll.u32 %s4509, 4
          %s4526 = int_to_ptr.vmem [resolvable:$true] %s4525
          %4531 = dma.vmem_to_hbm [thread:$0]  %s4526, 16384, %s4524, %s4506, 2048, 4096, 128
        $region80: #{cdae_forward.1} parent=47 // pred_fallthru
          _
      $region48: #{cdae_forward.1} parent=5 // pred_fallthru
        _
      %p4532 = scmp.le.s32.totalorder 2, %s22
      // Predicated region
      $region81: #{cdae_forward.1} parent=5 // pred_check
        %p4533 = pneg %p4532
      $region82: #{cdae_forward.1} parent=5 // pred_check_branch
        %4535 = sbr.rel (%p4533) target = $region84
      $region83: #{cdae_forward.1} parent=5 // pred_region
        %s4536 = ssub.s32 %s22, 2
        // Predicated region
        $region85: #{cdae_forward.1} parent=83 // pred_check
          %p4537 = pneg %p265
        $region86: #{cdae_forward.1} parent=83 // pred_check_branch
          %4539 = sbr.rel (%p4537) target = $region88
        $region87: #{cdae_forward.1} parent=83 // pred_region
          %s4540 = sand.u32 %s250, 1
          %s4541 = scalar_lea.sflag [#allocation6], %s4540
          %s4542 = sand.u32 %s250, 1
          %s4543 = smul.addr %s4542, 1024
          %s4544 = scalar_lea.vmem [#allocation10], %s4543
          %4545 = dma.done %s4541, 16384
        $region88: #{cdae_forward.1} parent=83 // pred_fallthru
          _
      $region84: #{cdae_forward.1} parent=5 // pred_fallthru
        _
    $region6: #{cdae_forward.1} parent=1 // loop_footer
      %s26 = sadd.s32 1, %s22
    $region7: #{cdae_forward.1} parent=1 // loop_footer_branch
      %21 = sbr.rel target = $region3
    $region8: #{cdae_forward.1} parent=1 // loop_exit
      _
    %4546 = vsyncpa [#allocation5], 1
    %s4547 = scalar_lea.sflag [#allocation5], 1
    %4548 = vsyncpa %s4547, 1
    %4549 = vsyncpa [#allocation8], 1
    %s4550 = scalar_lea.sflag [#allocation8], 1
    %4551 = vsyncpa %s4550, 1
    %4552 = vsyncpa [#allocation6], 1
    %s4553 = scalar_lea.sflag [#allocation6], 1
    %4554 = vsyncpa %s4553, 1

</llo_original>
